<compile_context>
chip_gen: v7x
topology: tpu7x:2x2x1
jax: 0.10.0
libtpu: 0.0.40
codegen_flags: <defaults>
</compile_context>

<pallas_src>
import numpy as np

import jax
import jax.numpy as jnp
from jax.experimental import pallas as pl
from jax.experimental.pallas import tpu as pltpu


# ------------------------------ fused Pallas kernel ------------------------------

def _lenet_fused_kernel(x_ref, t1_ref, b1_ref, s1_ref, s2_ref,
                        t2_ref, b2_ref, s3_ref, s4_ref,
                        wf1_ref, bf1_ref, wf2_ref, bf2_ref, wf3_ref, bf3_ref,
                        out_ref):
    """Whole LeNet forward on VMEM-resident operands.

    Activation layout inside the kernel: (N, H, W*C) -- H on sublanes, (W, C) merged on lanes
    with channels fastest.  Convs are sums over the 5 kernel rows of batched matmuls against
    banded (Toeplitz) weight matrices; pooling is neighbour-max + 0/1 selection matmuls.
    """

    def bmm(a, b):
        # batched matmul; whichever operand is 2-D is broadcast over the batch dim.
        if a.ndim == 2:
            a = jnp.broadcast_to(a, (b.shape[0],) + a.shape)
        if b.ndim == 2:
            b = jnp.broadcast_to(b, (a.shape[0],) + b.shape)
        return jnp.einsum("bmk,bkn->bmn", a, b,
                          preferred_element_type=jnp.float32)

    x = x_ref[...]                                           # (N, 32, 32)

    # ---- conv1 + bias + ReLU: output lanes = ow*6 + oc ----
    a1 = bmm(x[:, 0:28, :], t1_ref[0])
    for kh in range(1, 5):
        a1 = a1 + bmm(x[:, kh:kh + 28, :], t1_ref[kh])       # (N, 28, 168)
    a1 = jnp.maximum(a1 + b1_ref[...], 0.0)

    # ---- fused 2x2 max-pool #1 (neighbour max + stride-2 selection matmuls) ----
    hm = jnp.maximum(a1[:, 0:27, :], a1[:, 1:28, :])         # (N, 27, 168)
    wm = jnp.maximum(hm[:, :, 0:162], hm[:, :, 6:168])       # (N, 27, 162)
    p1 = bmm(s2_ref[...], bmm(wm, s1_ref[...]))              # (N, 14, 84)  lanes = pw*6 + c

    # ---- conv2 + bias + ReLU: output lanes = ow*16 + oc ----
    a2 = bmm(p1[:, 0:10, :], t2_ref[0])
    for kh in range(1, 5):
        a2 = a2 + bmm(p1[:, kh:kh + 10, :], t2_ref[kh])      # (N, 10, 160)
    a2 = jnp.maximum(a2 + b2_ref[...], 0.0)

    # ---- fused 2x2 max-pool #2 ----
    hm2 = jnp.maximum(a2[:, 0:9, :], a2[:, 1:10, :])         # (N, 9, 160)
    wm2 = jnp.maximum(hm2[:, :, 0:144], hm2[:, :, 16:160])   # (N, 9, 144)
    p2 = bmm(s4_ref[...], bmm(wm2, s3_ref[...]))             # (N, 5, 80)   lanes = pw*16 + c

    # ---- fc1 + ReLU: the (N, 400) flatten is folded into 5 row-sliced matmuls,
    #      fc1 weights were pre-permuted to the kernel's (h, w, c) feature order ----
    y = bmm(p2[:, 0:1, :], wf1_ref[0])
    for h in range(1, 5):
        y = y + bmm(p2[:, h:h + 1, :], wf1_ref[h])           # (N, 1, 120)
    y = jnp.maximum(y + bf1_ref[...], 0.0)

    # ---- fc2 + ReLU, fc3 ----
    y = jnp.maximum(bmm(y, wf2_ref[...]) + bf2_ref[...], 0.0)   # (N, 1, 84)
    y = bmm(y, wf3_ref[...]) + bf3_ref[...]                     # (N, 1, 10)
    out_ref[...] = y


# ------------------------------ one-time weight preparation ------------------------------

def _conv_band_matrices(w, w_in, ow):
    """Conv weights (OC, IC, KH, KW) -> banded matmul weights (KH, W_in*IC, OW*OC).

    T[kh, wi*IC + c, ow*OC + oc] = w[oc, c, kh, wi - ow]  for 0 <= wi - ow < KW, else 0,
    so that (act_row_slice @ T[kh]) performs the KW- and IC-contraction of the conv for
    kernel row kh on a (sublane=H, lane=W*C) activation layout.
    """
    oc, ic, kh, kw = w.shape
    t = np.zeros((kh, w_in * ic, ow * oc), np.float32)
    for r in range(kh):
        for q in range(kw):
            wt = np.asarray(w[:, :, r, q]).T                 # (IC, OC)
            for j in range(ow):
                wi = j + q
                t[r, wi * ic:(wi + 1) * ic, j * oc:(j + 1) * oc] = wt
    return t


def _lane_pool_selector(groups_in, groups_out, g):
    """0/1 matrix (groups_in*g, groups_out*g) selecting every other lane-group of size g."""
    s = np.zeros((groups_in * g, groups_out * g), np.float32)
    for p in range(groups_out):
        for c in range(g):
            s[2 * p * g + c, p * g + c] = 1.0
    return s


def _row_pool_selector(rows_out, rows_in):
    """0/1 matrix (rows_out, rows_in) selecting every other sublane row."""
    s = np.zeros((rows_out, rows_in), np.float32)
    for p in range(rows_out):
        s[p, 2 * p] = 1.0
    return s


def prepare_params(params):
    """Host-side, one-time transform of the PyTorch-layout params into kernel operands."""
    w1 = np.asarray(params["conv1_w"]); b1 = np.asarray(params["conv1_b"])
    w2 = np.asarray(params["conv2_w"]); b2 = np.asarray(params["conv2_b"])
    fc1w = np.asarray(params["fc1_w"]); fc1b = np.asarray(params["fc1_b"])
    fc2w = np.asarray(params["fc2_w"]); fc2b = np.asarray(params["fc2_b"])
    fc3w = np.asarray(params["fc3_w"]); fc3b = np.asarray(params["fc3_b"])

    prep = {
        "t1": _conv_band_matrices(w1, w_in=32, ow=28),        # (5, 32, 168)
        "b1": np.tile(b1, 28)[None, :],                       # (1, 168)
        "s1": _lane_pool_selector(27, 14, 6),                 # (162, 84)
        "s2": _row_pool_selector(14, 27),                     # (14, 27)
        "t2": _conv_band_matrices(w2, w_in=14, ow=10),        # (5, 84, 160)
        "b2": np.tile(b2, 10)[None, :],                       # (1, 160)
        "s3": _lane_pool_selector(9, 5, 16),                  # (144, 80)
        "s4": _row_pool_selector(5, 9),                       # (5, 9)
        # fc1: permute columns from PyTorch's (c, h, w) flatten order to the kernel's
        # (h, w, c) order and split per h so the flatten never has to be materialized.
        "wf1": fc1w.reshape(120, 16, 5, 5).transpose(2, 3, 1, 0).reshape(5, 80, 120),
        "bf1": fc1b[None, :],                                 # (1, 120)
        "wf2": fc2w.T,                                        # (120, 84)
        "bf2": fc2b[None, :],                                 # (1, 84)
        "wf3": fc3w.T,                                        # (84, 10)
        "bf3": fc3b[None, :],                                 # (1, 10)
    }
    return {k: jnp.asarray(v, jnp.float32) for k, v in prep.items()}


# ------------------------------ jitted forward ------------------------------

_VMEM = pl.BlockSpec(memory_space=pltpu.MemorySpace.VMEM)
_ARG_ORDER = ("t1", "b1", "s1", "s2", "t2", "b2", "s3", "s4",
              "wf1", "bf1", "wf2", "bf2", "wf3", "bf3")


@jax.jit
def net_forward(prep, x):
    """x: (N, 1, 32, 32) NCHW float32, exactly like the PyTorch module expects."""
    n = x.shape[0]
    x3 = x.reshape(n, 32, 32)                                 # IC == 1, free reshape

    args = (x3,) + tuple(prep[k] for k in _ARG_ORDER)

    flops = 2 * n * (5 * 28 * 32 * 168 + 27 * 162 * 84 + 14 * 27 * 84
                     + 5 * 10 * 84 * 160 + 9 * 144 * 80 + 5 * 9 * 80
                     + 5 * 80 * 120 + 120 * 84 + 84 * 10)
    bytes_accessed = sum(a.size * a.dtype.itemsize for a in args) + n * 10 * 4

    out = pl.pallas_call(
        _lenet_fused_kernel,
        out_shape=jax.ShapeDtypeStruct((n, 1, 10), jnp.float32),
        in_specs=[_VMEM] * len(args),
        out_specs=_VMEM,
        cost_estimate=pl.CostEstimate(flops=flops, transcendentals=0,
                                      bytes_accessed=bytes_accessed),
    )(*args)
    return out.reshape(n, 10)


# ------------------------------ params + plain-XLA reference ------------------------------

def init_params(key):
    ks = jax.random.split(key, 10)
    scale = 0.1
    return {
        "conv1_w": scale * jax.random.normal(ks[0], (6, 1, 5, 5), jnp.float32),
        "conv1_b": scale * jax.random.normal(ks[1], (6,), jnp.float32),
        "conv2_w": scale * jax.random.normal(ks[2], (16, 6, 5, 5), jnp.float32),
        "conv2_b": scale * jax.random.normal(ks[3], (16,), jnp.float32),
        "fc1_w": scale * jax.random.normal(ks[4], (120, 16 * 5 * 5), jnp.float32),
        "fc1_b": scale * jax.random.normal(ks[5], (120,), jnp.float32),
        "fc2_w": scale * jax.random.normal(ks[6], (84, 120), jnp.float32),
        "fc2_b": scale * jax.random.normal(ks[7], (84,), jnp.float32),
        "fc3_w": scale * jax.random.normal(ks[8], (10, 84), jnp.float32),
        "fc3_b": scale * jax.random.normal(ks[9], (10,), jnp.float32),
    }


@jax.jit
def lenet_reference(params, x):
    """Plain-XLA reference of the exact PyTorch forward (for correctness checking)."""
    hp = jax.lax.Precision.HIGHEST

    def conv_relu(z, w, b):
        y = jax.lax.conv_general_dilated(
            z, w, window_strides=(1, 1), padding="VALID",
            dimension_numbers=("NCHW", "OIHW", "NCHW"), precision=hp)
        return jax.nn.relu(y + b[None, :, None, None])

    def pool(z):
        return jax.lax.reduce_window(z, -jnp.inf, jax.lax.max,
                                     (1, 1, 2, 2), (1, 1, 2, 2), "VALID")

    z = pool(conv_relu(x, params["conv1_w"], params["conv1_b"]))
    z = pool(conv_relu(z, params["conv2_w"], params["conv2_b"]))
    z = z.reshape(z.shape[0], -1)
    z = jax.nn.relu(jnp.dot(z, params["fc1_w"].T, precision=hp) + params["fc1_b"])
    z = jax.nn.relu(jnp.dot(z, params["fc2_w"].T, precision=hp) + params["fc2_b"])
    return jnp.dot(z, params["fc3_w"].T, precision=hp) + params["fc3_b"]


if __name__ == "__main__":
    key = jax.random.PRNGKey(0)
    pkey, xkey = jax.random.split(key)
    params = init_params(pkey)
    prep = prepare_params(params)           # one-time host-side weight prep

    # LeNet requires a 32x32 single-channel input so that 16*5*5 features reach fc1.
    x = jax.random.normal(xkey, (2, 1, 32, 32), jnp.float32)

    out = jax.block_until_ready(net_forward(prep, x))
    assert out.shape == (2, 10), out.shape
    assert out.dtype == jnp.float32
    assert bool(jnp.all(jnp.isfinite(out)))

    ref = jax.block_until_ready(lenet_reference(params, x))
    np.testing.assert_allclose(np.asarray(out), np.asarray(ref), rtol=5e-2, atol=5e-2)

    print("KERNEL_OK")
</pallas_src>

<mosaic_0001>
module attributes {stable_mosaic.version = 11 : i64} {
  func.func @_lenet_fused_kernel(%arg0: memref<2x32x32xf32, #tpu.memory_space<vmem>>, %arg1: memref<5x32x168xf32, #tpu.memory_space<vmem>>, %arg2: memref<1x168xf32, #tpu.memory_space<vmem>>, %arg3: memref<162x84xf32, #tpu.memory_space<vmem>>, %arg4: memref<14x27xf32, #tpu.memory_space<vmem>>, %arg5: memref<5x84x160xf32, #tpu.memory_space<vmem>>, %arg6: memref<1x160xf32, #tpu.memory_space<vmem>>, %arg7: memref<144x80xf32, #tpu.memory_space<vmem>>, %arg8: memref<5x9xf32, #tpu.memory_space<vmem>>, %arg9: memref<5x80x120xf32, #tpu.memory_space<vmem>>, %arg10: memref<1x120xf32, #tpu.memory_space<vmem>>, %arg11: memref<120x84xf32, #tpu.memory_space<vmem>>, %arg12: memref<1x84xf32, #tpu.memory_space<vmem>>, %arg13: memref<84x10xf32, #tpu.memory_space<vmem>>, %arg14: memref<1x10xf32, #tpu.memory_space<vmem>>, %arg15: memref<2x1x10xf32, #tpu.memory_space<vmem>>) attributes {dimension_semantics = [], scalar_prefetch = 0 : i64, scratch_operands = 0 : i64, tpu.core_type = #tpu.core_type<tc>} {
    %c0 = arith.constant 0 : index
    %c0_0 = arith.constant 0 : index
    %c0_1 = arith.constant 0 : index
    %0 = vector.load %arg0[%c0, %c0_0, %c0_1] : memref<2x32x32xf32, #tpu.memory_space<vmem>>, vector<2x32x32xf32>
    %1 = vector.extract_strided_slice %0 {offsets = [0, 0, 0], sizes = [2, 28, 32], strides = [1, 1, 1]} : vector<2x32x32xf32> to vector<2x28x32xf32>
    %c0_2 = arith.constant 0 : index
    %c0_3 = arith.constant 0 : index
    %c0_4 = arith.constant 0 : index
    %2 = vector.load %arg1[%c0_2, %c0_3, %c0_4] : memref<5x32x168xf32, #tpu.memory_space<vmem>>, vector<1x32x168xf32>
    %3 = vector.shape_cast %2 : vector<1x32x168xf32> to vector<32x168xf32>
    %4 = vector.shape_cast %3 : vector<32x168xf32> to vector<1x32x168xf32>
    %5 = vector.broadcast %4 : vector<1x32x168xf32> to vector<2x32x168xf32>
    "tpu.trace_start"() <{level = 10 : i32, message = "bmk,bkn->bmn"}> : () -> ()
    %cst = arith.constant dense<0.000000e+00> : vector<2x28x168xf32>
    %6 = tpu.matmul %1, %5, %cst {dimension_numbers = #tpu.dot_dimension_numbers<[2], [1], [1], [2], [0, 0, 0, 1, 1, 2], [0], [0]>} : vector<2x28x32xf32>, vector<2x32x168xf32>, vector<2x28x168xf32> -> vector<2x28x168xf32>
    "tpu.trace_stop"() : () -> ()
    %7 = vector.extract_strided_slice %0 {offsets = [0, 1, 0], sizes = [2, 28, 32], strides = [1, 1, 1]} : vector<2x32x32xf32> to vector<2x28x32xf32>
    %c1 = arith.constant 1 : index
    %c0_5 = arith.constant 0 : index
    %c0_6 = arith.constant 0 : index
    %8 = vector.load %arg1[%c1, %c0_5, %c0_6] : memref<5x32x168xf32, #tpu.memory_space<vmem>>, vector<1x32x168xf32>
    %9 = vector.shape_cast %8 : vector<1x32x168xf32> to vector<32x168xf32>
    %10 = vector.shape_cast %9 : vector<32x168xf32> to vector<1x32x168xf32>
    %11 = vector.broadcast %10 : vector<1x32x168xf32> to vector<2x32x168xf32>
    "tpu.trace_start"() <{level = 10 : i32, message = "bmk,bkn->bmn"}> : () -> ()
    %cst_7 = arith.constant dense<0.000000e+00> : vector<2x28x168xf32>
    %12 = tpu.matmul %7, %11, %cst_7 {dimension_numbers = #tpu.dot_dimension_numbers<[2], [1], [1], [2], [0, 0, 0, 1, 1, 2], [0], [0]>} : vector<2x28x32xf32>, vector<2x32x168xf32>, vector<2x28x168xf32> -> vector<2x28x168xf32>
    "tpu.trace_stop"() : () -> ()
    %13 = arith.addf %6, %12 : vector<2x28x168xf32>
    %14 = vector.extract_strided_slice %0 {offsets = [0, 2, 0], sizes = [2, 28, 32], strides = [1, 1, 1]} : vector<2x32x32xf32> to vector<2x28x32xf32>
    %c2 = arith.constant 2 : index
    %c0_8 = arith.constant 0 : index
    %c0_9 = arith.constant 0 : index
    %15 = vector.load %arg1[%c2, %c0_8, %c0_9] : memref<5x32x168xf32, #tpu.memory_space<vmem>>, vector<1x32x168xf32>
    %16 = vector.shape_cast %15 : vector<1x32x168xf32> to vector<32x168xf32>
    %17 = vector.shape_cast %16 : vector<32x168xf32> to vector<1x32x168xf32>
    %18 = vector.broadcast %17 : vector<1x32x168xf32> to vector<2x32x168xf32>
    "tpu.trace_start"() <{level = 10 : i32, message = "bmk,bkn->bmn"}> : () -> ()
    %cst_10 = arith.constant dense<0.000000e+00> : vector<2x28x168xf32>
    %19 = tpu.matmul %14, %18, %cst_10 {dimension_numbers = #tpu.dot_dimension_numbers<[2], [1], [1], [2], [0, 0, 0, 1, 1, 2], [0], [0]>} : vector<2x28x32xf32>, vector<2x32x168xf32>, vector<2x28x168xf32> -> vector<2x28x168xf32>
    "tpu.trace_stop"() : () -> ()
    %20 = arith.addf %13, %19 : vector<2x28x168xf32>
    %21 = vector.extract_strided_slice %0 {offsets = [0, 3, 0], sizes = [2, 28, 32], strides = [1, 1, 1]} : vector<2x32x32xf32> to vector<2x28x32xf32>
    %c3 = arith.constant 3 : index
    %c0_11 = arith.constant 0 : index
    %c0_12 = arith.constant 0 : index
    %22 = vector.load %arg1[%c3, %c0_11, %c0_12] : memref<5x32x168xf32, #tpu.memory_space<vmem>>, vector<1x32x168xf32>
    %23 = vector.shape_cast %22 : vector<1x32x168xf32> to vector<32x168xf32>
    %24 = vector.shape_cast %23 : vector<32x168xf32> to vector<1x32x168xf32>
    %25 = vector.broadcast %24 : vector<1x32x168xf32> to vector<2x32x168xf32>
    "tpu.trace_start"() <{level = 10 : i32, message = "bmk,bkn->bmn"}> : () -> ()
    %cst_13 = arith.constant dense<0.000000e+00> : vector<2x28x168xf32>
    %26 = tpu.matmul %21, %25, %cst_13 {dimension_numbers = #tpu.dot_dimension_numbers<[2], [1], [1], [2], [0, 0, 0, 1, 1, 2], [0], [0]>} : vector<2x28x32xf32>, vector<2x32x168xf32>, vector<2x28x168xf32> -> vector<2x28x168xf32>
    "tpu.trace_stop"() : () -> ()
    %27 = arith.addf %20, %26 : vector<2x28x168xf32>
    %28 = vector.extract_strided_slice %0 {offsets = [0, 4, 0], sizes = [2, 28, 32], strides = [1, 1, 1]} : vector<2x32x32xf32> to vector<2x28x32xf32>
    %c4 = arith.constant 4 : index
    %c0_14 = arith.constant 0 : index
    %c0_15 = arith.constant 0 : index
    %29 = vector.load %arg1[%c4, %c0_14, %c0_15] : memref<5x32x168xf32, #tpu.memory_space<vmem>>, vector<1x32x168xf32>
    %30 = vector.shape_cast %29 : vector<1x32x168xf32> to vector<32x168xf32>
    %31 = vector.shape_cast %30 : vector<32x168xf32> to vector<1x32x168xf32>
    %32 = vector.broadcast %31 : vector<1x32x168xf32> to vector<2x32x168xf32>
    "tpu.trace_start"() <{level = 10 : i32, message = "bmk,bkn->bmn"}> : () -> ()
    %cst_16 = arith.constant dense<0.000000e+00> : vector<2x28x168xf32>
    %33 = tpu.matmul %28, %32, %cst_16 {dimension_numbers = #tpu.dot_dimension_numbers<[2], [1], [1], [2], [0, 0, 0, 1, 1, 2], [0], [0]>} : vector<2x28x32xf32>, vector<2x32x168xf32>, vector<2x28x168xf32> -> vector<2x28x168xf32>
    "tpu.trace_stop"() : () -> ()
    %34 = arith.addf %27, %33 : vector<2x28x168xf32>
    %c0_17 = arith.constant 0 : index
    %c0_18 = arith.constant 0 : index
    %35 = vector.load %arg2[%c0_17, %c0_18] : memref<1x168xf32, #tpu.memory_space<vmem>>, vector<1x168xf32>
    %36 = vector.shape_cast %35 : vector<1x168xf32> to vector<1x1x168xf32>
    %37 = vector.broadcast %36 : vector<1x1x168xf32> to vector<2x28x168xf32>
    %38 = arith.addf %34, %37 : vector<2x28x168xf32>
    %cst_19 = arith.constant 0.000000e+00 : f32
    %39 = vector.broadcast %cst_19 : f32 to vector<2x28x168xf32>
    %40 = arith.maximumf %38, %39 : vector<2x28x168xf32>
    %41 = vector.extract_strided_slice %40 {offsets = [0, 0, 0], sizes = [2, 27, 168], strides = [1, 1, 1]} : vector<2x28x168xf32> to vector<2x27x168xf32>
    %42 = vector.extract_strided_slice %40 {offsets = [0, 1, 0], sizes = [2, 27, 168], strides = [1, 1, 1]} : vector<2x28x168xf32> to vector<2x27x168xf32>
    %43 = arith.maximumf %41, %42 : vector<2x27x168xf32>
    %44 = vector.extract_strided_slice %43 {offsets = [0, 0, 0], sizes = [2, 27, 162], strides = [1, 1, 1]} : vector<2x27x168xf32> to vector<2x27x162xf32>
    %45 = vector.extract_strided_slice %43 {offsets = [0, 0, 6], sizes = [2, 27, 162], strides = [1, 1, 1]} : vector<2x27x168xf32> to vector<2x27x162xf32>
    %46 = arith.maximumf %44, %45 : vector<2x27x162xf32>
    %c0_20 = arith.constant 0 : index
    %c0_21 = arith.constant 0 : index
    %47 = vector.load %arg4[%c0_20, %c0_21] : memref<14x27xf32, #tpu.memory_space<vmem>>, vector<14x27xf32>
    %c0_22 = arith.constant 0 : index
    %c0_23 = arith.constant 0 : index
    %48 = vector.load %arg3[%c0_22, %c0_23] : memref<162x84xf32, #tpu.memory_space<vmem>>, vector<162x84xf32>
    %49 = vector.shape_cast %48 : vector<162x84xf32> to vector<1x162x84xf32>
    %50 = vector.broadcast %49 : vector<1x162x84xf32> to vector<2x162x84xf32>
    "tpu.trace_start"() <{level = 10 : i32, message = "bmk,bkn->bmn"}> : () -> ()
    %cst_24 = arith.constant dense<0.000000e+00> : vector<2x27x84xf32>
    %51 = tpu.matmul %46, %50, %cst_24 {dimension_numbers = #tpu.dot_dimension_numbers<[2], [1], [1], [2], [0, 0, 0, 1, 1, 2], [0], [0]>} : vector<2x27x162xf32>, vector<2x162x84xf32>, vector<2x27x84xf32> -> vector<2x27x84xf32>
    "tpu.trace_stop"() : () -> ()
    %52 = vector.shape_cast %47 : vector<14x27xf32> to vector<1x14x27xf32>
    %53 = vector.broadcast %52 : vector<1x14x27xf32> to vector<2x14x27xf32>
    "tpu.trace_start"() <{level = 10 : i32, message = "bmk,bkn->bmn"}> : () -> ()
    %cst_25 = arith.constant dense<0.000000e+00> : vector<2x14x84xf32>
    %54 = tpu.matmul %53, %51, %cst_25 {dimension_numbers = #tpu.dot_dimension_numbers<[2], [1], [1], [2], [0, 0, 0, 1, 1, 2], [0], [0]>} : vector<2x14x27xf32>, vector<2x27x84xf32>, vector<2x14x84xf32> -> vector<2x14x84xf32>
    "tpu.trace_stop"() : () -> ()
    %55 = vector.extract_strided_slice %54 {offsets = [0, 0, 0], sizes = [2, 10, 84], strides = [1, 1, 1]} : vector<2x14x84xf32> to vector<2x10x84xf32>
    %c0_26 = arith.constant 0 : index
    %c0_27 = arith.constant 0 : index
    %c0_28 = arith.constant 0 : index
    %56 = vector.load %arg5[%c0_26, %c0_27, %c0_28] : memref<5x84x160xf32, #tpu.memory_space<vmem>>, vector<1x84x160xf32>
    %57 = vector.shape_cast %56 : vector<1x84x160xf32> to vector<84x160xf32>
    %58 = vector.shape_cast %57 : vector<84x160xf32> to vector<1x84x160xf32>
    %59 = vector.broadcast %58 : vector<1x84x160xf32> to vector<2x84x160xf32>
    "tpu.trace_start"() <{level = 10 : i32, message = "bmk,bkn->bmn"}> : () -> ()
    %cst_29 = arith.constant dense<0.000000e+00> : vector<2x10x160xf32>
    %60 = tpu.matmul %55, %59, %cst_29 {dimension_numbers = #tpu.dot_dimension_numbers<[2], [1], [1], [2], [0, 0, 0, 1, 1, 2], [0], [0]>} : vector<2x10x84xf32>, vector<2x84x160xf32>, vector<2x10x160xf32> -> vector<2x10x160xf32>
    "tpu.trace_stop"() : () -> ()
    %61 = vector.extract_strided_slice %54 {offsets = [0, 1, 0], sizes = [2, 10, 84], strides = [1, 1, 1]} : vector<2x14x84xf32> to vector<2x10x84xf32>
    %c1_30 = arith.constant 1 : index
    %c0_31 = arith.constant 0 : index
    %c0_32 = arith.constant 0 : index
    %62 = vector.load %arg5[%c1_30, %c0_31, %c0_32] : memref<5x84x160xf32, #tpu.memory_space<vmem>>, vector<1x84x160xf32>
    %63 = vector.shape_cast %62 : vector<1x84x160xf32> to vector<84x160xf32>
    %64 = vector.shape_cast %63 : vector<84x160xf32> to vector<1x84x160xf32>
    %65 = vector.broadcast %64 : vector<1x84x160xf32> to vector<2x84x160xf32>
    "tpu.trace_start"() <{level = 10 : i32, message = "bmk,bkn->bmn"}> : () -> ()
    %cst_33 = arith.constant dense<0.000000e+00> : vector<2x10x160xf32>
    %66 = tpu.matmul %61, %65, %cst_33 {dimension_numbers = #tpu.dot_dimension_numbers<[2], [1], [1], [2], [0, 0, 0, 1, 1, 2], [0], [0]>} : vector<2x10x84xf32>, vector<2x84x160xf32>, vector<2x10x160xf32> -> vector<2x10x160xf32>
    "tpu.trace_stop"() : () -> ()
    %67 = arith.addf %60, %66 : vector<2x10x160xf32>
    %68 = vector.extract_strided_slice %54 {offsets = [0, 2, 0], sizes = [2, 10, 84], strides = [1, 1, 1]} : vector<2x14x84xf32> to vector<2x10x84xf32>
    %c2_34 = arith.constant 2 : index
    %c0_35 = arith.constant 0 : index
    %c0_36 = arith.constant 0 : index
    %69 = vector.load %arg5[%c2_34, %c0_35, %c0_36] : memref<5x84x160xf32, #tpu.memory_space<vmem>>, vector<1x84x160xf32>
    %70 = vector.shape_cast %69 : vector<1x84x160xf32> to vector<84x160xf32>
    %71 = vector.shape_cast %70 : vector<84x160xf32> to vector<1x84x160xf32>
    %72 = vector.broadcast %71 : vector<1x84x160xf32> to vector<2x84x160xf32>
    "tpu.trace_start"() <{level = 10 : i32, message = "bmk,bkn->bmn"}> : () -> ()
    %cst_37 = arith.constant dense<0.000000e+00> : vector<2x10x160xf32>
    %73 = tpu.matmul %68, %72, %cst_37 {dimension_numbers = #tpu.dot_dimension_numbers<[2], [1], [1], [2], [0, 0, 0, 1, 1, 2], [0], [0]>} : vector<2x10x84xf32>, vector<2x84x160xf32>, vector<2x10x160xf32> -> vector<2x10x160xf32>
    "tpu.trace_stop"() : () -> ()
    %74 = arith.addf %67, %73 : vector<2x10x160xf32>
    %75 = vector.extract_strided_slice %54 {offsets = [0, 3, 0], sizes = [2, 10, 84], strides = [1, 1, 1]} : vector<2x14x84xf32> to vector<2x10x84xf32>
    %c3_38 = arith.constant 3 : index
    %c0_39 = arith.constant 0 : index
    %c0_40 = arith.constant 0 : index
    %76 = vector.load %arg5[%c3_38, %c0_39, %c0_40] : memref<5x84x160xf32, #tpu.memory_space<vmem>>, vector<1x84x160xf32>
    %77 = vector.shape_cast %76 : vector<1x84x160xf32> to vector<84x160xf32>
    %78 = vector.shape_cast %77 : vector<84x160xf32> to vector<1x84x160xf32>
    %79 = vector.broadcast %78 : vector<1x84x160xf32> to vector<2x84x160xf32>
    "tpu.trace_start"() <{level = 10 : i32, message = "bmk,bkn->bmn"}> : () -> ()
    %cst_41 = arith.constant dense<0.000000e+00> : vector<2x10x160xf32>
    %80 = tpu.matmul %75, %79, %cst_41 {dimension_numbers = #tpu.dot_dimension_numbers<[2], [1], [1], [2], [0, 0, 0, 1, 1, 2], [0], [0]>} : vector<2x10x84xf32>, vector<2x84x160xf32>, vector<2x10x160xf32> -> vector<2x10x160xf32>
    "tpu.trace_stop"() : () -> ()
    %81 = arith.addf %74, %80 : vector<2x10x160xf32>
    %82 = vector.extract_strided_slice %54 {offsets = [0, 4, 0], sizes = [2, 10, 84], strides = [1, 1, 1]} : vector<2x14x84xf32> to vector<2x10x84xf32>
    %c4_42 = arith.constant 4 : index
    %c0_43 = arith.constant 0 : index
    %c0_44 = arith.constant 0 : index
    %83 = vector.load %arg5[%c4_42, %c0_43, %c0_44] : memref<5x84x160xf32, #tpu.memory_space<vmem>>, vector<1x84x160xf32>
    %84 = vector.shape_cast %83 : vector<1x84x160xf32> to vector<84x160xf32>
    %85 = vector.shape_cast %84 : vector<84x160xf32> to vector<1x84x160xf32>
    %86 = vector.broadcast %85 : vector<1x84x160xf32> to vector<2x84x160xf32>
    "tpu.trace_start"() <{level = 10 : i32, message = "bmk,bkn->bmn"}> : () -> ()
    %cst_45 = arith.constant dense<0.000000e+00> : vector<2x10x160xf32>
    %87 = tpu.matmul %82, %86, %cst_45 {dimension_numbers = #tpu.dot_dimension_numbers<[2], [1], [1], [2], [0, 0, 0, 1, 1, 2], [0], [0]>} : vector<2x10x84xf32>, vector<2x84x160xf32>, vector<2x10x160xf32> -> vector<2x10x160xf32>
    "tpu.trace_stop"() : () -> ()
    %88 = arith.addf %81, %87 : vector<2x10x160xf32>
    %c0_46 = arith.constant 0 : index
    %c0_47 = arith.constant 0 : index
    %89 = vector.load %arg6[%c0_46, %c0_47] : memref<1x160xf32, #tpu.memory_space<vmem>>, vector<1x160xf32>
    %90 = vector.shape_cast %89 : vector<1x160xf32> to vector<1x1x160xf32>
    %91 = vector.broadcast %90 : vector<1x1x160xf32> to vector<2x10x160xf32>
    %92 = arith.addf %88, %91 : vector<2x10x160xf32>
    %cst_48 = arith.constant 0.000000e+00 : f32
    %93 = vector.broadcast %cst_48 : f32 to vector<2x10x160xf32>
    %94 = arith.maximumf %92, %93 : vector<2x10x160xf32>
    %95 = vector.extract_strided_slice %94 {offsets = [0, 0, 0], sizes = [2, 9, 160], strides = [1, 1, 1]} : vector<2x10x160xf32> to vector<2x9x160xf32>
    %96 = vector.extract_strided_slice %94 {offsets = [0, 1, 0], sizes = [2, 9, 160], strides = [1, 1, 1]} : vector<2x10x160xf32> to vector<2x9x160xf32>
    %97 = arith.maximumf %95, %96 : vector<2x9x160xf32>
    %98 = vector.extract_strided_slice %97 {offsets = [0, 0, 0], sizes = [2, 9, 144], strides = [1, 1, 1]} : vector<2x9x160xf32> to vector<2x9x144xf32>
    %99 = vector.extract_strided_slice %97 {offsets = [0, 0, 16], sizes = [2, 9, 144], strides = [1, 1, 1]} : vector<2x9x160xf32> to vector<2x9x144xf32>
    %100 = arith.maximumf %98, %99 : vector<2x9x144xf32>
    %c0_49 = arith.constant 0 : index
    %c0_50 = arith.constant 0 : index
    %101 = vector.load %arg8[%c0_49, %c0_50] : memref<5x9xf32, #tpu.memory_space<vmem>>, vector<5x9xf32>
    %c0_51 = arith.constant 0 : index
    %c0_52 = arith.constant 0 : index
    %102 = vector.load %arg7[%c0_51, %c0_52] : memref<144x80xf32, #tpu.memory_space<vmem>>, vector<144x80xf32>
    %103 = vector.shape_cast %102 : vector<144x80xf32> to vector<1x144x80xf32>
    %104 = vector.broadcast %103 : vector<1x144x80xf32> to vector<2x144x80xf32>
    "tpu.trace_start"() <{level = 10 : i32, message = "bmk,bkn->bmn"}> : () -> ()
    %cst_53 = arith.constant dense<0.000000e+00> : vector<2x9x80xf32>
    %105 = tpu.matmul %100, %104, %cst_53 {dimension_numbers = #tpu.dot_dimension_numbers<[2], [1], [1], [2], [0, 0, 0, 1, 1, 2], [0], [0]>} : vector<2x9x144xf32>, vector<2x144x80xf32>, vector<2x9x80xf32> -> vector<2x9x80xf32>
    "tpu.trace_stop"() : () -> ()
    %106 = vector.shape_cast %101 : vector<5x9xf32> to vector<1x5x9xf32>
    %107 = vector.broadcast %106 : vector<1x5x9xf32> to vector<2x5x9xf32>
    "tpu.trace_start"() <{level = 10 : i32, message = "bmk,bkn->bmn"}> : () -> ()
    %cst_54 = arith.constant dense<0.000000e+00> : vector<2x5x80xf32>
    %108 = tpu.matmul %107, %105, %cst_54 {dimension_numbers = #tpu.dot_dimension_numbers<[2], [1], [1], [2], [0, 0, 0, 1, 1, 2], [0], [0]>} : vector<2x5x9xf32>, vector<2x9x80xf32>, vector<2x5x80xf32> -> vector<2x5x80xf32>
    "tpu.trace_stop"() : () -> ()
    %109 = vector.extract_strided_slice %108 {offsets = [0, 0, 0], sizes = [2, 1, 80], strides = [1, 1, 1]} : vector<2x5x80xf32> to vector<2x1x80xf32>
    %c0_55 = arith.constant 0 : index
    %c0_56 = arith.constant 0 : index
    %c0_57 = arith.constant 0 : index
    %110 = vector.load %arg9[%c0_55, %c0_56, %c0_57] : memref<5x80x120xf32, #tpu.memory_space<vmem>>, vector<1x80x120xf32>
    %111 = vector.shape_cast %110 : vector<1x80x120xf32> to vector<80x120xf32>
    %112 = vector.shape_cast %111 : vector<80x120xf32> to vector<1x80x120xf32>
    %113 = vector.broadcast %112 : vector<1x80x120xf32> to vector<2x80x120xf32>
    "tpu.trace_start"() <{level = 10 : i32, message = "bmk,bkn->bmn"}> : () -> ()
    %cst_58 = arith.constant dense<0.000000e+00> : vector<2x1x120xf32>
    %114 = tpu.matmul %109, %113, %cst_58 {dimension_numbers = #tpu.dot_dimension_numbers<[2], [1], [1], [2], [0, 0, 0, 1, 1, 2], [0], [0]>} : vector<2x1x80xf32>, vector<2x80x120xf32>, vector<2x1x120xf32> -> vector<2x1x120xf32>
    "tpu.trace_stop"() : () -> ()
    %115 = vector.extract_strided_slice %108 {offsets = [0, 1, 0], sizes = [2, 1, 80], strides = [1, 1, 1]} : vector<2x5x80xf32> to vector<2x1x80xf32>
    %c1_59 = arith.constant 1 : index
    %c0_60 = arith.constant 0 : index
    %c0_61 = arith.constant 0 : index
    %116 = vector.load %arg9[%c1_59, %c0_60, %c0_61] : memref<5x80x120xf32, #tpu.memory_space<vmem>>, vector<1x80x120xf32>
    %117 = vector.shape_cast %116 : vector<1x80x120xf32> to vector<80x120xf32>
    %118 = vector.shape_cast %117 : vector<80x120xf32> to vector<1x80x120xf32>
    %119 = vector.broadcast %118 : vector<1x80x120xf32> to vector<2x80x120xf32>
    "tpu.trace_start"() <{level = 10 : i32, message = "bmk,bkn->bmn"}> : () -> ()
    %cst_62 = arith.constant dense<0.000000e+00> : vector<2x1x120xf32>
    %120 = tpu.matmul %115, %119, %cst_62 {dimension_numbers = #tpu.dot_dimension_numbers<[2], [1], [1], [2], [0, 0, 0, 1, 1, 2], [0], [0]>} : vector<2x1x80xf32>, vector<2x80x120xf32>, vector<2x1x120xf32> -> vector<2x1x120xf32>
    "tpu.trace_stop"() : () -> ()
    %121 = arith.addf %114, %120 : vector<2x1x120xf32>
    %122 = vector.extract_strided_slice %108 {offsets = [0, 2, 0], sizes = [2, 1, 80], strides = [1, 1, 1]} : vector<2x5x80xf32> to vector<2x1x80xf32>
    %c2_63 = arith.constant 2 : index
    %c0_64 = arith.constant 0 : index
    %c0_65 = arith.constant 0 : index
    %123 = vector.load %arg9[%c2_63, %c0_64, %c0_65] : memref<5x80x120xf32, #tpu.memory_space<vmem>>, vector<1x80x120xf32>
    %124 = vector.shape_cast %123 : vector<1x80x120xf32> to vector<80x120xf32>
    %125 = vector.shape_cast %124 : vector<80x120xf32> to vector<1x80x120xf32>
    %126 = vector.broadcast %125 : vector<1x80x120xf32> to vector<2x80x120xf32>
    "tpu.trace_start"() <{level = 10 : i32, message = "bmk,bkn->bmn"}> : () -> ()
    %cst_66 = arith.constant dense<0.000000e+00> : vector<2x1x120xf32>
    %127 = tpu.matmul %122, %126, %cst_66 {dimension_numbers = #tpu.dot_dimension_numbers<[2], [1], [1], [2], [0, 0, 0, 1, 1, 2], [0], [0]>} : vector<2x1x80xf32>, vector<2x80x120xf32>, vector<2x1x120xf32> -> vector<2x1x120xf32>
    "tpu.trace_stop"() : () -> ()
    %128 = arith.addf %121, %127 : vector<2x1x120xf32>
    %129 = vector.extract_strided_slice %108 {offsets = [0, 3, 0], sizes = [2, 1, 80], strides = [1, 1, 1]} : vector<2x5x80xf32> to vector<2x1x80xf32>
    %c3_67 = arith.constant 3 : index
    %c0_68 = arith.constant 0 : index
    %c0_69 = arith.constant 0 : index
    %130 = vector.load %arg9[%c3_67, %c0_68, %c0_69] : memref<5x80x120xf32, #tpu.memory_space<vmem>>, vector<1x80x120xf32>
    %131 = vector.shape_cast %130 : vector<1x80x120xf32> to vector<80x120xf32>
    %132 = vector.shape_cast %131 : vector<80x120xf32> to vector<1x80x120xf32>
    %133 = vector.broadcast %132 : vector<1x80x120xf32> to vector<2x80x120xf32>
    "tpu.trace_start"() <{level = 10 : i32, message = "bmk,bkn->bmn"}> : () -> ()
    %cst_70 = arith.constant dense<0.000000e+00> : vector<2x1x120xf32>
    %134 = tpu.matmul %129, %133, %cst_70 {dimension_numbers = #tpu.dot_dimension_numbers<[2], [1], [1], [2], [0, 0, 0, 1, 1, 2], [0], [0]>} : vector<2x1x80xf32>, vector<2x80x120xf32>, vector<2x1x120xf32> -> vector<2x1x120xf32>
    "tpu.trace_stop"() : () -> ()
    %135 = arith.addf %128, %134 : vector<2x1x120xf32>
    %136 = vector.extract_strided_slice %108 {offsets = [0, 4, 0], sizes = [2, 1, 80], strides = [1, 1, 1]} : vector<2x5x80xf32> to vector<2x1x80xf32>
    %c4_71 = arith.constant 4 : index
    %c0_72 = arith.constant 0 : index
    %c0_73 = arith.constant 0 : index
    %137 = vector.load %arg9[%c4_71, %c0_72, %c0_73] : memref<5x80x120xf32, #tpu.memory_space<vmem>>, vector<1x80x120xf32>
    %138 = vector.shape_cast %137 : vector<1x80x120xf32> to vector<80x120xf32>
    %139 = vector.shape_cast %138 : vector<80x120xf32> to vector<1x80x120xf32>
    %140 = vector.broadcast %139 : vector<1x80x120xf32> to vector<2x80x120xf32>
    "tpu.trace_start"() <{level = 10 : i32, message = "bmk,bkn->bmn"}> : () -> ()
    %cst_74 = arith.constant dense<0.000000e+00> : vector<2x1x120xf32>
    %141 = tpu.matmul %136, %140, %cst_74 {dimension_numbers = #tpu.dot_dimension_numbers<[2], [1], [1], [2], [0, 0, 0, 1, 1, 2], [0], [0]>} : vector<2x1x80xf32>, vector<2x80x120xf32>, vector<2x1x120xf32> -> vector<2x1x120xf32>
    "tpu.trace_stop"() : () -> ()
    %142 = arith.addf %135, %141 : vector<2x1x120xf32>
    %c0_75 = arith.constant 0 : index
    %c0_76 = arith.constant 0 : index
    %143 = vector.load %arg10[%c0_75, %c0_76] : memref<1x120xf32, #tpu.memory_space<vmem>>, vector<1x120xf32>
    %144 = vector.shape_cast %143 : vector<1x120xf32> to vector<1x1x120xf32>
    %145 = vector.broadcast %144 : vector<1x1x120xf32> to vector<2x1x120xf32>
    %146 = arith.addf %142, %145 : vector<2x1x120xf32>
    %cst_77 = arith.constant 0.000000e+00 : f32
    %147 = vector.broadcast %cst_77 : f32 to vector<2x1x120xf32>
    %148 = arith.maximumf %146, %147 : vector<2x1x120xf32>
    %c0_78 = arith.constant 0 : index
    %c0_79 = arith.constant 0 : index
    %149 = vector.load %arg11[%c0_78, %c0_79] : memref<120x84xf32, #tpu.memory_space<vmem>>, vector<120x84xf32>
    %150 = vector.shape_cast %149 : vector<120x84xf32> to vector<1x120x84xf32>
    %151 = vector.broadcast %150 : vector<1x120x84xf32> to vector<2x120x84xf32>
    "tpu.trace_start"() <{level = 10 : i32, message = "bmk,bkn->bmn"}> : () -> ()
    %cst_80 = arith.constant dense<0.000000e+00> : vector<2x1x84xf32>
    %152 = tpu.matmul %148, %151, %cst_80 {dimension_numbers = #tpu.dot_dimension_numbers<[2], [1], [1], [2], [0, 0, 0, 1, 1, 2], [0], [0]>} : vector<2x1x120xf32>, vector<2x120x84xf32>, vector<2x1x84xf32> -> vector<2x1x84xf32>
    "tpu.trace_stop"() : () -> ()
    %c0_81 = arith.constant 0 : index
    %c0_82 = arith.constant 0 : index
    %153 = vector.load %arg12[%c0_81, %c0_82] : memref<1x84xf32, #tpu.memory_space<vmem>>, vector<1x84xf32>
    %154 = vector.shape_cast %153 : vector<1x84xf32> to vector<1x1x84xf32>
    %155 = vector.broadcast %154 : vector<1x1x84xf32> to vector<2x1x84xf32>
    %156 = arith.addf %152, %155 : vector<2x1x84xf32>
    %cst_83 = arith.constant 0.000000e+00 : f32
    %157 = vector.broadcast %cst_83 : f32 to vector<2x1x84xf32>
    %158 = arith.maximumf %156, %157 : vector<2x1x84xf32>
    %c0_84 = arith.constant 0 : index
    %c0_85 = arith.constant 0 : index
    %159 = vector.load %arg13[%c0_84, %c0_85] : memref<84x10xf32, #tpu.memory_space<vmem>>, vector<84x10xf32>
    %160 = vector.shape_cast %159 : vector<84x10xf32> to vector<1x84x10xf32>
    %161 = vector.broadcast %160 : vector<1x84x10xf32> to vector<2x84x10xf32>
    "tpu.trace_start"() <{level = 10 : i32, message = "bmk,bkn->bmn"}> : () -> ()
    %cst_86 = arith.constant dense<0.000000e+00> : vector<2x1x10xf32>
    %162 = tpu.matmul %158, %161, %cst_86 {dimension_numbers = #tpu.dot_dimension_numbers<[2], [1], [1], [2], [0, 0, 0, 1, 1, 2], [0], [0]>} : vector<2x1x84xf32>, vector<2x84x10xf32>, vector<2x1x10xf32> -> vector<2x1x10xf32>
    "tpu.trace_stop"() : () -> ()
    %c0_87 = arith.constant 0 : index
    %c0_88 = arith.constant 0 : index
    %163 = vector.load %arg14[%c0_87, %c0_88] : memref<1x10xf32, #tpu.memory_space<vmem>>, vector<1x10xf32>
    %164 = vector.shape_cast %163 : vector<1x10xf32> to vector<1x1x10xf32>
    %165 = vector.broadcast %164 : vector<1x1x10xf32> to vector<2x1x10xf32>
    %166 = arith.addf %162, %165 : vector<2x1x10xf32>
    %c0_89 = arith.constant 0 : index
    %c0_90 = arith.constant 0 : index
    %c0_91 = arith.constant 0 : index
    %167 = vector.load %arg15[%c0_89, %c0_90, %c0_91] : memref<2x1x10xf32, #tpu.memory_space<vmem>>, vector<2x1x10xf32>
    tpu.vector_store %arg15[%c0_89, %c0_90, %c0_91], %166 {strides = array<i32>} : memref<2x1x10xf32, #tpu.memory_space<vmem>>, vector<2x1x10xf32>,
    return
  }
}

</mosaic_0001>

<llo_original>
// kernel: net_forward.1
$region0: #{net_forward.1}
  #allocation0 [shape = 'u32[]', space=smem, size = 0x4, offset = 0x4, fixed_abs, tag = 'smem constant byte address 0x4 - core index']
  #allocation1 [shape = 'u32[144,128]{1,0:T(1,128)}', space=vmem, size = 0x12000, scoped, tag = 'internal scratch']
  %s0 = inlined_call_operand.vmem [shape: f32[2,32,32], index: 0, kind: input, shape index: {}]
  %s1 = inlined_call_operand.vmem [shape: f32[5,32,168], index: 1, kind: input, shape index: {}]
  %s2 = inlined_call_operand.vmem [shape: f32[1,168], index: 2, kind: input, shape index: {}]
  %s3 = inlined_call_operand.vmem [shape: f32[162,84], index: 3, kind: input, shape index: {}]
  %s4 = inlined_call_operand.vmem [shape: f32[14,27], index: 4, kind: input, shape index: {}]
  %s5 = inlined_call_operand.vmem [shape: f32[5,84,160], index: 5, kind: input, shape index: {}]
  %s6 = inlined_call_operand.vmem [shape: f32[1,160], index: 6, kind: input, shape index: {}]
  %s7 = inlined_call_operand.vmem [shape: f32[144,80], index: 7, kind: input, shape index: {}]
  %s8 = inlined_call_operand.vmem [shape: f32[5,9], index: 8, kind: input, shape index: {}]
  %s9 = inlined_call_operand.vmem [shape: f32[5,80,120], index: 9, kind: input, shape index: {}]
  %s10 = inlined_call_operand.vmem [shape: f32[1,120], index: 10, kind: input, shape index: {}]
  %s11 = inlined_call_operand.vmem [shape: f32[120,84], index: 11, kind: input, shape index: {}]
  %s12 = inlined_call_operand.vmem [shape: f32[1,84], index: 12, kind: input, shape index: {}]
  %s13 = inlined_call_operand.vmem [shape: f32[84,10], index: 13, kind: input, shape index: {}]
  %s14 = inlined_call_operand.vmem [shape: f32[1,10], index: 14, kind: input, shape index: {}]
  %s15 = inlined_call_operand.hbm [shape: f32[2,1,10], index: 15, kind: output, shape index: {}]
  %s16 = sld [smem:[#allocation0]]
  $region70: #{net_forward.1} parent=0
    _
  %s18 = ssub.s32 1, %s16
  %s19 = scalar_select 0, %s18, %s16
  $region1: #{net_forward.1} parent=0
    #allocation2 [shape = 'u8[1024]{0}', space=vmem, size = 0x400, scoped, tag = 'output window, operand 0, single buffered']
    #allocation3 [shape = 's32[1]{0}', space=sflag, size = 0x4, scoped, tag = 'scoped memory for net_forward.1']
    %20 = vsyncpa [#allocation3], 0
    // Predicated region
    $region2: #{net_forward.1} parent=1 // pred_check
      _
    $region3: #{net_forward.1} parent=1 // pred_check_branch
      %22 = sbr.rel (0) target = $region5
    $region4: #{net_forward.1} parent=1 // pred_region
      _
    $region5: #{net_forward.1} parent=1 // pred_fallthru
      _
    // Predicated region
    $region6: #{net_forward.1} parent=1 // pred_check
      _
    $region7: #{net_forward.1} parent=1 // pred_check_branch
      %24 = sbr.rel (0) target = $region9
    $region8: #{net_forward.1} parent=1 // pred_region
      _
    $region9: #{net_forward.1} parent=1 // pred_fallthru
      _
    // Predicated region
    $region10: #{net_forward.1} parent=1 // pred_check
      _
    $region11: #{net_forward.1} parent=1 // pred_check_branch
      %26 = sbr.rel (0) target = $region13
    $region12: #{net_forward.1} parent=1 // pred_region
      _
    $region13: #{net_forward.1} parent=1 // pred_fallthru
      _
    // Predicated region
    $region14: #{net_forward.1} parent=1 // pred_check
      _
    $region15: #{net_forward.1} parent=1 // pred_check_branch
      %28 = sbr.rel (0) target = $region17
    $region16: #{net_forward.1} parent=1 // pred_region
      _
    $region17: #{net_forward.1} parent=1 // pred_fallthru
      _
    // Predicated region
    $region18: #{net_forward.1} parent=1 // pred_check
      _
    $region19: #{net_forward.1} parent=1 // pred_check_branch
      %30 = sbr.rel (0) target = $region21
    $region20: #{net_forward.1} parent=1 // pred_region
      _
    $region21: #{net_forward.1} parent=1 // pred_fallthru
      _
    // Predicated region
    $region22: #{net_forward.1} parent=1 // pred_check
      _
    $region23: #{net_forward.1} parent=1 // pred_check_branch
      %32 = sbr.rel (0) target = $region25
    $region24: #{net_forward.1} parent=1 // pred_region
      _
    $region25: #{net_forward.1} parent=1 // pred_fallthru
      _
    // Predicated region
    $region26: #{net_forward.1} parent=1 // pred_check
      _
    $region27: #{net_forward.1} parent=1 // pred_check_branch
      %34 = sbr.rel (0) target = $region29
    $region28: #{net_forward.1} parent=1 // pred_region
      _
    $region29: #{net_forward.1} parent=1 // pred_fallthru
      _
    // Predicated region
    $region30: #{net_forward.1} parent=1 // pred_check
      _
    $region31: #{net_forward.1} parent=1 // pred_check_branch
      %36 = sbr.rel (0) target = $region33
    $region32: #{net_forward.1} parent=1 // pred_region
      _
    $region33: #{net_forward.1} parent=1 // pred_fallthru
      _
    // Predicated region
    $region34: #{net_forward.1} parent=1 // pred_check
      _
    $region35: #{net_forward.1} parent=1 // pred_check_branch
      %38 = sbr.rel (0) target = $region37
    $region36: #{net_forward.1} parent=1 // pred_region
      _
    $region37: #{net_forward.1} parent=1 // pred_fallthru
      _
    // Predicated region
    $region38: #{net_forward.1} parent=1 // pred_check
      _
    $region39: #{net_forward.1} parent=1 // pred_check_branch
      %40 = sbr.rel (0) target = $region41
    $region40: #{net_forward.1} parent=1 // pred_region
      _
    $region41: #{net_forward.1} parent=1 // pred_fallthru
      _
    // Predicated region
    $region42: #{net_forward.1} parent=1 // pred_check
      _
    $region43: #{net_forward.1} parent=1 // pred_check_branch
      %42 = sbr.rel (0) target = $region45
    $region44: #{net_forward.1} parent=1 // pred_region
      _
    $region45: #{net_forward.1} parent=1 // pred_fallthru
      _
    // Predicated region
    $region46: #{net_forward.1} parent=1 // pred_check
      _
    $region47: #{net_forward.1} parent=1 // pred_check_branch
      %44 = sbr.rel (0) target = $region49
    $region48: #{net_forward.1} parent=1 // pred_region
      _
    $region49: #{net_forward.1} parent=1 // pred_fallthru
      _
    // Predicated region
    $region50: #{net_forward.1} parent=1 // pred_check
      _
    $region51: #{net_forward.1} parent=1 // pred_check_branch
      %46 = sbr.rel (0) target = $region53
    $region52: #{net_forward.1} parent=1 // pred_region
      _
    $region53: #{net_forward.1} parent=1 // pred_fallthru
      _
    // Predicated region
    $region54: #{net_forward.1} parent=1 // pred_check
      _
    $region55: #{net_forward.1} parent=1 // pred_check_branch
      %48 = sbr.rel (0) target = $region57
    $region56: #{net_forward.1} parent=1 // pred_region
      _
    $region57: #{net_forward.1} parent=1 // pred_fallthru
      _
    // Predicated region
    $region58: #{net_forward.1} parent=1 // pred_check
      _
    $region59: #{net_forward.1} parent=1 // pred_check_branch
      %50 = sbr.rel (0) target = $region61
    $region60: #{net_forward.1} parent=1 // pred_region
      _
    $region61: #{net_forward.1} parent=1 // pred_fallthru
      _
    %v51 = vld [vmem:[%s0] sm:$0xff]
    %v52 = vld [vmem:[%s0 + $0x8] sm:$0xff]
    %v53 = vld [vmem:[%s0 + $0x10] sm:$0xff]
    %v54 = vld [vmem:[%s0 + $0x18] sm:$0xff]
    %v55 = vld [vmem:[%s0 + $0x20] sm:$0xff]
    %v56 = vld [vmem:[%s0 + $0x28] sm:$0xff]
    %v57 = vld [vmem:[%s0 + $0x30] sm:$0xff]
    %v58 = vld [vmem:[%s0 + $0x38] sm:$0xff]
    %v59 = vld [vmem:[%s1] sm:$0xff]
    %v60 = vld [vmem:[%s1 + $0x8] sm:$0xff]
    %v61 = vld [vmem:[%s1 + $0x10] sm:$0xff]
    %v62 = vld [vmem:[%s1 + $0x18] sm:$0xff]
    %v63 = vld [vmem:[%s1 + $0x20] sm:$0xff]
    %v64 = vld [vmem:[%s1 + $0x28] sm:$0xff]
    %v65 = vld [vmem:[%s1 + $0x30] sm:$0xff]
    %v66 = vld [vmem:[%s1 + $0x38] sm:$0xff]
    %s67 = scalar_lea.vmem %s1, 64
    %v68 = vld [vmem:[%s67] sm:$0xff]
    %v69 = vld [vmem:[%s67 + $0x8] sm:$0xff]
    %v70 = vld [vmem:[%s67 + $0x10] sm:$0xff]
    %v71 = vld [vmem:[%s67 + $0x18] sm:$0xff]
    %v72 = vld [vmem:[%s67 + $0x20] sm:$0xff]
    %v73 = vld [vmem:[%s67 + $0x28] sm:$0xff]
    %v74 = vld [vmem:[%s67 + $0x30] sm:$0xff]
    %v75 = vld [vmem:[%s67 + $0x38] sm:$0xff]
    %vm80 = vcmask 1046528
    %v81 = vrot.slane %v51, 1
    %v82 = vrot.slane %v52, 1
    %v83 = vsel %vm80, %v81, %v82
    %v84 = vrot.slane %v53, 1
    %v85 = vsel %vm80, %v82, %v84
    %v86 = vrot.slane %v54, 1
    %v87 = vsel %vm80, %v84, %v86
    %vm88 = vcmask 261120
    %v89 = vsel %vm88, %v83, 0
    %v91 = vsel %vm88, %v85, 0
    %v93 = vsel %vm88, %v87, 0
    %v95 = vsel %vm88, %v86, 0
    %97 = vmatprep.subr.mxu0 %v69
    %98 = vmatpush1.msra.mxu0 %v68
    %99 = vmatprep.subr.mxu0 %v71
    %100 = vmatpush1.msra.mxu0 %v70
    %101 = vmatprep.subr.mxu0 %v73
    %102 = vmatpush1.msra.mxu0 %v72
    %103 = vmatprep.subr.mxu0 %v75
    %104 = vmatpush1.msra.mxu0 %v74
    %105 = vmatprep.subr.mxu0 0.0
    %106 = vmatpush1.msra.mxu0 0.0
    %107 = vmatprep.subr.mxu0 0.0
    %108 = vmatpush1.msra.mxu0 0.0
    %109 = vmatprep.subr.mxu0 0.0
    %110 = vmatpush1.msra.mxu0 0.0
    %111 = vmatprep.subr.mxu0 0.0
    %112 = vmatpush1.msra.mxu0 0.0
    %113 = vmatprep.subr.mxu0 0.0
    %114 = vmatpush1.msra.mxu0 0.0
    %115 = vmatprep.subr.mxu0 0.0
    %116 = vmatpush1.msra.mxu0 0.0
    %117 = vmatprep.subr.mxu0 0.0
    %118 = vmatpush1.msra.mxu0 0.0
    %119 = vmatprep.subr.mxu0 0.0
    %120 = vmatpush1.msra.mxu0 0.0
    %121 = vmatprep.subr.mxu0 0.0
    %122 = vmatpush1.msra.mxu0 0.0
    %123 = vmatprep.subr.mxu0 0.0
    %124 = vmatpush1.msra.mxu0 0.0
    %125 = vmatprep.subr.mxu0 0.0
    %126 = vmatpush1.msra.mxu0 0.0
    %127 = vmatprep.subr.mxu0 0.0
    %128 = vmatpush1.msra.mxu0 0.0
    %129 = vmatprep.subr.mxu0 0.0
    %130 = vmatpush1.msra.mxu0 0.0
    %131 = vmatprep.subr.mxu0 0.0
    %132 = vmatpush1.msra.mxu0 0.0
    %133 = vmatprep.subr.mxu0 0.0
    %134 = vmatpush1.msra.mxu0 0.0
    %135 = vmatprep.subr.mxu0 0.0
    %136 = vmatpush1.msra.mxu0 0.0
    %137 = vmatprep.subr.mxu0 0.0
    %138 = vmatpush1.msra.mxu0 0.0
    %139 = vmatprep.subr.mxu0 0.0
    %140 = vmatpush1.msra.mxu0 0.0
    %141 = vmatprep.subr.mxu0 0.0
    %142 = vmatpush1.msra.mxu0 0.0
    %143 = vmatprep.subr.mxu0 0.0
    %144 = vmatpush1.msra.mxu0 0.0
    %145 = vmatprep.subr.mxu0 0.0
    %146 = vmatpush1.msra.mxu0 0.0
    %147 = vmatprep.subr.mxu0 0.0
    %148 = vmatpush1.msra.mxu0 0.0
    %149 = vmatprep.subr.mxu0 0.0
    %150 = vmatpush1.msra.mxu0 0.0
    %151 = vmatprep.subr.mxu0 0.0
    %152 = vmatpush1.msra.mxu0 0.0
    %153 = vmatprep.subr.mxu0 0.0
    %154 = vmatpush1.msra.mxu0 0.0
    %155 = vmatprep.subr.mxu0 0.0
    %156 = vmatpush1.msra.mxu0 0.0
    %157 = vmatprep.subr.mxu0 0.0
    %158 = vmatpush1.msra.mxu0 0.0
    %159 = vmatprep.subr.mxu0 0.0
    %160 = vmatpush1.msra.mxu0 0.0
    %161 = vmatprep.mubr.f32.mxu0 0.0
    %162 = vmatmul.mubr.f32.gmra.mrb[0].mxu0 %v89
    %v163 = vpop.f32.mrb[0].mxu0
    %v164 = vadd.f32 0.0, %v163
    %v165 = vpop.f32.mrb[0].mxu0
    %v166 = vadd.f32 0.0, %v165
    %167 = vmatprep.mubr.f32.mxu0 0.0
    %168 = vmatmul.mubr.f32.gmra.mrb[0].mxu0 %v91
    %v169 = vpop.f32.mrb[0].mxu0
    %v170 = vadd.f32 0.0, %v169
    %v171 = vpop.f32.mrb[0].mxu0
    %v172 = vadd.f32 0.0, %v171
    %173 = vmatprep.mubr.f32.mxu0 0.0
    %174 = vmatmul.mubr.f32.gmra.mrb[0].mxu0 %v93
    %v175 = vpop.f32.mrb[0].mxu0
    %v176 = vadd.f32 0.0, %v175
    %v177 = vpop.f32.mrb[0].mxu0
    %v178 = vadd.f32 0.0, %v177
    %179 = vmatprep.mubr.f32.mxu0 0.0
    %180 = vmatmul.mubr.f32.gmra.mrb[0].mxu0 %v95
    %v181 = vpop.f32.mrb[0].mxu0
    %v182 = vadd.f32 0.0, %v181
    %v183 = vpop.f32.mrb[0].mxu0
    %v184 = vadd.f32 0.0, %v183
    %185 = vdwg.mxu0
    %v190 = vrot.slane %v55, 1
    %v191 = vrot.slane %v56, 1
    %v192 = vsel %vm80, %v190, %v191
    %v193 = vrot.slane %v57, 1
    %v194 = vsel %vm80, %v191, %v193
    %v195 = vrot.slane %v58, 1
    %v196 = vsel %vm80, %v193, %v195
    %v197 = vsel %vm88, %v192, 0
    %v199 = vsel %vm88, %v194, 0
    %v201 = vsel %vm88, %v196, 0
    %v203 = vsel %vm88, %v195, 0
    %205 = vmatprep.subr.mxu0 %v69
    %206 = vmatpush1.msra.mxu0 %v68
    %207 = vmatprep.subr.mxu0 %v71
    %208 = vmatpush1.msra.mxu0 %v70
    %209 = vmatprep.subr.mxu0 %v73
    %210 = vmatpush1.msra.mxu0 %v72
    %211 = vmatprep.subr.mxu0 %v75
    %212 = vmatpush1.msra.mxu0 %v74
    %213 = vmatprep.subr.mxu0 0.0
    %214 = vmatpush1.msra.mxu0 0.0
    %215 = vmatprep.subr.mxu0 0.0
    %216 = vmatpush1.msra.mxu0 0.0
    %217 = vmatprep.subr.mxu0 0.0
    %218 = vmatpush1.msra.mxu0 0.0
    %219 = vmatprep.subr.mxu0 0.0
    %220 = vmatpush1.msra.mxu0 0.0
    %221 = vmatprep.subr.mxu0 0.0
    %222 = vmatpush1.msra.mxu0 0.0
    %223 = vmatprep.subr.mxu0 0.0
    %224 = vmatpush1.msra.mxu0 0.0
    %225 = vmatprep.subr.mxu0 0.0
    %226 = vmatpush1.msra.mxu0 0.0
    %227 = vmatprep.subr.mxu0 0.0
    %228 = vmatpush1.msra.mxu0 0.0
    %229 = vmatprep.subr.mxu0 0.0
    %230 = vmatpush1.msra.mxu0 0.0
    %231 = vmatprep.subr.mxu0 0.0
    %232 = vmatpush1.msra.mxu0 0.0
    %233 = vmatprep.subr.mxu0 0.0
    %234 = vmatpush1.msra.mxu0 0.0
    %235 = vmatprep.subr.mxu0 0.0
    %236 = vmatpush1.msra.mxu0 0.0
    %237 = vmatprep.subr.mxu0 0.0
    %238 = vmatpush1.msra.mxu0 0.0
    %239 = vmatprep.subr.mxu0 0.0
    %240 = vmatpush1.msra.mxu0 0.0
    %241 = vmatprep.subr.mxu0 0.0
    %242 = vmatpush1.msra.mxu0 0.0
    %243 = vmatprep.subr.mxu0 0.0
    %244 = vmatpush1.msra.mxu0 0.0
    %245 = vmatprep.subr.mxu0 0.0
    %246 = vmatpush1.msra.mxu0 0.0
    %247 = vmatprep.subr.mxu0 0.0
    %248 = vmatpush1.msra.mxu0 0.0
    %249 = vmatprep.subr.mxu0 0.0
    %250 = vmatpush1.msra.mxu0 0.0
    %251 = vmatprep.subr.mxu0 0.0
    %252 = vmatpush1.msra.mxu0 0.0
    %253 = vmatprep.subr.mxu0 0.0
    %254 = vmatpush1.msra.mxu0 0.0
    %255 = vmatprep.subr.mxu0 0.0
    %256 = vmatpush1.msra.mxu0 0.0
    %257 = vmatprep.subr.mxu0 0.0
    %258 = vmatpush1.msra.mxu0 0.0
    %259 = vmatprep.subr.mxu0 0.0
    %260 = vmatpush1.msra.mxu0 0.0
    %261 = vmatprep.subr.mxu0 0.0
    %262 = vmatpush1.msra.mxu0 0.0
    %263 = vmatprep.subr.mxu0 0.0
    %264 = vmatpush1.msra.mxu0 0.0
    %265 = vmatprep.subr.mxu0 0.0
    %266 = vmatpush1.msra.mxu0 0.0
    %267 = vmatprep.subr.mxu0 0.0
    %268 = vmatpush1.msra.mxu0 0.0
    %269 = vmatprep.mubr.f32.mxu0 0.0
    %270 = vmatmul.mubr.f32.gmra.mrb[0].mxu0 %v197
    %v271 = vpop.f32.mrb[0].mxu0
    %v272 = vadd.f32 0.0, %v271
    %v273 = vpop.f32.mrb[0].mxu0
    %v274 = vadd.f32 0.0, %v273
    %275 = vmatprep.mubr.f32.mxu0 0.0
    %276 = vmatmul.mubr.f32.gmra.mrb[0].mxu0 %v199
    %v277 = vpop.f32.mrb[0].mxu0
    %v278 = vadd.f32 0.0, %v277
    %v279 = vpop.f32.mrb[0].mxu0
    %v280 = vadd.f32 0.0, %v279
    %281 = vmatprep.mubr.f32.mxu0 0.0
    %282 = vmatmul.mubr.f32.gmra.mrb[0].mxu0 %v201
    %v283 = vpop.f32.mrb[0].mxu0
    %v284 = vadd.f32 0.0, %v283
    %v285 = vpop.f32.mrb[0].mxu0
    %v286 = vadd.f32 0.0, %v285
    %287 = vmatprep.mubr.f32.mxu0 0.0
    %288 = vmatmul.mubr.f32.gmra.mrb[0].mxu0 %v203
    %v289 = vpop.f32.mrb[0].mxu0
    %v290 = vadd.f32 0.0, %v289
    %v291 = vpop.f32.mrb[0].mxu0
    %v292 = vadd.f32 0.0, %v291
    %293 = vdwg.mxu0
    %v294 = vsel %vm88, %v51, 0
    %v296 = vsel %vm88, %v52, 0
    %v298 = vsel %vm88, %v53, 0
    %v300 = vsel %vm88, %v54, 0
    %302 = vmatprep.subr.mxu0 %v60
    %303 = vmatpush1.msra.mxu0 %v59
    %304 = vmatprep.subr.mxu0 %v62
    %305 = vmatpush1.msra.mxu0 %v61
    %306 = vmatprep.subr.mxu0 %v64
    %307 = vmatpush1.msra.mxu0 %v63
    %308 = vmatprep.subr.mxu0 %v66
    %309 = vmatpush1.msra.mxu0 %v65
    %310 = vmatprep.subr.mxu0 0.0
    %311 = vmatpush1.msra.mxu0 0.0
    %312 = vmatprep.subr.mxu0 0.0
    %313 = vmatpush1.msra.mxu0 0.0
    %314 = vmatprep.subr.mxu0 0.0
    %315 = vmatpush1.msra.mxu0 0.0
    %316 = vmatprep.subr.mxu0 0.0
    %317 = vmatpush1.msra.mxu0 0.0
    %318 = vmatprep.subr.mxu0 0.0
    %319 = vmatpush1.msra.mxu0 0.0
    %320 = vmatprep.subr.mxu0 0.0
    %321 = vmatpush1.msra.mxu0 0.0
    %322 = vmatprep.subr.mxu0 0.0
    %323 = vmatpush1.msra.mxu0 0.0
    %324 = vmatprep.subr.mxu0 0.0
    %325 = vmatpush1.msra.mxu0 0.0
    %326 = vmatprep.subr.mxu0 0.0
    %327 = vmatpush1.msra.mxu0 0.0
    %328 = vmatprep.subr.mxu0 0.0
    %329 = vmatpush1.msra.mxu0 0.0
    %330 = vmatprep.subr.mxu0 0.0
    %331 = vmatpush1.msra.mxu0 0.0
    %332 = vmatprep.subr.mxu0 0.0
    %333 = vmatpush1.msra.mxu0 0.0
    %334 = vmatprep.subr.mxu0 0.0
    %335 = vmatpush1.msra.mxu0 0.0
    %336 = vmatprep.subr.mxu0 0.0
    %337 = vmatpush1.msra.mxu0 0.0
    %338 = vmatprep.subr.mxu0 0.0
    %339 = vmatpush1.msra.mxu0 0.0
    %340 = vmatprep.subr.mxu0 0.0
    %341 = vmatpush1.msra.mxu0 0.0
    %342 = vmatprep.subr.mxu0 0.0
    %343 = vmatpush1.msra.mxu0 0.0
    %344 = vmatprep.subr.mxu0 0.0
    %345 = vmatpush1.msra.mxu0 0.0
    %346 = vmatprep.subr.mxu0 0.0
    %347 = vmatpush1.msra.mxu0 0.0
    %348 = vmatprep.subr.mxu0 0.0
    %349 = vmatpush1.msra.mxu0 0.0
    %350 = vmatprep.subr.mxu0 0.0
    %351 = vmatpush1.msra.mxu0 0.0
    %352 = vmatprep.subr.mxu0 0.0
    %353 = vmatpush1.msra.mxu0 0.0
    %354 = vmatprep.subr.mxu0 0.0
    %355 = vmatpush1.msra.mxu0 0.0
    %356 = vmatprep.subr.mxu0 0.0
    %357 = vmatpush1.msra.mxu0 0.0
    %358 = vmatprep.subr.mxu0 0.0
    %359 = vmatpush1.msra.mxu0 0.0
    %360 = vmatprep.subr.mxu0 0.0
    %361 = vmatpush1.msra.mxu0 0.0
    %362 = vmatprep.subr.mxu0 0.0
    %363 = vmatpush1.msra.mxu0 0.0
    %364 = vmatprep.subr.mxu0 0.0
    %365 = vmatpush1.msra.mxu0 0.0
    %366 = vmatprep.mubr.f32.mxu0 0.0
    %367 = vmatmul.mubr.f32.gmra.mrb[0].mxu0 %v294
    %v368 = vpop.f32.mrb[0].mxu0
    %v369 = vadd.f32 %v164, %v368
    %v370 = vpop.f32.mrb[0].mxu0
    %v371 = vadd.f32 %v166, %v370
    %372 = vmatprep.mubr.f32.mxu0 0.0
    %373 = vmatmul.mubr.f32.gmra.mrb[0].mxu0 %v296
    %v374 = vpop.f32.mrb[0].mxu0
    %v375 = vadd.f32 %v170, %v374
    %v376 = vpop.f32.mrb[0].mxu0
    %v377 = vadd.f32 %v172, %v376
    %378 = vmatprep.mubr.f32.mxu0 0.0
    %379 = vmatmul.mubr.f32.gmra.mrb[0].mxu0 %v298
    %v380 = vpop.f32.mrb[0].mxu0
    %v381 = vadd.f32 %v176, %v380
    %v382 = vpop.f32.mrb[0].mxu0
    %v383 = vadd.f32 %v178, %v382
    %384 = vmatprep.mubr.f32.mxu0 0.0
    %385 = vmatmul.mubr.f32.gmra.mrb[0].mxu0 %v300
    %v386 = vpop.f32.mrb[0].mxu0
    %v387 = vadd.f32 %v182, %v386
    %v388 = vpop.f32.mrb[0].mxu0
    %v389 = vadd.f32 %v184, %v388
    %390 = vdwg.mxu0
    %v391 = vsel %vm88, %v55, 0
    %v393 = vsel %vm88, %v56, 0
    %v395 = vsel %vm88, %v57, 0
    %v397 = vsel %vm88, %v58, 0
    %399 = vmatprep.subr.mxu0 %v60
    %400 = vmatpush1.msra.mxu0 %v59
    %401 = vmatprep.subr.mxu0 %v62
    %402 = vmatpush1.msra.mxu0 %v61
    %403 = vmatprep.subr.mxu0 %v64
    %404 = vmatpush1.msra.mxu0 %v63
    %405 = vmatprep.subr.mxu0 %v66
    %406 = vmatpush1.msra.mxu0 %v65
    %407 = vmatprep.subr.mxu0 0.0
    %408 = vmatpush1.msra.mxu0 0.0
    %409 = vmatprep.subr.mxu0 0.0
    %410 = vmatpush1.msra.mxu0 0.0
    %411 = vmatprep.subr.mxu0 0.0
    %412 = vmatpush1.msra.mxu0 0.0
    %413 = vmatprep.subr.mxu0 0.0
    %414 = vmatpush1.msra.mxu0 0.0
    %415 = vmatprep.subr.mxu0 0.0
    %416 = vmatpush1.msra.mxu0 0.0
    %417 = vmatprep.subr.mxu0 0.0
    %418 = vmatpush1.msra.mxu0 0.0
    %419 = vmatprep.subr.mxu0 0.0
    %420 = vmatpush1.msra.mxu0 0.0
    %421 = vmatprep.subr.mxu0 0.0
    %422 = vmatpush1.msra.mxu0 0.0
    %423 = vmatprep.subr.mxu0 0.0
    %424 = vmatpush1.msra.mxu0 0.0
    %425 = vmatprep.subr.mxu0 0.0
    %426 = vmatpush1.msra.mxu0 0.0
    %427 = vmatprep.subr.mxu0 0.0
    %428 = vmatpush1.msra.mxu0 0.0
    %429 = vmatprep.subr.mxu0 0.0
    %430 = vmatpush1.msra.mxu0 0.0
    %431 = vmatprep.subr.mxu0 0.0
    %432 = vmatpush1.msra.mxu0 0.0
    %433 = vmatprep.subr.mxu0 0.0
    %434 = vmatpush1.msra.mxu0 0.0
    %435 = vmatprep.subr.mxu0 0.0
    %436 = vmatpush1.msra.mxu0 0.0
    %437 = vmatprep.subr.mxu0 0.0
    %438 = vmatpush1.msra.mxu0 0.0
    %439 = vmatprep.subr.mxu0 0.0
    %440 = vmatpush1.msra.mxu0 0.0
    %441 = vmatprep.subr.mxu0 0.0
    %442 = vmatpush1.msra.mxu0 0.0
    %443 = vmatprep.subr.mxu0 0.0
    %444 = vmatpush1.msra.mxu0 0.0
    %445 = vmatprep.subr.mxu0 0.0
    %446 = vmatpush1.msra.mxu0 0.0
    %447 = vmatprep.subr.mxu0 0.0
    %448 = vmatpush1.msra.mxu0 0.0
    %449 = vmatprep.subr.mxu0 0.0
    %450 = vmatpush1.msra.mxu0 0.0
    %451 = vmatprep.subr.mxu0 0.0
    %452 = vmatpush1.msra.mxu0 0.0
    %453 = vmatprep.subr.mxu0 0.0
    %454 = vmatpush1.msra.mxu0 0.0
    %455 = vmatprep.subr.mxu0 0.0
    %456 = vmatpush1.msra.mxu0 0.0
    %457 = vmatprep.subr.mxu0 0.0
    %458 = vmatpush1.msra.mxu0 0.0
    %459 = vmatprep.subr.mxu0 0.0
    %460 = vmatpush1.msra.mxu0 0.0
    %461 = vmatprep.subr.mxu0 0.0
    %462 = vmatpush1.msra.mxu0 0.0
    %463 = vmatprep.mubr.f32.mxu0 0.0
    %464 = vmatmul.mubr.f32.gmra.mrb[0].mxu0 %v391
    %v465 = vpop.f32.mrb[0].mxu0
    %v466 = vadd.f32 %v272, %v465
    %v467 = vpop.f32.mrb[0].mxu0
    %v468 = vadd.f32 %v274, %v467
    %469 = vmatprep.mubr.f32.mxu0 0.0
    %470 = vmatmul.mubr.f32.gmra.mrb[0].mxu0 %v393
    %v471 = vpop.f32.mrb[0].mxu0
    %v472 = vadd.f32 %v278, %v471
    %v473 = vpop.f32.mrb[0].mxu0
    %v474 = vadd.f32 %v280, %v473
    %475 = vmatprep.mubr.f32.mxu0 0.0
    %476 = vmatmul.mubr.f32.gmra.mrb[0].mxu0 %v395
    %v477 = vpop.f32.mrb[0].mxu0
    %v478 = vadd.f32 %v284, %v477
    %v479 = vpop.f32.mrb[0].mxu0
    %v480 = vadd.f32 %v286, %v479
    %481 = vmatprep.mubr.f32.mxu0 0.0
    %482 = vmatmul.mubr.f32.gmra.mrb[0].mxu0 %v397
    %v483 = vpop.f32.mrb[0].mxu0
    %v484 = vadd.f32 %v290, %v483
    %v485 = vpop.f32.mrb[0].mxu0
    %v486 = vadd.f32 %v292, %v485
    %487 = vdwg.mxu0
    %s488 = scalar_lea.vmem %s1, 128
    %v489 = vld [vmem:[%s488] sm:$0xff]
    %v490 = vld [vmem:[%s488 + $0x8] sm:$0xff]
    %v491 = vld [vmem:[%s488 + $0x10] sm:$0xff]
    %v492 = vld [vmem:[%s488 + $0x18] sm:$0xff]
    %v493 = vld [vmem:[%s488 + $0x20] sm:$0xff]
    %v494 = vld [vmem:[%s488 + $0x28] sm:$0xff]
    %v495 = vld [vmem:[%s488 + $0x30] sm:$0xff]
    %v496 = vld [vmem:[%s488 + $0x38] sm:$0xff]
    %vm497 = vcmask 1045504
    %v498 = vrot.slane %v51, 2
    %v499 = vrot.slane %v52, 2
    %v500 = vsel %vm497, %v498, %v499
    %v501 = vrot.slane %v53, 2
    %v502 = vsel %vm497, %v499, %v501
    %v503 = vrot.slane %v54, 2
    %v504 = vsel %vm497, %v501, %v503
    %v505 = vsel %vm88, %v500, 0
    %v507 = vsel %vm88, %v502, 0
    %v509 = vsel %vm88, %v504, 0
    %v511 = vsel %vm88, %v503, 0
    %513 = vmatprep.subr.mxu0 %v490
    %514 = vmatpush1.msra.mxu0 %v489
    %515 = vmatprep.subr.mxu0 %v492
    %516 = vmatpush1.msra.mxu0 %v491
    %517 = vmatprep.subr.mxu0 %v494
    %518 = vmatpush1.msra.mxu0 %v493
    %519 = vmatprep.subr.mxu0 %v496
    %520 = vmatpush1.msra.mxu0 %v495
    %521 = vmatprep.subr.mxu0 0.0
    %522 = vmatpush1.msra.mxu0 0.0
    %523 = vmatprep.subr.mxu0 0.0
    %524 = vmatpush1.msra.mxu0 0.0
    %525 = vmatprep.subr.mxu0 0.0
    %526 = vmatpush1.msra.mxu0 0.0
    %527 = vmatprep.subr.mxu0 0.0
    %528 = vmatpush1.msra.mxu0 0.0
    %529 = vmatprep.subr.mxu0 0.0
    %530 = vmatpush1.msra.mxu0 0.0
    %531 = vmatprep.subr.mxu0 0.0
    %532 = vmatpush1.msra.mxu0 0.0
    %533 = vmatprep.subr.mxu0 0.0
    %534 = vmatpush1.msra.mxu0 0.0
    %535 = vmatprep.subr.mxu0 0.0
    %536 = vmatpush1.msra.mxu0 0.0
    %537 = vmatprep.subr.mxu0 0.0
    %538 = vmatpush1.msra.mxu0 0.0
    %539 = vmatprep.subr.mxu0 0.0
    %540 = vmatpush1.msra.mxu0 0.0
    %541 = vmatprep.subr.mxu0 0.0
    %542 = vmatpush1.msra.mxu0 0.0
    %543 = vmatprep.subr.mxu0 0.0
    %544 = vmatpush1.msra.mxu0 0.0
    %545 = vmatprep.subr.mxu0 0.0
    %546 = vmatpush1.msra.mxu0 0.0
    %547 = vmatprep.subr.mxu0 0.0
    %548 = vmatpush1.msra.mxu0 0.0
    %549 = vmatprep.subr.mxu0 0.0
    %550 = vmatpush1.msra.mxu0 0.0
    %551 = vmatprep.subr.mxu0 0.0
    %552 = vmatpush1.msra.mxu0 0.0
    %553 = vmatprep.subr.mxu0 0.0
    %554 = vmatpush1.msra.mxu0 0.0
    %555 = vmatprep.subr.mxu0 0.0
    %556 = vmatpush1.msra.mxu0 0.0
    %557 = vmatprep.subr.mxu0 0.0
    %558 = vmatpush1.msra.mxu0 0.0
    %559 = vmatprep.subr.mxu0 0.0
    %560 = vmatpush1.msra.mxu0 0.0
    %561 = vmatprep.subr.mxu0 0.0
    %562 = vmatpush1.msra.mxu0 0.0
    %563 = vmatprep.subr.mxu0 0.0
    %564 = vmatpush1.msra.mxu0 0.0
    %565 = vmatprep.subr.mxu0 0.0
    %566 = vmatpush1.msra.mxu0 0.0
    %567 = vmatprep.subr.mxu0 0.0
    %568 = vmatpush1.msra.mxu0 0.0
    %569 = vmatprep.subr.mxu0 0.0
    %570 = vmatpush1.msra.mxu0 0.0
    %571 = vmatprep.subr.mxu0 0.0
    %572 = vmatpush1.msra.mxu0 0.0
    %573 = vmatprep.subr.mxu0 0.0
    %574 = vmatpush1.msra.mxu0 0.0
    %575 = vmatprep.subr.mxu0 0.0
    %576 = vmatpush1.msra.mxu0 0.0
    %577 = vmatprep.mubr.f32.mxu0 0.0
    %578 = vmatmul.mubr.f32.gmra.mrb[0].mxu0 %v505
    %v579 = vpop.f32.mrb[0].mxu0
    %v580 = vadd.f32 0.0, %v579
    %v581 = vpop.f32.mrb[0].mxu0
    %v582 = vadd.f32 0.0, %v581
    %583 = vmatprep.mubr.f32.mxu0 0.0
    %584 = vmatmul.mubr.f32.gmra.mrb[0].mxu0 %v507
    %v585 = vpop.f32.mrb[0].mxu0
    %v586 = vadd.f32 0.0, %v585
    %v587 = vpop.f32.mrb[0].mxu0
    %v588 = vadd.f32 0.0, %v587
    %589 = vmatprep.mubr.f32.mxu0 0.0
    %590 = vmatmul.mubr.f32.gmra.mrb[0].mxu0 %v509
    %v591 = vpop.f32.mrb[0].mxu0
    %v592 = vadd.f32 0.0, %v591
    %v593 = vpop.f32.mrb[0].mxu0
    %v594 = vadd.f32 0.0, %v593
    %595 = vmatprep.mubr.f32.mxu0 0.0
    %596 = vmatmul.mubr.f32.gmra.mrb[0].mxu0 %v511
    %v597 = vpop.f32.mrb[0].mxu0
    %v598 = vadd.f32 0.0, %v597
    %v599 = vpop.f32.mrb[0].mxu0
    %v600 = vadd.f32 0.0, %v599
    %601 = vdwg.mxu0
    %v602 = vrot.slane %v55, 2
    %v603 = vrot.slane %v56, 2
    %v604 = vsel %vm497, %v602, %v603
    %v605 = vrot.slane %v57, 2
    %v606 = vsel %vm497, %v603, %v605
    %v607 = vrot.slane %v58, 2
    %v608 = vsel %vm497, %v605, %v607
    %v609 = vsel %vm88, %v604, 0
    %v611 = vsel %vm88, %v606, 0
    %v613 = vsel %vm88, %v608, 0
    %v615 = vsel %vm88, %v607, 0
    %617 = vmatprep.subr.mxu0 %v490
    %618 = vmatpush1.msra.mxu0 %v489
    %619 = vmatprep.subr.mxu0 %v492
    %620 = vmatpush1.msra.mxu0 %v491
    %621 = vmatprep.subr.mxu0 %v494
    %622 = vmatpush1.msra.mxu0 %v493
    %623 = vmatprep.subr.mxu0 %v496
    %624 = vmatpush1.msra.mxu0 %v495
    %625 = vmatprep.subr.mxu0 0.0
    %626 = vmatpush1.msra.mxu0 0.0
    %627 = vmatprep.subr.mxu0 0.0
    %628 = vmatpush1.msra.mxu0 0.0
    %629 = vmatprep.subr.mxu0 0.0
    %630 = vmatpush1.msra.mxu0 0.0
    %631 = vmatprep.subr.mxu0 0.0
    %632 = vmatpush1.msra.mxu0 0.0
    %633 = vmatprep.subr.mxu0 0.0
    %634 = vmatpush1.msra.mxu0 0.0
    %635 = vmatprep.subr.mxu0 0.0
    %636 = vmatpush1.msra.mxu0 0.0
    %637 = vmatprep.subr.mxu0 0.0
    %638 = vmatpush1.msra.mxu0 0.0
    %639 = vmatprep.subr.mxu0 0.0
    %640 = vmatpush1.msra.mxu0 0.0
    %641 = vmatprep.subr.mxu0 0.0
    %642 = vmatpush1.msra.mxu0 0.0
    %643 = vmatprep.subr.mxu0 0.0
    %644 = vmatpush1.msra.mxu0 0.0
    %645 = vmatprep.subr.mxu0 0.0
    %646 = vmatpush1.msra.mxu0 0.0
    %647 = vmatprep.subr.mxu0 0.0
    %648 = vmatpush1.msra.mxu0 0.0
    %649 = vmatprep.subr.mxu0 0.0
    %650 = vmatpush1.msra.mxu0 0.0
    %651 = vmatprep.subr.mxu0 0.0
    %652 = vmatpush1.msra.mxu0 0.0
    %653 = vmatprep.subr.mxu0 0.0
    %654 = vmatpush1.msra.mxu0 0.0
    %655 = vmatprep.subr.mxu0 0.0
    %656 = vmatpush1.msra.mxu0 0.0
    %657 = vmatprep.subr.mxu0 0.0
    %658 = vmatpush1.msra.mxu0 0.0
    %659 = vmatprep.subr.mxu0 0.0
    %660 = vmatpush1.msra.mxu0 0.0
    %661 = vmatprep.subr.mxu0 0.0
    %662 = vmatpush1.msra.mxu0 0.0
    %663 = vmatprep.subr.mxu0 0.0
    %664 = vmatpush1.msra.mxu0 0.0
    %665 = vmatprep.subr.mxu0 0.0
    %666 = vmatpush1.msra.mxu0 0.0
    %667 = vmatprep.subr.mxu0 0.0
    %668 = vmatpush1.msra.mxu0 0.0
    %669 = vmatprep.subr.mxu0 0.0
    %670 = vmatpush1.msra.mxu0 0.0
    %671 = vmatprep.subr.mxu0 0.0
    %672 = vmatpush1.msra.mxu0 0.0
    %673 = vmatprep.subr.mxu0 0.0
    %674 = vmatpush1.msra.mxu0 0.0
    %675 = vmatprep.subr.mxu0 0.0
    %676 = vmatpush1.msra.mxu0 0.0
    %677 = vmatprep.subr.mxu0 0.0
    %678 = vmatpush1.msra.mxu0 0.0
    %679 = vmatprep.subr.mxu0 0.0
    %680 = vmatpush1.msra.mxu0 0.0
    %681 = vmatprep.mubr.f32.mxu0 0.0
    %682 = vmatmul.mubr.f32.gmra.mrb[0].mxu0 %v609
    %v683 = vpop.f32.mrb[0].mxu0
    %v684 = vadd.f32 0.0, %v683
    %v685 = vpop.f32.mrb[0].mxu0
    %v686 = vadd.f32 0.0, %v685
    %687 = vmatprep.mubr.f32.mxu0 0.0
    %688 = vmatmul.mubr.f32.gmra.mrb[0].mxu0 %v611
    %v689 = vpop.f32.mrb[0].mxu0
    %v690 = vadd.f32 0.0, %v689
    %v691 = vpop.f32.mrb[0].mxu0
    %v692 = vadd.f32 0.0, %v691
    %693 = vmatprep.mubr.f32.mxu0 0.0
    %694 = vmatmul.mubr.f32.gmra.mrb[0].mxu0 %v613
    %v695 = vpop.f32.mrb[0].mxu0
    %v696 = vadd.f32 0.0, %v695
    %v697 = vpop.f32.mrb[0].mxu0
    %v698 = vadd.f32 0.0, %v697
    %699 = vmatprep.mubr.f32.mxu0 0.0
    %700 = vmatmul.mubr.f32.gmra.mrb[0].mxu0 %v615
    %v701 = vpop.f32.mrb[0].mxu0
    %v702 = vadd.f32 0.0, %v701
    %v703 = vpop.f32.mrb[0].mxu0
    %v704 = vadd.f32 0.0, %v703
    %705 = vdwg.mxu0
    %v706 = vadd.f32 %v369, %v580
    %v707 = vadd.f32 %v371, %v582
    %v708 = vadd.f32 %v375, %v586
    %v709 = vadd.f32 %v377, %v588
    %v710 = vadd.f32 %v381, %v592
    %v711 = vadd.f32 %v383, %v594
    %v712 = vadd.f32 %v387, %v598
    %v713 = vadd.f32 %v389, %v600
    %v714 = vadd.f32 %v466, %v684
    %v715 = vadd.f32 %v468, %v686
    %v716 = vadd.f32 %v472, %v690
    %v717 = vadd.f32 %v474, %v692
    %v718 = vadd.f32 %v478, %v696
    %v719 = vadd.f32 %v480, %v698
    %v720 = vadd.f32 %v484, %v702
    %v721 = vadd.f32 %v486, %v704
    %s722 = scalar_lea.vmem %s1, 192
    %v723 = vld [vmem:[%s722] sm:$0xff]
    %v724 = vld [vmem:[%s722 + $0x8] sm:$0xff]
    %v725 = vld [vmem:[%s722 + $0x10] sm:$0xff]
    %v726 = vld [vmem:[%s722 + $0x18] sm:$0xff]
    %v727 = vld [vmem:[%s722 + $0x20] sm:$0xff]
    %v728 = vld [vmem:[%s722 + $0x28] sm:$0xff]
    %v729 = vld [vmem:[%s722 + $0x30] sm:$0xff]
    %v730 = vld [vmem:[%s722 + $0x38] sm:$0xff]
    %vm731 = vcmask 1044480
    %v732 = vrot.slane %v51, 3
    %v733 = vrot.slane %v52, 3
    %v734 = vsel %vm731, %v732, %v733
    %v735 = vrot.slane %v53, 3
    %v736 = vsel %vm731, %v733, %v735
    %v737 = vrot.slane %v54, 3
    %v738 = vsel %vm731, %v735, %v737
    %v739 = vsel %vm88, %v734, 0
    %v741 = vsel %vm88, %v736, 0
    %v743 = vsel %vm88, %v738, 0
    %v745 = vsel %vm88, %v737, 0
    %747 = vmatprep.subr.mxu0 %v724
    %748 = vmatpush1.msra.mxu0 %v723
    %749 = vmatprep.subr.mxu0 %v726
    %750 = vmatpush1.msra.mxu0 %v725
    %751 = vmatprep.subr.mxu0 %v728
    %752 = vmatpush1.msra.mxu0 %v727
    %753 = vmatprep.subr.mxu0 %v730
    %754 = vmatpush1.msra.mxu0 %v729
    %755 = vmatprep.subr.mxu0 0.0
    %756 = vmatpush1.msra.mxu0 0.0
    %757 = vmatprep.subr.mxu0 0.0
    %758 = vmatpush1.msra.mxu0 0.0
    %759 = vmatprep.subr.mxu0 0.0
    %760 = vmatpush1.msra.mxu0 0.0
    %761 = vmatprep.subr.mxu0 0.0
    %762 = vmatpush1.msra.mxu0 0.0
    %763 = vmatprep.subr.mxu0 0.0
    %764 = vmatpush1.msra.mxu0 0.0
    %765 = vmatprep.subr.mxu0 0.0
    %766 = vmatpush1.msra.mxu0 0.0
    %767 = vmatprep.subr.mxu0 0.0
    %768 = vmatpush1.msra.mxu0 0.0
    %769 = vmatprep.subr.mxu0 0.0
    %770 = vmatpush1.msra.mxu0 0.0
    %771 = vmatprep.subr.mxu0 0.0
    %772 = vmatpush1.msra.mxu0 0.0
    %773 = vmatprep.subr.mxu0 0.0
    %774 = vmatpush1.msra.mxu0 0.0
    %775 = vmatprep.subr.mxu0 0.0
    %776 = vmatpush1.msra.mxu0 0.0
    %777 = vmatprep.subr.mxu0 0.0
    %778 = vmatpush1.msra.mxu0 0.0
    %779 = vmatprep.subr.mxu0 0.0
    %780 = vmatpush1.msra.mxu0 0.0
    %781 = vmatprep.subr.mxu0 0.0
    %782 = vmatpush1.msra.mxu0 0.0
    %783 = vmatprep.subr.mxu0 0.0
    %784 = vmatpush1.msra.mxu0 0.0
    %785 = vmatprep.subr.mxu0 0.0
    %786 = vmatpush1.msra.mxu0 0.0
    %787 = vmatprep.subr.mxu0 0.0
    %788 = vmatpush1.msra.mxu0 0.0
    %789 = vmatprep.subr.mxu0 0.0
    %790 = vmatpush1.msra.mxu0 0.0
    %791 = vmatprep.subr.mxu0 0.0
    %792 = vmatpush1.msra.mxu0 0.0
    %793 = vmatprep.subr.mxu0 0.0
    %794 = vmatpush1.msra.mxu0 0.0
    %795 = vmatprep.subr.mxu0 0.0
    %796 = vmatpush1.msra.mxu0 0.0
    %797 = vmatprep.subr.mxu0 0.0
    %798 = vmatpush1.msra.mxu0 0.0
    %799 = vmatprep.subr.mxu0 0.0
    %800 = vmatpush1.msra.mxu0 0.0
    %801 = vmatprep.subr.mxu0 0.0
    %802 = vmatpush1.msra.mxu0 0.0
    %803 = vmatprep.subr.mxu0 0.0
    %804 = vmatpush1.msra.mxu0 0.0
    %805 = vmatprep.subr.mxu0 0.0
    %806 = vmatpush1.msra.mxu0 0.0
    %807 = vmatprep.subr.mxu0 0.0
    %808 = vmatpush1.msra.mxu0 0.0
    %809 = vmatprep.subr.mxu0 0.0
    %810 = vmatpush1.msra.mxu0 0.0
    %811 = vmatprep.mubr.f32.mxu0 0.0
    %812 = vmatmul.mubr.f32.gmra.mrb[0].mxu0 %v739
    %v813 = vpop.f32.mrb[0].mxu0
    %v814 = vadd.f32 0.0, %v813
    %v815 = vpop.f32.mrb[0].mxu0
    %v816 = vadd.f32 0.0, %v815
    %817 = vmatprep.mubr.f32.mxu0 0.0
    %818 = vmatmul.mubr.f32.gmra.mrb[0].mxu0 %v741
    %v819 = vpop.f32.mrb[0].mxu0
    %v820 = vadd.f32 0.0, %v819
    %v821 = vpop.f32.mrb[0].mxu0
    %v822 = vadd.f32 0.0, %v821
    %823 = vmatprep.mubr.f32.mxu0 0.0
    %824 = vmatmul.mubr.f32.gmra.mrb[0].mxu0 %v743
    %v825 = vpop.f32.mrb[0].mxu0
    %v826 = vadd.f32 0.0, %v825
    %v827 = vpop.f32.mrb[0].mxu0
    %v828 = vadd.f32 0.0, %v827
    %829 = vmatprep.mubr.f32.mxu0 0.0
    %830 = vmatmul.mubr.f32.gmra.mrb[0].mxu0 %v745
    %v831 = vpop.f32.mrb[0].mxu0
    %v832 = vadd.f32 0.0, %v831
    %v833 = vpop.f32.mrb[0].mxu0
    %v834 = vadd.f32 0.0, %v833
    %835 = vdwg.mxu0
    %v836 = vrot.slane %v55, 3
    %v837 = vrot.slane %v56, 3
    %v838 = vsel %vm731, %v836, %v837
    %v839 = vrot.slane %v57, 3
    %v840 = vsel %vm731, %v837, %v839
    %v841 = vrot.slane %v58, 3
    %v842 = vsel %vm731, %v839, %v841
    %v843 = vsel %vm88, %v838, 0
    %v845 = vsel %vm88, %v840, 0
    %v847 = vsel %vm88, %v842, 0
    %v849 = vsel %vm88, %v841, 0
    %851 = vmatprep.subr.mxu0 %v724
    %852 = vmatpush1.msra.mxu0 %v723
    %853 = vmatprep.subr.mxu0 %v726
    %854 = vmatpush1.msra.mxu0 %v725
    %855 = vmatprep.subr.mxu0 %v728
    %856 = vmatpush1.msra.mxu0 %v727
    %857 = vmatprep.subr.mxu0 %v730
    %858 = vmatpush1.msra.mxu0 %v729
    %859 = vmatprep.subr.mxu0 0.0
    %860 = vmatpush1.msra.mxu0 0.0
    %861 = vmatprep.subr.mxu0 0.0
    %862 = vmatpush1.msra.mxu0 0.0
    %863 = vmatprep.subr.mxu0 0.0
    %864 = vmatpush1.msra.mxu0 0.0
    %865 = vmatprep.subr.mxu0 0.0
    %866 = vmatpush1.msra.mxu0 0.0
    %867 = vmatprep.subr.mxu0 0.0
    %868 = vmatpush1.msra.mxu0 0.0
    %869 = vmatprep.subr.mxu0 0.0
    %870 = vmatpush1.msra.mxu0 0.0
    %871 = vmatprep.subr.mxu0 0.0
    %872 = vmatpush1.msra.mxu0 0.0
    %873 = vmatprep.subr.mxu0 0.0
    %874 = vmatpush1.msra.mxu0 0.0
    %875 = vmatprep.subr.mxu0 0.0
    %876 = vmatpush1.msra.mxu0 0.0
    %877 = vmatprep.subr.mxu0 0.0
    %878 = vmatpush1.msra.mxu0 0.0
    %879 = vmatprep.subr.mxu0 0.0
    %880 = vmatpush1.msra.mxu0 0.0
    %881 = vmatprep.subr.mxu0 0.0
    %882 = vmatpush1.msra.mxu0 0.0
    %883 = vmatprep.subr.mxu0 0.0
    %884 = vmatpush1.msra.mxu0 0.0
    %885 = vmatprep.subr.mxu0 0.0
    %886 = vmatpush1.msra.mxu0 0.0
    %887 = vmatprep.subr.mxu0 0.0
    %888 = vmatpush1.msra.mxu0 0.0
    %889 = vmatprep.subr.mxu0 0.0
    %890 = vmatpush1.msra.mxu0 0.0
    %891 = vmatprep.subr.mxu0 0.0
    %892 = vmatpush1.msra.mxu0 0.0
    %893 = vmatprep.subr.mxu0 0.0
    %894 = vmatpush1.msra.mxu0 0.0
    %895 = vmatprep.subr.mxu0 0.0
    %896 = vmatpush1.msra.mxu0 0.0
    %897 = vmatprep.subr.mxu0 0.0
    %898 = vmatpush1.msra.mxu0 0.0
    %899 = vmatprep.subr.mxu0 0.0
    %900 = vmatpush1.msra.mxu0 0.0
    %901 = vmatprep.subr.mxu0 0.0
    %902 = vmatpush1.msra.mxu0 0.0
    %903 = vmatprep.subr.mxu0 0.0
    %904 = vmatpush1.msra.mxu0 0.0
    %905 = vmatprep.subr.mxu0 0.0
    %906 = vmatpush1.msra.mxu0 0.0
    %907 = vmatprep.subr.mxu0 0.0
    %908 = vmatpush1.msra.mxu0 0.0
    %909 = vmatprep.subr.mxu0 0.0
    %910 = vmatpush1.msra.mxu0 0.0
    %911 = vmatprep.subr.mxu0 0.0
    %912 = vmatpush1.msra.mxu0 0.0
    %913 = vmatprep.subr.mxu0 0.0
    %914 = vmatpush1.msra.mxu0 0.0
    %915 = vmatprep.mubr.f32.mxu0 0.0
    %916 = vmatmul.mubr.f32.gmra.mrb[0].mxu0 %v843
    %v917 = vpop.f32.mrb[0].mxu0
    %v918 = vadd.f32 0.0, %v917
    %v919 = vpop.f32.mrb[0].mxu0
    %v920 = vadd.f32 0.0, %v919
    %921 = vmatprep.mubr.f32.mxu0 0.0
    %922 = vmatmul.mubr.f32.gmra.mrb[0].mxu0 %v845
    %v923 = vpop.f32.mrb[0].mxu0
    %v924 = vadd.f32 0.0, %v923
    %v925 = vpop.f32.mrb[0].mxu0
    %v926 = vadd.f32 0.0, %v925
    %927 = vmatprep.mubr.f32.mxu0 0.0
    %928 = vmatmul.mubr.f32.gmra.mrb[0].mxu0 %v847
    %v929 = vpop.f32.mrb[0].mxu0
    %v930 = vadd.f32 0.0, %v929
    %v931 = vpop.f32.mrb[0].mxu0
    %v932 = vadd.f32 0.0, %v931
    %933 = vmatprep.mubr.f32.mxu0 0.0
    %934 = vmatmul.mubr.f32.gmra.mrb[0].mxu0 %v849
    %v935 = vpop.f32.mrb[0].mxu0
    %v936 = vadd.f32 0.0, %v935
    %v937 = vpop.f32.mrb[0].mxu0
    %v938 = vadd.f32 0.0, %v937
    %939 = vdwg.mxu0
    %v940 = vadd.f32 %v706, %v814
    %v941 = vadd.f32 %v707, %v816
    %v942 = vadd.f32 %v708, %v820
    %v943 = vadd.f32 %v709, %v822
    %v944 = vadd.f32 %v710, %v826
    %v945 = vadd.f32 %v711, %v828
    %v946 = vadd.f32 %v712, %v832
    %v947 = vadd.f32 %v713, %v834
    %v948 = vadd.f32 %v714, %v918
    %v949 = vadd.f32 %v715, %v920
    %v950 = vadd.f32 %v716, %v924
    %v951 = vadd.f32 %v717, %v926
    %v952 = vadd.f32 %v718, %v930
    %v953 = vadd.f32 %v719, %v932
    %v954 = vadd.f32 %v720, %v936
    %v955 = vadd.f32 %v721, %v938
    %s956 = scalar_lea.vmem %s1, 256
    %v957 = vld [vmem:[%s956] sm:$0xff]
    %v958 = vld [vmem:[%s956 + $0x8] sm:$0xff]
    %v959 = vld [vmem:[%s956 + $0x10] sm:$0xff]
    %v960 = vld [vmem:[%s956 + $0x18] sm:$0xff]
    %v961 = vld [vmem:[%s956 + $0x20] sm:$0xff]
    %v962 = vld [vmem:[%s956 + $0x28] sm:$0xff]
    %v963 = vld [vmem:[%s956 + $0x30] sm:$0xff]
    %v964 = vld [vmem:[%s956 + $0x38] sm:$0xff]
    %vm965 = vcmask 1043456
    %v966 = vrot.slane %v51, 4
    %v967 = vrot.slane %v52, 4
    %v968 = vsel %vm965, %v966, %v967
    %v969 = vrot.slane %v53, 4
    %v970 = vsel %vm965, %v967, %v969
    %v971 = vrot.slane %v54, 4
    %v972 = vsel %vm965, %v969, %v971
    %v973 = vsel %vm88, %v968, 0
    %v975 = vsel %vm88, %v970, 0
    %v977 = vsel %vm88, %v972, 0
    %v979 = vsel %vm88, %v971, 0
    %981 = vmatprep.subr.mxu0 %v958
    %982 = vmatpush1.msra.mxu0 %v957
    %983 = vmatprep.subr.mxu0 %v960
    %984 = vmatpush1.msra.mxu0 %v959
    %985 = vmatprep.subr.mxu0 %v962
    %986 = vmatpush1.msra.mxu0 %v961
    %987 = vmatprep.subr.mxu0 %v964
    %988 = vmatpush1.msra.mxu0 %v963
    %989 = vmatprep.subr.mxu0 0.0
    %990 = vmatpush1.msra.mxu0 0.0
    %991 = vmatprep.subr.mxu0 0.0
    %992 = vmatpush1.msra.mxu0 0.0
    %993 = vmatprep.subr.mxu0 0.0
    %994 = vmatpush1.msra.mxu0 0.0
    %995 = vmatprep.subr.mxu0 0.0
    %996 = vmatpush1.msra.mxu0 0.0
    %997 = vmatprep.subr.mxu0 0.0
    %998 = vmatpush1.msra.mxu0 0.0
    %999 = vmatprep.subr.mxu0 0.0
    %1000 = vmatpush1.msra.mxu0 0.0
    %1001 = vmatprep.subr.mxu0 0.0
    %1002 = vmatpush1.msra.mxu0 0.0
    %1003 = vmatprep.subr.mxu0 0.0
    %1004 = vmatpush1.msra.mxu0 0.0
    %1005 = vmatprep.subr.mxu0 0.0
    %1006 = vmatpush1.msra.mxu0 0.0
    %1007 = vmatprep.subr.mxu0 0.0
    %1008 = vmatpush1.msra.mxu0 0.0
    %1009 = vmatprep.subr.mxu0 0.0
    %1010 = vmatpush1.msra.mxu0 0.0
    %1011 = vmatprep.subr.mxu0 0.0
    %1012 = vmatpush1.msra.mxu0 0.0
    %1013 = vmatprep.subr.mxu0 0.0
    %1014 = vmatpush1.msra.mxu0 0.0
    %1015 = vmatprep.subr.mxu0 0.0
    %1016 = vmatpush1.msra.mxu0 0.0
    %1017 = vmatprep.subr.mxu0 0.0
    %1018 = vmatpush1.msra.mxu0 0.0
    %1019 = vmatprep.subr.mxu0 0.0
    %1020 = vmatpush1.msra.mxu0 0.0
    %1021 = vmatprep.subr.mxu0 0.0
    %1022 = vmatpush1.msra.mxu0 0.0
    %1023 = vmatprep.subr.mxu0 0.0
    %1024 = vmatpush1.msra.mxu0 0.0
    %1025 = vmatprep.subr.mxu0 0.0
    %1026 = vmatpush1.msra.mxu0 0.0
    %1027 = vmatprep.subr.mxu0 0.0
    %1028 = vmatpush1.msra.mxu0 0.0
    %1029 = vmatprep.subr.mxu0 0.0
    %1030 = vmatpush1.msra.mxu0 0.0
    %1031 = vmatprep.subr.mxu0 0.0
    %1032 = vmatpush1.msra.mxu0 0.0
    %1033 = vmatprep.subr.mxu0 0.0
    %1034 = vmatpush1.msra.mxu0 0.0
    %1035 = vmatprep.subr.mxu0 0.0
    %1036 = vmatpush1.msra.mxu0 0.0
    %1037 = vmatprep.subr.mxu0 0.0
    %1038 = vmatpush1.msra.mxu0 0.0
    %1039 = vmatprep.subr.mxu0 0.0
    %1040 = vmatpush1.msra.mxu0 0.0
    %1041 = vmatprep.subr.mxu0 0.0
    %1042 = vmatpush1.msra.mxu0 0.0
    %1043 = vmatprep.subr.mxu0 0.0
    %1044 = vmatpush1.msra.mxu0 0.0
    %1045 = vmatprep.mubr.f32.mxu0 0.0
    %1046 = vmatmul.mubr.f32.gmra.mrb[0].mxu0 %v973
    %v1047 = vpop.f32.mrb[0].mxu0
    %v1048 = vadd.f32 0.0, %v1047
    %v1049 = vpop.f32.mrb[0].mxu0
    %v1050 = vadd.f32 0.0, %v1049
    %1051 = vmatprep.mubr.f32.mxu0 0.0
    %1052 = vmatmul.mubr.f32.gmra.mrb[0].mxu0 %v975
    %v1053 = vpop.f32.mrb[0].mxu0
    %v1054 = vadd.f32 0.0, %v1053
    %v1055 = vpop.f32.mrb[0].mxu0
    %v1056 = vadd.f32 0.0, %v1055
    %1057 = vmatprep.mubr.f32.mxu0 0.0
    %1058 = vmatmul.mubr.f32.gmra.mrb[0].mxu0 %v977
    %v1059 = vpop.f32.mrb[0].mxu0
    %v1060 = vadd.f32 0.0, %v1059
    %v1061 = vpop.f32.mrb[0].mxu0
    %v1062 = vadd.f32 0.0, %v1061
    %1063 = vmatprep.mubr.f32.mxu0 0.0
    %1064 = vmatmul.mubr.f32.gmra.mrb[0].mxu0 %v979
    %v1065 = vpop.f32.mrb[0].mxu0
    %v1066 = vadd.f32 0.0, %v1065
    %v1067 = vpop.f32.mrb[0].mxu0
    %v1068 = vadd.f32 0.0, %v1067
    %1069 = vdwg.mxu0
    %v1070 = vrot.slane %v55, 4
    %v1071 = vrot.slane %v56, 4
    %v1072 = vsel %vm965, %v1070, %v1071
    %v1073 = vrot.slane %v57, 4
    %v1074 = vsel %vm965, %v1071, %v1073
    %v1075 = vrot.slane %v58, 4
    %v1076 = vsel %vm965, %v1073, %v1075
    %v1077 = vsel %vm88, %v1072, 0
    %v1079 = vsel %vm88, %v1074, 0
    %v1081 = vsel %vm88, %v1076, 0
    %v1083 = vsel %vm88, %v1075, 0
    %1085 = vmatprep.subr.mxu0 %v958
    %1086 = vmatpush1.msra.mxu0 %v957
    %1087 = vmatprep.subr.mxu0 %v960
    %1088 = vmatpush1.msra.mxu0 %v959
    %1089 = vmatprep.subr.mxu0 %v962
    %1090 = vmatpush1.msra.mxu0 %v961
    %1091 = vmatprep.subr.mxu0 %v964
    %1092 = vmatpush1.msra.mxu0 %v963
    %1093 = vmatprep.subr.mxu0 0.0
    %1094 = vmatpush1.msra.mxu0 0.0
    %1095 = vmatprep.subr.mxu0 0.0
    %1096 = vmatpush1.msra.mxu0 0.0
    %1097 = vmatprep.subr.mxu0 0.0
    %1098 = vmatpush1.msra.mxu0 0.0
    %1099 = vmatprep.subr.mxu0 0.0
    %1100 = vmatpush1.msra.mxu0 0.0
    %1101 = vmatprep.subr.mxu0 0.0
    %1102 = vmatpush1.msra.mxu0 0.0
    %1103 = vmatprep.subr.mxu0 0.0
    %1104 = vmatpush1.msra.mxu0 0.0
    %1105 = vmatprep.subr.mxu0 0.0
    %1106 = vmatpush1.msra.mxu0 0.0
    %1107 = vmatprep.subr.mxu0 0.0
    %1108 = vmatpush1.msra.mxu0 0.0
    %1109 = vmatprep.subr.mxu0 0.0
    %1110 = vmatpush1.msra.mxu0 0.0
    %1111 = vmatprep.subr.mxu0 0.0
    %1112 = vmatpush1.msra.mxu0 0.0
    %1113 = vmatprep.subr.mxu0 0.0
    %1114 = vmatpush1.msra.mxu0 0.0
    %1115 = vmatprep.subr.mxu0 0.0
    %1116 = vmatpush1.msra.mxu0 0.0
    %1117 = vmatprep.subr.mxu0 0.0
    %1118 = vmatpush1.msra.mxu0 0.0
    %1119 = vmatprep.subr.mxu0 0.0
    %1120 = vmatpush1.msra.mxu0 0.0
    %1121 = vmatprep.subr.mxu0 0.0
    %1122 = vmatpush1.msra.mxu0 0.0
    %1123 = vmatprep.subr.mxu0 0.0
    %1124 = vmatpush1.msra.mxu0 0.0
    %1125 = vmatprep.subr.mxu0 0.0
    %1126 = vmatpush1.msra.mxu0 0.0
    %1127 = vmatprep.subr.mxu0 0.0
    %1128 = vmatpush1.msra.mxu0 0.0
    %1129 = vmatprep.subr.mxu0 0.0
    %1130 = vmatpush1.msra.mxu0 0.0
    %1131 = vmatprep.subr.mxu0 0.0
    %1132 = vmatpush1.msra.mxu0 0.0
    %1133 = vmatprep.subr.mxu0 0.0
    %1134 = vmatpush1.msra.mxu0 0.0
    %1135 = vmatprep.subr.mxu0 0.0
    %1136 = vmatpush1.msra.mxu0 0.0
    %1137 = vmatprep.subr.mxu0 0.0
    %1138 = vmatpush1.msra.mxu0 0.0
    %1139 = vmatprep.subr.mxu0 0.0
    %1140 = vmatpush1.msra.mxu0 0.0
    %1141 = vmatprep.subr.mxu0 0.0
    %1142 = vmatpush1.msra.mxu0 0.0
    %1143 = vmatprep.subr.mxu0 0.0
    %1144 = vmatpush1.msra.mxu0 0.0
    %1145 = vmatprep.subr.mxu0 0.0
    %1146 = vmatpush1.msra.mxu0 0.0
    %1147 = vmatprep.subr.mxu0 0.0
    %1148 = vmatpush1.msra.mxu0 0.0
    %1149 = vmatprep.mubr.f32.mxu0 0.0
    %1150 = vmatmul.mubr.f32.gmra.mrb[0].mxu0 %v1077
    %v1151 = vpop.f32.mrb[0].mxu0
    %v1152 = vadd.f32 0.0, %v1151
    %v1153 = vpop.f32.mrb[0].mxu0
    %v1154 = vadd.f32 0.0, %v1153
    %1155 = vmatprep.mubr.f32.mxu0 0.0
    %1156 = vmatmul.mubr.f32.gmra.mrb[0].mxu0 %v1079
    %v1157 = vpop.f32.mrb[0].mxu0
    %v1158 = vadd.f32 0.0, %v1157
    %v1159 = vpop.f32.mrb[0].mxu0
    %v1160 = vadd.f32 0.0, %v1159
    %1161 = vmatprep.mubr.f32.mxu0 0.0
    %1162 = vmatmul.mubr.f32.gmra.mrb[0].mxu0 %v1081
    %v1163 = vpop.f32.mrb[0].mxu0
    %v1164 = vadd.f32 0.0, %v1163
    %v1165 = vpop.f32.mrb[0].mxu0
    %v1166 = vadd.f32 0.0, %v1165
    %1167 = vmatprep.mubr.f32.mxu0 0.0
    %1168 = vmatmul.mubr.f32.gmra.mrb[0].mxu0 %v1083
    %v1169 = vpop.f32.mrb[0].mxu0
    %v1170 = vadd.f32 0.0, %v1169
    %v1171 = vpop.f32.mrb[0].mxu0
    %v1172 = vadd.f32 0.0, %v1171
    %1173 = vdwg.mxu0
    %v1174 = vadd.f32 %v940, %v1048
    %v1175 = vadd.f32 %v941, %v1050
    %v1176 = vadd.f32 %v942, %v1054
    %v1177 = vadd.f32 %v943, %v1056
    %v1178 = vadd.f32 %v944, %v1060
    %v1179 = vadd.f32 %v945, %v1062
    %v1180 = vadd.f32 %v946, %v1066
    %v1181 = vadd.f32 %v947, %v1068
    %v1182 = vadd.f32 %v948, %v1152
    %v1183 = vadd.f32 %v949, %v1154
    %v1184 = vadd.f32 %v950, %v1158
    %v1185 = vadd.f32 %v951, %v1160
    %v1186 = vadd.f32 %v952, %v1164
    %v1187 = vadd.f32 %v953, %v1166
    %v1188 = vadd.f32 %v954, %v1170
    %v1189 = vadd.f32 %v955, %v1172
    %v1190 = vld [vmem:[%s2] sm:$0x3]
    %v1192 = vlaneseq
    %v1193 = vshrl.u32 %v1192, 7
    %v1194 = vsub.s32 0, %v1193
    %v1195 = vrot.slane %v1190, %v1194
    %v1196 = vlaneseq
    %v1197 = vshrl.u32 %v1196, 7
    %v1198 = vsub.s32 1, %v1197
    %v1199 = vrot.slane %v1190, %v1198
    %v1202 = vadd.f32 %v1174, %v1195
    %v1203 = vadd.f32 %v1175, %v1199
    %v1204 = vadd.f32 %v1176, %v1195
    %v1205 = vadd.f32 %v1177, %v1199
    %v1206 = vadd.f32 %v1178, %v1195
    %v1207 = vadd.f32 %v1179, %v1199
    %v1208 = vadd.f32 %v1180, %v1195
    %v1209 = vadd.f32 %v1181, %v1199
    %v1210 = vadd.f32 %v1182, %v1195
    %v1211 = vadd.f32 %v1183, %v1199
    %v1212 = vadd.f32 %v1184, %v1195
    %v1213 = vadd.f32 %v1185, %v1199
    %v1214 = vadd.f32 %v1186, %v1195
    %v1215 = vadd.f32 %v1187, %v1199
    %v1216 = vadd.f32 %v1188, %v1195
    %v1217 = vadd.f32 %v1189, %v1199
    %v1218 = vmax.f32 %v1202, 0.0
    %v1219 = vmax.f32 %v1203, 0.0
    %v1220 = vmax.f32 %v1204, 0.0
    %v1221 = vmax.f32 %v1205, 0.0
    %v1222 = vmax.f32 %v1206, 0.0
    %v1223 = vmax.f32 %v1207, 0.0
    %v1224 = vmax.f32 %v1208, 0.0
    %v1225 = vmax.f32 %v1209, 0.0
    %v1226 = vmax.f32 %v1210, 0.0
    %v1227 = vmax.f32 %v1211, 0.0
    %v1228 = vmax.f32 %v1212, 0.0
    %v1229 = vmax.f32 %v1213, 0.0
    %v1230 = vmax.f32 %v1214, 0.0
    %v1231 = vmax.f32 %v1215, 0.0
    %v1232 = vmax.f32 %v1216, 0.0
    %v1233 = vmax.f32 %v1217, 0.0
    %v1250 = vrot.slane %v1218, 1
    %v1251 = vrot.slane %v1220, 1
    %v1252 = vsel %vm80, %v1250, %v1251
    %v1253 = vrot.slane %v1219, 1
    %v1254 = vrot.slane %v1221, 1
    %v1255 = vsel %vm80, %v1253, %v1254
    %v1256 = vrot.slane %v1222, 1
    %v1257 = vsel %vm80, %v1251, %v1256
    %v1258 = vrot.slane %v1223, 1
    %v1259 = vsel %vm80, %v1254, %v1258
    %v1260 = vrot.slane %v1224, 1
    %v1261 = vsel %vm80, %v1256, %v1260
    %v1262 = vrot.slane %v1225, 1
    %v1263 = vsel %vm80, %v1258, %v1262
    %v1264 = vrot.slane %v1226, 1
    %v1265 = vrot.slane %v1228, 1
    %v1266 = vsel %vm80, %v1264, %v1265
    %v1267 = vrot.slane %v1227, 1
    %v1268 = vrot.slane %v1229, 1
    %v1269 = vsel %vm80, %v1267, %v1268
    %v1270 = vrot.slane %v1230, 1
    %v1271 = vsel %vm80, %v1265, %v1270
    %v1272 = vrot.slane %v1231, 1
    %v1273 = vsel %vm80, %v1268, %v1272
    %v1274 = vrot.slane %v1232, 1
    %v1275 = vsel %vm80, %v1270, %v1274
    %v1276 = vrot.slane %v1233, 1
    %v1277 = vsel %vm80, %v1272, %v1276
    %v1294 = vmax.f32 %v1218, %v1252
    %v1295 = vmax.f32 %v1219, %v1255
    %v1296 = vmax.f32 %v1220, %v1257
    %v1297 = vmax.f32 %v1221, %v1259
    %v1298 = vmax.f32 %v1222, %v1261
    %v1299 = vmax.f32 %v1223, %v1263
    %v1300 = vmax.f32 %v1224, %v1260
    %v1301 = vmax.f32 %v1225, %v1262
    %v1302 = vmax.f32 %v1226, %v1266
    %v1303 = vmax.f32 %v1227, %v1269
    %v1304 = vmax.f32 %v1228, %v1271
    %v1305 = vmax.f32 %v1229, %v1273
    %v1306 = vmax.f32 %v1230, %v1275
    %v1307 = vmax.f32 %v1231, %v1277
    %v1308 = vmax.f32 %v1232, %v1274
    %v1309 = vmax.f32 %v1233, %v1276
    %1326 = vrot.lane.b32.xlu0 %v1294, 122
    %v1327 = vpop.permute.xlu0 %1326
    %1328 = vrot.lane.b32.xlu0 %v1295, 122
    %v1329 = vpop.permute.xlu0 %1328
    %1330 = vrot.lane.b32.xlu0 %v1296, 122
    %v1331 = vpop.permute.xlu0 %1330
    %1332 = vrot.lane.b32.xlu0 %v1297, 122
    %v1333 = vpop.permute.xlu0 %1332
    %1334 = vrot.lane.b32.xlu0 %v1298, 122
    %v1335 = vpop.permute.xlu0 %1334
    %1336 = vrot.lane.b32.xlu0 %v1299, 122
    %v1337 = vpop.permute.xlu0 %1336
    %1338 = vrot.lane.b32.xlu0 %v1300, 122
    %v1339 = vpop.permute.xlu0 %1338
    %1340 = vrot.lane.b32.xlu0 %v1301, 122
    %v1341 = vpop.permute.xlu0 %1340
    %1342 = vrot.lane.b32.xlu0 %v1302, 122
    %v1343 = vpop.permute.xlu0 %1342
    %1344 = vrot.lane.b32.xlu0 %v1303, 122
    %v1345 = vpop.permute.xlu0 %1344
    %1346 = vrot.lane.b32.xlu0 %v1304, 122
    %v1347 = vpop.permute.xlu0 %1346
    %1348 = vrot.lane.b32.xlu0 %v1305, 122
    %v1349 = vpop.permute.xlu0 %1348
    %1350 = vrot.lane.b32.xlu0 %v1306, 122
    %v1351 = vpop.permute.xlu0 %1350
    %1352 = vrot.lane.b32.xlu0 %v1307, 122
    %v1353 = vpop.permute.xlu0 %1352
    %1354 = vrot.lane.b32.xlu0 %v1308, 122
    %v1355 = vpop.permute.xlu0 %1354
    %1356 = vrot.lane.b32.xlu0 %v1309, 122
    %v1357 = vpop.permute.xlu0 %1356
    %vm1358 = vcmask 998400
    %v1359 = vsel %vm1358, %v1327, %v1329
    %v1360 = vsel %vm1358, %v1331, %v1333
    %v1361 = vsel %vm1358, %v1335, %v1337
    %v1362 = vsel %vm1358, %v1339, %v1341
    %v1363 = vsel %vm1358, %v1343, %v1345
    %v1364 = vsel %vm1358, %v1347, %v1349
    %v1365 = vsel %vm1358, %v1351, %v1353
    %v1366 = vsel %vm1358, %v1355, %v1357
    %v1383 = vmax.f32 %v1294, %v1359
    %v1384 = vmax.f32 %v1295, %v1329
    %v1385 = vmax.f32 %v1296, %v1360
    %v1386 = vmax.f32 %v1297, %v1333
    %v1387 = vmax.f32 %v1298, %v1361
    %v1388 = vmax.f32 %v1299, %v1337
    %v1389 = vmax.f32 %v1300, %v1362
    %v1390 = vmax.f32 %v1301, %v1341
    %v1391 = vmax.f32 %v1302, %v1363
    %v1392 = vmax.f32 %v1303, %v1345
    %v1393 = vmax.f32 %v1304, %v1364
    %v1394 = vmax.f32 %v1305, %v1349
    %v1395 = vmax.f32 %v1306, %v1365
    %v1396 = vmax.f32 %v1307, %v1353
    %v1397 = vmax.f32 %v1308, %v1366
    %v1398 = vmax.f32 %v1309, %v1357
    %v1399 = vld [vmem:[%s4] sm:$0xff]
    %v1400 = vld [vmem:[%s4 + $0x8] sm:$0x3f]
    %v1401 = vld [vmem:[%s3] sm:$0xff]
    %v1402 = vld [vmem:[%s3 + $0x8] sm:$0xff]
    %v1403 = vld [vmem:[%s3 + $0x10] sm:$0xff]
    %v1404 = vld [vmem:[%s3 + $0x18] sm:$0xff]
    %v1405 = vld [vmem:[%s3 + $0x20] sm:$0xff]
    %v1406 = vld [vmem:[%s3 + $0x28] sm:$0xff]
    %v1407 = vld [vmem:[%s3 + $0x30] sm:$0xff]
    %v1408 = vld [vmem:[%s3 + $0x38] sm:$0xff]
    %v1409 = vld [vmem:[%s3 + $0x40] sm:$0xff]
    %v1410 = vld [vmem:[%s3 + $0x48] sm:$0xff]
    %v1411 = vld [vmem:[%s3 + $0x50] sm:$0xff]
    %v1412 = vld [vmem:[%s3 + $0x58] sm:$0xff]
    %v1413 = vld [vmem:[%s3 + $0x60] sm:$0xff]
    %v1414 = vld [vmem:[%s3 + $0x68] sm:$0xff]
    %v1415 = vld [vmem:[%s3 + $0x70] sm:$0xff]
    %v1416 = vld [vmem:[%s3 + $0x78] sm:$0xff]
    %v1417 = vld [vmem:[%s3 + $0x80] sm:$0xff]
    %v1418 = vld [vmem:[%s3 + $0x88] sm:$0xff]
    %v1419 = vld [vmem:[%s3 + $0x90] sm:$0xff]
    %v1420 = vld [vmem:[%s3 + $0x98] sm:$0xff]
    %v1421 = vld [vmem:[%s3 + $0xa0] sm:$0x3]
    %vm1422 = vcmask 277504
    %v1424 = vsel %vm1422, %v1384, 0
    %v1427 = vsel %vm1422, %v1386, 0
    %v1430 = vsel %vm1422, %v1388, 0
    %v1433 = vsel %vm1422, %v1390, 0
    %vm1435 = vcmask 1041408
    %v1437 = vsel %vm1435, %v1421, 0
    %1439 = vmatprep.subr.mxu0 0.0
    %1440 = vmatpush1.msra.mxu0 %v1401
    %1441 = vmatprep.subr.mxu0 0.0
    %1442 = vmatpush1.msra.mxu0 %v1402
    %1443 = vmatprep.subr.mxu0 0.0
    %1444 = vmatpush1.msra.mxu0 %v1403
    %1445 = vmatprep.subr.mxu0 0.0
    %1446 = vmatpush1.msra.mxu0 %v1404
    %1447 = vmatprep.subr.mxu0 0.0
    %1448 = vmatpush1.msra.mxu0 %v1405
    %1449 = vmatprep.subr.mxu0 0.0
    %1450 = vmatpush1.msra.mxu0 %v1406
    %1451 = vmatprep.subr.mxu0 0.0
    %1452 = vmatpush1.msra.mxu0 %v1407
    %1453 = vmatprep.subr.mxu0 0.0
    %1454 = vmatpush1.msra.mxu0 %v1408
    %1455 = vmatprep.subr.mxu0 0.0
    %1456 = vmatpush1.msra.mxu0 %v1409
    %1457 = vmatprep.subr.mxu0 0.0
    %1458 = vmatpush1.msra.mxu0 %v1410
    %1459 = vmatprep.subr.mxu0 0.0
    %1460 = vmatpush1.msra.mxu0 %v1411
    %1461 = vmatprep.subr.mxu0 0.0
    %1462 = vmatpush1.msra.mxu0 %v1412
    %1463 = vmatprep.subr.mxu0 0.0
    %1464 = vmatpush1.msra.mxu0 %v1413
    %1465 = vmatprep.subr.mxu0 0.0
    %1466 = vmatpush1.msra.mxu0 %v1414
    %1467 = vmatprep.subr.mxu0 0.0
    %1468 = vmatpush1.msra.mxu0 %v1415
    %1469 = vmatprep.subr.mxu0 0.0
    %1470 = vmatpush1.msra.mxu0 %v1416
    %1471 = vmatprep.subr.mxu0 0.0
    %1472 = vmatpush1.msra.mxu0 %v1417
    %1473 = vmatprep.subr.mxu0 0.0
    %1474 = vmatpush1.msra.mxu0 %v1418
    %1475 = vmatprep.subr.mxu0 0.0
    %1476 = vmatpush1.msra.mxu0 %v1419
    %1477 = vmatprep.subr.mxu0 0.0
    %1478 = vmatpush1.msra.mxu0 %v1420
    %1479 = vmatprep.subr.mxu0 0.0
    %1480 = vmatpush1.msra.mxu0 %v1437
    %1481 = vmatprep.subr.mxu0 0.0
    %1482 = vmatpush1.msra.mxu0 0.0
    %1483 = vmatprep.subr.mxu0 0.0
    %1484 = vmatpush1.msra.mxu0 0.0
    %1485 = vmatprep.subr.mxu0 0.0
    %1486 = vmatpush1.msra.mxu0 0.0
    %1487 = vmatprep.subr.mxu0 0.0
    %1488 = vmatpush1.msra.mxu0 0.0
    %1489 = vmatprep.subr.mxu0 0.0
    %1490 = vmatpush1.msra.mxu0 0.0
    %1491 = vmatprep.subr.mxu0 0.0
    %1492 = vmatpush1.msra.mxu0 0.0
    %1493 = vmatprep.subr.mxu0 0.0
    %1494 = vmatpush1.msra.mxu0 0.0
    %1495 = vmatprep.subr.mxu0 0.0
    %1496 = vmatpush1.msra.mxu0 0.0
    %1497 = vmatprep.subr.mxu0 0.0
    %1498 = vmatpush1.msra.mxu0 0.0
    %1499 = vmatprep.subr.mxu0 0.0
    %1500 = vmatpush1.msra.mxu0 0.0
    %1501 = vmatprep.subr.mxu0 0.0
    %1502 = vmatpush1.msra.mxu0 0.0
    %1503 = vmatprep.mubr.f32.mxu0 %v1424
    %1504 = vmatmul.mubr.f32.gmra.mrb[0].mxu0 %v1383
    %v1505 = vpop.f32.mrb[0].mxu0
    %v1506 = vadd.f32 0.0, %v1505
    %v1507 = vpop.f32.mrb[0].mxu0
    %1508 = vmatprep.mubr.f32.mxu0 %v1427
    %1509 = vmatmul.mubr.f32.gmra.mrb[0].mxu0 %v1385
    %v1510 = vpop.f32.mrb[0].mxu0
    %v1511 = vadd.f32 0.0, %v1510
    %v1512 = vpop.f32.mrb[0].mxu0
    %1513 = vmatprep.mubr.f32.mxu0 %v1430
    %1514 = vmatmul.mubr.f32.gmra.mrb[0].mxu0 %v1387
    %v1515 = vpop.f32.mrb[0].mxu0
    %v1516 = vadd.f32 0.0, %v1515
    %v1517 = vpop.f32.mrb[0].mxu0
    %1518 = vmatprep.mubr.f32.mxu0 %v1433
    %1519 = vmatmul.mubr.f32.gmra.mrb[0].mxu0 %v1389
    %v1520 = vpop.f32.mrb[0].mxu0
    %v1521 = vadd.f32 0.0, %v1520
    %v1522 = vpop.f32.mrb[0].mxu0
    %1523 = vdwg.mxu0
    %v1525 = vsel %vm1422, %v1392, 0
    %v1528 = vsel %vm1422, %v1394, 0
    %v1531 = vsel %vm1422, %v1396, 0
    %v1534 = vsel %vm1422, %v1398, 0
    %1536 = vmatprep.subr.mxu0 0.0
    %1537 = vmatpush1.msra.mxu0 %v1401
    %1538 = vmatprep.subr.mxu0 0.0
    %1539 = vmatpush1.msra.mxu0 %v1402
    %1540 = vmatprep.subr.mxu0 0.0
    %1541 = vmatpush1.msra.mxu0 %v1403
    %1542 = vmatprep.subr.mxu0 0.0
    %1543 = vmatpush1.msra.mxu0 %v1404
    %1544 = vmatprep.subr.mxu0 0.0
    %1545 = vmatpush1.msra.mxu0 %v1405
    %1546 = vmatprep.subr.mxu0 0.0
    %1547 = vmatpush1.msra.mxu0 %v1406
    %1548 = vmatprep.subr.mxu0 0.0
    %1549 = vmatpush1.msra.mxu0 %v1407
    %1550 = vmatprep.subr.mxu0 0.0
    %1551 = vmatpush1.msra.mxu0 %v1408
    %1552 = vmatprep.subr.mxu0 0.0
    %1553 = vmatpush1.msra.mxu0 %v1409
    %1554 = vmatprep.subr.mxu0 0.0
    %1555 = vmatpush1.msra.mxu0 %v1410
    %1556 = vmatprep.subr.mxu0 0.0
    %1557 = vmatpush1.msra.mxu0 %v1411
    %1558 = vmatprep.subr.mxu0 0.0
    %1559 = vmatpush1.msra.mxu0 %v1412
    %1560 = vmatprep.subr.mxu0 0.0
    %1561 = vmatpush1.msra.mxu0 %v1413
    %1562 = vmatprep.subr.mxu0 0.0
    %1563 = vmatpush1.msra.mxu0 %v1414
    %1564 = vmatprep.subr.mxu0 0.0
    %1565 = vmatpush1.msra.mxu0 %v1415
    %1566 = vmatprep.subr.mxu0 0.0
    %1567 = vmatpush1.msra.mxu0 %v1416
    %1568 = vmatprep.subr.mxu0 0.0
    %1569 = vmatpush1.msra.mxu0 %v1417
    %1570 = vmatprep.subr.mxu0 0.0
    %1571 = vmatpush1.msra.mxu0 %v1418
    %1572 = vmatprep.subr.mxu0 0.0
    %1573 = vmatpush1.msra.mxu0 %v1419
    %1574 = vmatprep.subr.mxu0 0.0
    %1575 = vmatpush1.msra.mxu0 %v1420
    %1576 = vmatprep.subr.mxu0 0.0
    %1577 = vmatpush1.msra.mxu0 %v1437
    %1578 = vmatprep.subr.mxu0 0.0
    %1579 = vmatpush1.msra.mxu0 0.0
    %1580 = vmatprep.subr.mxu0 0.0
    %1581 = vmatpush1.msra.mxu0 0.0
    %1582 = vmatprep.subr.mxu0 0.0
    %1583 = vmatpush1.msra.mxu0 0.0
    %1584 = vmatprep.subr.mxu0 0.0
    %1585 = vmatpush1.msra.mxu0 0.0
    %1586 = vmatprep.subr.mxu0 0.0
    %1587 = vmatpush1.msra.mxu0 0.0
    %1588 = vmatprep.subr.mxu0 0.0
    %1589 = vmatpush1.msra.mxu0 0.0
    %1590 = vmatprep.subr.mxu0 0.0
    %1591 = vmatpush1.msra.mxu0 0.0
    %1592 = vmatprep.subr.mxu0 0.0
    %1593 = vmatpush1.msra.mxu0 0.0
    %1594 = vmatprep.subr.mxu0 0.0
    %1595 = vmatpush1.msra.mxu0 0.0
    %1596 = vmatprep.subr.mxu0 0.0
    %1597 = vmatpush1.msra.mxu0 0.0
    %1598 = vmatprep.subr.mxu0 0.0
    %1599 = vmatpush1.msra.mxu0 0.0
    %1600 = vmatprep.mubr.f32.mxu0 %v1525
    %1601 = vmatmul.mubr.f32.gmra.mrb[0].mxu0 %v1391
    %v1602 = vpop.f32.mrb[0].mxu0
    %v1603 = vadd.f32 0.0, %v1602
    %v1604 = vpop.f32.mrb[0].mxu0
    %1605 = vmatprep.mubr.f32.mxu0 %v1528
    %1606 = vmatmul.mubr.f32.gmra.mrb[0].mxu0 %v1393
    %v1607 = vpop.f32.mrb[0].mxu0
    %v1608 = vadd.f32 0.0, %v1607
    %v1609 = vpop.f32.mrb[0].mxu0
    %1610 = vmatprep.mubr.f32.mxu0 %v1531
    %1611 = vmatmul.mubr.f32.gmra.mrb[0].mxu0 %v1395
    %v1612 = vpop.f32.mrb[0].mxu0
    %v1613 = vadd.f32 0.0, %v1612
    %v1614 = vpop.f32.mrb[0].mxu0
    %1615 = vmatprep.mubr.f32.mxu0 %v1534
    %1616 = vmatmul.mubr.f32.gmra.mrb[0].mxu0 %v1397
    %v1617 = vpop.f32.mrb[0].mxu0
    %v1618 = vadd.f32 0.0, %v1617
    %v1619 = vpop.f32.mrb[0].mxu0
    %1620 = vdwg.mxu0
    %vm1621 = vcmask 220160
    %v1623 = vsel %vm1621, %v1399, 0
    %v1626 = vsel %vm1621, %v1400, 0
    %vm1628 = vcmask 1042432
    %v1630 = vsel %vm1628, %v1521, 0
    %1632 = vmatprep.subr.mxu0 0.0
    %1633 = vmatpush1.msra.mxu0 %v1506
    %1634 = vmatprep.subr.mxu0 0.0
    %1635 = vmatpush1.msra.mxu0 %v1511
    %1636 = vmatprep.subr.mxu0 0.0
    %1637 = vmatpush1.msra.mxu0 %v1516
    %1638 = vmatprep.subr.mxu0 0.0
    %1639 = vmatpush1.msra.mxu0 %v1630
    %1640 = vmatprep.subr.mxu0 0.0
    %1641 = vmatpush1.msra.mxu0 0.0
    %1642 = vmatprep.subr.mxu0 0.0
    %1643 = vmatpush1.msra.mxu0 0.0
    %1644 = vmatprep.subr.mxu0 0.0
    %1645 = vmatpush1.msra.mxu0 0.0
    %1646 = vmatprep.subr.mxu0 0.0
    %1647 = vmatpush1.msra.mxu0 0.0
    %1648 = vmatprep.subr.mxu0 0.0
    %1649 = vmatpush1.msra.mxu0 0.0
    %1650 = vmatprep.subr.mxu0 0.0
    %1651 = vmatpush1.msra.mxu0 0.0
    %1652 = vmatprep.subr.mxu0 0.0
    %1653 = vmatpush1.msra.mxu0 0.0
    %1654 = vmatprep.subr.mxu0 0.0
    %1655 = vmatpush1.msra.mxu0 0.0
    %1656 = vmatprep.subr.mxu0 0.0
    %1657 = vmatpush1.msra.mxu0 0.0
    %1658 = vmatprep.subr.mxu0 0.0
    %1659 = vmatpush1.msra.mxu0 0.0
    %1660 = vmatprep.subr.mxu0 0.0
    %1661 = vmatpush1.msra.mxu0 0.0
    %1662 = vmatprep.subr.mxu0 0.0
    %1663 = vmatpush1.msra.mxu0 0.0
    %1664 = vmatprep.subr.mxu0 0.0
    %1665 = vmatpush1.msra.mxu0 0.0
    %1666 = vmatprep.subr.mxu0 0.0
    %1667 = vmatpush1.msra.mxu0 0.0
    %1668 = vmatprep.subr.mxu0 0.0
    %1669 = vmatpush1.msra.mxu0 0.0
    %1670 = vmatprep.subr.mxu0 0.0
    %1671 = vmatpush1.msra.mxu0 0.0
    %1672 = vmatprep.subr.mxu0 0.0
    %1673 = vmatpush1.msra.mxu0 0.0
    %1674 = vmatprep.subr.mxu0 0.0
    %1675 = vmatpush1.msra.mxu0 0.0
    %1676 = vmatprep.subr.mxu0 0.0
    %1677 = vmatpush1.msra.mxu0 0.0
    %1678 = vmatprep.subr.mxu0 0.0
    %1679 = vmatpush1.msra.mxu0 0.0
    %1680 = vmatprep.subr.mxu0 0.0
    %1681 = vmatpush1.msra.mxu0 0.0
    %1682 = vmatprep.subr.mxu0 0.0
    %1683 = vmatpush1.msra.mxu0 0.0
    %1684 = vmatprep.subr.mxu0 0.0
    %1685 = vmatpush1.msra.mxu0 0.0
    %1686 = vmatprep.subr.mxu0 0.0
    %1687 = vmatpush1.msra.mxu0 0.0
    %1688 = vmatprep.subr.mxu0 0.0
    %1689 = vmatpush1.msra.mxu0 0.0
    %1690 = vmatprep.subr.mxu0 0.0
    %1691 = vmatpush1.msra.mxu0 0.0
    %1692 = vmatprep.subr.mxu0 0.0
    %1693 = vmatpush1.msra.mxu0 0.0
    %1694 = vmatprep.subr.mxu0 0.0
    %1695 = vmatpush1.msra.mxu0 0.0
    %1696 = vmatprep.mubr.f32.mxu0 0.0
    %1697 = vmatmul.mubr.f32.gmra.mrb[0].mxu0 %v1623
    %v1698 = vpop.f32.mrb[0].mxu0
    %v1699 = vadd.f32 0.0, %v1698
    %v1700 = vpop.f32.mrb[0].mxu0
    %1701 = vmatprep.mubr.f32.mxu0 0.0
    %1702 = vmatmul.mubr.f32.gmra.mrb[0].mxu0 %v1626
    %v1703 = vpop.f32.mrb[0].mxu0
    %v1704 = vadd.f32 0.0, %v1703
    %v1705 = vpop.f32.mrb[0].mxu0
    %1706 = vdwg.mxu0
    %v1708 = vsel %vm1628, %v1618, 0
    %1710 = vmatprep.subr.mxu0 0.0
    %1711 = vmatpush1.msra.mxu0 %v1603
    %1712 = vmatprep.subr.mxu0 0.0
    %1713 = vmatpush1.msra.mxu0 %v1608
    %1714 = vmatprep.subr.mxu0 0.0
    %1715 = vmatpush1.msra.mxu0 %v1613
    %1716 = vmatprep.subr.mxu0 0.0
    %1717 = vmatpush1.msra.mxu0 %v1708
    %1718 = vmatprep.subr.mxu0 0.0
    %1719 = vmatpush1.msra.mxu0 0.0
    %1720 = vmatprep.subr.mxu0 0.0
    %1721 = vmatpush1.msra.mxu0 0.0
    %1722 = vmatprep.subr.mxu0 0.0
    %1723 = vmatpush1.msra.mxu0 0.0
    %1724 = vmatprep.subr.mxu0 0.0
    %1725 = vmatpush1.msra.mxu0 0.0
    %1726 = vmatprep.subr.mxu0 0.0
    %1727 = vmatpush1.msra.mxu0 0.0
    %1728 = vmatprep.subr.mxu0 0.0
    %1729 = vmatpush1.msra.mxu0 0.0
    %1730 = vmatprep.subr.mxu0 0.0
    %1731 = vmatpush1.msra.mxu0 0.0
    %1732 = vmatprep.subr.mxu0 0.0
    %1733 = vmatpush1.msra.mxu0 0.0
    %1734 = vmatprep.subr.mxu0 0.0
    %1735 = vmatpush1.msra.mxu0 0.0
    %1736 = vmatprep.subr.mxu0 0.0
    %1737 = vmatpush1.msra.mxu0 0.0
    %1738 = vmatprep.subr.mxu0 0.0
    %1739 = vmatpush1.msra.mxu0 0.0
    %1740 = vmatprep.subr.mxu0 0.0
    %1741 = vmatpush1.msra.mxu0 0.0
    %1742 = vmatprep.subr.mxu0 0.0
    %1743 = vmatpush1.msra.mxu0 0.0
    %1744 = vmatprep.subr.mxu0 0.0
    %1745 = vmatpush1.msra.mxu0 0.0
    %1746 = vmatprep.subr.mxu0 0.0
    %1747 = vmatpush1.msra.mxu0 0.0
    %1748 = vmatprep.subr.mxu0 0.0
    %1749 = vmatpush1.msra.mxu0 0.0
    %1750 = vmatprep.subr.mxu0 0.0
    %1751 = vmatpush1.msra.mxu0 0.0
    %1752 = vmatprep.subr.mxu0 0.0
    %1753 = vmatpush1.msra.mxu0 0.0
    %1754 = vmatprep.subr.mxu0 0.0
    %1755 = vmatpush1.msra.mxu0 0.0
    %1756 = vmatprep.subr.mxu0 0.0
    %1757 = vmatpush1.msra.mxu0 0.0
    %1758 = vmatprep.subr.mxu0 0.0
    %1759 = vmatpush1.msra.mxu0 0.0
    %1760 = vmatprep.subr.mxu0 0.0
    %1761 = vmatpush1.msra.mxu0 0.0
    %1762 = vmatprep.subr.mxu0 0.0
    %1763 = vmatpush1.msra.mxu0 0.0
    %1764 = vmatprep.subr.mxu0 0.0
    %1765 = vmatpush1.msra.mxu0 0.0
    %1766 = vmatprep.subr.mxu0 0.0
    %1767 = vmatpush1.msra.mxu0 0.0
    %1768 = vmatprep.subr.mxu0 0.0
    %1769 = vmatpush1.msra.mxu0 0.0
    %1770 = vmatprep.subr.mxu0 0.0
    %1771 = vmatpush1.msra.mxu0 0.0
    %1772 = vmatprep.subr.mxu0 0.0
    %1773 = vmatpush1.msra.mxu0 0.0
    %1774 = vmatprep.mubr.f32.mxu0 0.0
    %1775 = vmatmul.mubr.f32.gmra.mrb[0].mxu0 %v1623
    %v1776 = vpop.f32.mrb[0].mxu0
    %v1777 = vadd.f32 0.0, %v1776
    %v1778 = vpop.f32.mrb[0].mxu0
    %1779 = vmatprep.mubr.f32.mxu0 0.0
    %1780 = vmatmul.mubr.f32.gmra.mrb[0].mxu0 %v1626
    %v1781 = vpop.f32.mrb[0].mxu0
    %v1782 = vadd.f32 0.0, %v1781
    %v1783 = vpop.f32.mrb[0].mxu0
    %1784 = vdwg.mxu0
    %v1785 = vld [vmem:[%s5] sm:$0xff]
    %v1786 = vld [vmem:[%s5 + $0x8] sm:$0xff]
    %v1787 = vld [vmem:[%s5 + $0x10] sm:$0xff]
    %v1788 = vld [vmem:[%s5 + $0x18] sm:$0xff]
    %v1789 = vld [vmem:[%s5 + $0x20] sm:$0xff]
    %v1790 = vld [vmem:[%s5 + $0x28] sm:$0xff]
    %v1791 = vld [vmem:[%s5 + $0x30] sm:$0xff]
    %v1792 = vld [vmem:[%s5 + $0x38] sm:$0xff]
    %v1793 = vld [vmem:[%s5 + $0x40] sm:$0xff]
    %v1794 = vld [vmem:[%s5 + $0x48] sm:$0xff]
    %v1795 = vld [vmem:[%s5 + $0x50] sm:$0xff]
    %v1796 = vld [vmem:[%s5 + $0x58] sm:$0xff]
    %v1797 = vld [vmem:[%s5 + $0x60] sm:$0xff]
    %v1798 = vld [vmem:[%s5 + $0x68] sm:$0xff]
    %v1799 = vld [vmem:[%s5 + $0x70] sm:$0xff]
    %v1800 = vld [vmem:[%s5 + $0x78] sm:$0xff]
    %v1801 = vld [vmem:[%s5 + $0x80] sm:$0xff]
    %v1802 = vld [vmem:[%s5 + $0x88] sm:$0xff]
    %v1803 = vld [vmem:[%s5 + $0x90] sm:$0xff]
    %v1804 = vld [vmem:[%s5 + $0x98] sm:$0xff]
    %v1805 = vld [vmem:[%s5 + $0xa0] sm:$0xf]
    %v1806 = vld [vmem:[%s5 + $0xa8] sm:$0xf]
    %s1807 = scalar_lea.vmem %s5, 176
    %v1808 = vld [vmem:[%s1807] sm:$0xff]
    %v1809 = vld [vmem:[%s1807 + $0x8] sm:$0xff]
    %v1810 = vld [vmem:[%s1807 + $0x10] sm:$0xff]
    %v1811 = vld [vmem:[%s1807 + $0x18] sm:$0xff]
    %v1812 = vld [vmem:[%s1807 + $0x20] sm:$0xff]
    %v1813 = vld [vmem:[%s1807 + $0x28] sm:$0xff]
    %v1814 = vld [vmem:[%s1807 + $0x30] sm:$0xff]
    %v1815 = vld [vmem:[%s1807 + $0x38] sm:$0xff]
    %v1816 = vld [vmem:[%s1807 + $0x40] sm:$0xff]
    %v1817 = vld [vmem:[%s1807 + $0x48] sm:$0xff]
    %v1818 = vld [vmem:[%s1807 + $0x50] sm:$0xff]
    %v1819 = vld [vmem:[%s1807 + $0x58] sm:$0xff]
    %v1820 = vld [vmem:[%s1807 + $0x60] sm:$0xff]
    %v1821 = vld [vmem:[%s1807 + $0x68] sm:$0xff]
    %v1822 = vld [vmem:[%s1807 + $0x70] sm:$0xff]
    %v1823 = vld [vmem:[%s1807 + $0x78] sm:$0xff]
    %v1824 = vld [vmem:[%s1807 + $0x80] sm:$0xff]
    %v1825 = vld [vmem:[%s1807 + $0x88] sm:$0xff]
    %v1826 = vld [vmem:[%s1807 + $0x90] sm:$0xff]
    %v1827 = vld [vmem:[%s1807 + $0x98] sm:$0xff]
    %v1828 = vld [vmem:[%s1807 + $0xa0] sm:$0xf]
    %v1829 = vld [vmem:[%s1807 + $0xa8] sm:$0xf]
    %v1832 = vrot.slane %v1699, 1
    %v1833 = vrot.slane %v1704, 1
    %v1834 = vsel %vm80, %v1832, %v1833
    %vm1835 = vcmask 687104
    %v1836 = vsel %vm1835, %v1834, 0
    %v1838 = vsel %vm1835, %v1833, 0
    %v1841 = vsel %vm965, %v1828, 0
    %v1844 = vsel %vm965, %v1829, 0
    %1846 = vmatprep.subr.mxu0 %v1809
    %1847 = vmatpush1.msra.mxu0 %v1808
    %1848 = vmatprep.subr.mxu0 %v1811
    %1849 = vmatpush1.msra.mxu0 %v1810
    %1850 = vmatprep.subr.mxu0 %v1813
    %1851 = vmatpush1.msra.mxu0 %v1812
    %1852 = vmatprep.subr.mxu0 %v1815
    %1853 = vmatpush1.msra.mxu0 %v1814
    %1854 = vmatprep.subr.mxu0 %v1817
    %1855 = vmatpush1.msra.mxu0 %v1816
    %1856 = vmatprep.subr.mxu0 %v1819
    %1857 = vmatpush1.msra.mxu0 %v1818
    %1858 = vmatprep.subr.mxu0 %v1821
    %1859 = vmatpush1.msra.mxu0 %v1820
    %1860 = vmatprep.subr.mxu0 %v1823
    %1861 = vmatpush1.msra.mxu0 %v1822
    %1862 = vmatprep.subr.mxu0 %v1825
    %1863 = vmatpush1.msra.mxu0 %v1824
    %1864 = vmatprep.subr.mxu0 %v1827
    %1865 = vmatpush1.msra.mxu0 %v1826
    %1866 = vmatprep.subr.mxu0 %v1844
    %1867 = vmatpush1.msra.mxu0 %v1841
    %1868 = vmatprep.subr.mxu0 0.0
    %1869 = vmatpush1.msra.mxu0 0.0
    %1870 = vmatprep.subr.mxu0 0.0
    %1871 = vmatpush1.msra.mxu0 0.0
    %1872 = vmatprep.subr.mxu0 0.0
    %1873 = vmatpush1.msra.mxu0 0.0
    %1874 = vmatprep.subr.mxu0 0.0
    %1875 = vmatpush1.msra.mxu0 0.0
    %1876 = vmatprep.subr.mxu0 0.0
    %1877 = vmatpush1.msra.mxu0 0.0
    %1878 = vmatprep.subr.mxu0 0.0
    %1879 = vmatpush1.msra.mxu0 0.0
    %1880 = vmatprep.subr.mxu0 0.0
    %1881 = vmatpush1.msra.mxu0 0.0
    %1882 = vmatprep.subr.mxu0 0.0
    %1883 = vmatpush1.msra.mxu0 0.0
    %1884 = vmatprep.subr.mxu0 0.0
    %1885 = vmatpush1.msra.mxu0 0.0
    %1886 = vmatprep.subr.mxu0 0.0
    %1887 = vmatpush1.msra.mxu0 0.0
    %1888 = vmatprep.subr.mxu0 0.0
    %1889 = vmatpush1.msra.mxu0 0.0
    %1890 = vmatprep.subr.mxu0 0.0
    %1891 = vmatpush1.msra.mxu0 0.0
    %1892 = vmatprep.subr.mxu0 0.0
    %1893 = vmatpush1.msra.mxu0 0.0
    %1894 = vmatprep.subr.mxu0 0.0
    %1895 = vmatpush1.msra.mxu0 0.0
    %1896 = vmatprep.subr.mxu0 0.0
    %1897 = vmatpush1.msra.mxu0 0.0
    %1898 = vmatprep.subr.mxu0 0.0
    %1899 = vmatpush1.msra.mxu0 0.0
    %1900 = vmatprep.subr.mxu0 0.0
    %1901 = vmatpush1.msra.mxu0 0.0
    %1902 = vmatprep.subr.mxu0 0.0
    %1903 = vmatpush1.msra.mxu0 0.0
    %1904 = vmatprep.subr.mxu0 0.0
    %1905 = vmatpush1.msra.mxu0 0.0
    %1906 = vmatprep.subr.mxu0 0.0
    %1907 = vmatpush1.msra.mxu0 0.0
    %1908 = vmatprep.subr.mxu0 0.0
    %1909 = vmatpush1.msra.mxu0 0.0
    %1910 = vmatprep.mubr.f32.mxu0 0.0
    %1911 = vmatmul.mubr.f32.gmra.mrb[0].mxu0 %v1836
    %v1912 = vpop.f32.mrb[0].mxu0
    %v1913 = vadd.f32 0.0, %v1912
    %v1914 = vpop.f32.mrb[0].mxu0
    %v1915 = vadd.f32 0.0, %v1914
    %1916 = vmatprep.mubr.f32.mxu0 0.0
    %1917 = vmatmul.mubr.f32.gmra.mrb[0].mxu0 %v1838
    %v1918 = vpop.f32.mrb[0].mxu0
    %v1919 = vadd.f32 0.0, %v1918
    %v1920 = vpop.f32.mrb[0].mxu0
    %v1921 = vadd.f32 0.0, %v1920
    %1922 = vdwg.mxu0
    %v1925 = vrot.slane %v1777, 1
    %v1926 = vrot.slane %v1782, 1
    %v1927 = vsel %vm80, %v1925, %v1926
    %v1928 = vsel %vm1835, %v1927, 0
    %v1930 = vsel %vm1835, %v1926, 0
    %1932 = vmatprep.subr.mxu0 %v1809
    %1933 = vmatpush1.msra.mxu0 %v1808
    %1934 = vmatprep.subr.mxu0 %v1811
    %1935 = vmatpush1.msra.mxu0 %v1810
    %1936 = vmatprep.subr.mxu0 %v1813
    %1937 = vmatpush1.msra.mxu0 %v1812
    %1938 = vmatprep.subr.mxu0 %v1815
    %1939 = vmatpush1.msra.mxu0 %v1814
    %1940 = vmatprep.subr.mxu0 %v1817
    %1941 = vmatpush1.msra.mxu0 %v1816
    %1942 = vmatprep.subr.mxu0 %v1819
    %1943 = vmatpush1.msra.mxu0 %v1818
    %1944 = vmatprep.subr.mxu0 %v1821
    %1945 = vmatpush1.msra.mxu0 %v1820
    %1946 = vmatprep.subr.mxu0 %v1823
    %1947 = vmatpush1.msra.mxu0 %v1822
    %1948 = vmatprep.subr.mxu0 %v1825
    %1949 = vmatpush1.msra.mxu0 %v1824
    %1950 = vmatprep.subr.mxu0 %v1827
    %1951 = vmatpush1.msra.mxu0 %v1826
    %1952 = vmatprep.subr.mxu0 %v1844
    %1953 = vmatpush1.msra.mxu0 %v1841
    %1954 = vmatprep.subr.mxu0 0.0
    %1955 = vmatpush1.msra.mxu0 0.0
    %1956 = vmatprep.subr.mxu0 0.0
    %1957 = vmatpush1.msra.mxu0 0.0
    %1958 = vmatprep.subr.mxu0 0.0
    %1959 = vmatpush1.msra.mxu0 0.0
    %1960 = vmatprep.subr.mxu0 0.0
    %1961 = vmatpush1.msra.mxu0 0.0
    %1962 = vmatprep.subr.mxu0 0.0
    %1963 = vmatpush1.msra.mxu0 0.0
    %1964 = vmatprep.subr.mxu0 0.0
    %1965 = vmatpush1.msra.mxu0 0.0
    %1966 = vmatprep.subr.mxu0 0.0
    %1967 = vmatpush1.msra.mxu0 0.0
    %1968 = vmatprep.subr.mxu0 0.0
    %1969 = vmatpush1.msra.mxu0 0.0
    %1970 = vmatprep.subr.mxu0 0.0
    %1971 = vmatpush1.msra.mxu0 0.0
    %1972 = vmatprep.subr.mxu0 0.0
    %1973 = vmatpush1.msra.mxu0 0.0
    %1974 = vmatprep.subr.mxu0 0.0
    %1975 = vmatpush1.msra.mxu0 0.0
    %1976 = vmatprep.subr.mxu0 0.0
    %1977 = vmatpush1.msra.mxu0 0.0
    %1978 = vmatprep.subr.mxu0 0.0
    %1979 = vmatpush1.msra.mxu0 0.0
    %1980 = vmatprep.subr.mxu0 0.0
    %1981 = vmatpush1.msra.mxu0 0.0
    %1982 = vmatprep.subr.mxu0 0.0
    %1983 = vmatpush1.msra.mxu0 0.0
    %1984 = vmatprep.subr.mxu0 0.0
    %1985 = vmatpush1.msra.mxu0 0.0
    %1986 = vmatprep.subr.mxu0 0.0
    %1987 = vmatpush1.msra.mxu0 0.0
    %1988 = vmatprep.subr.mxu0 0.0
    %1989 = vmatpush1.msra.mxu0 0.0
    %1990 = vmatprep.subr.mxu0 0.0
    %1991 = vmatpush1.msra.mxu0 0.0
    %1992 = vmatprep.subr.mxu0 0.0
    %1993 = vmatpush1.msra.mxu0 0.0
    %1994 = vmatprep.subr.mxu0 0.0
    %1995 = vmatpush1.msra.mxu0 0.0
    %1996 = vmatprep.mubr.f32.mxu0 0.0
    %1997 = vmatmul.mubr.f32.gmra.mrb[0].mxu0 %v1928
    %v1998 = vpop.f32.mrb[0].mxu0
    %v1999 = vadd.f32 0.0, %v1998
    %v2000 = vpop.f32.mrb[0].mxu0
    %v2001 = vadd.f32 0.0, %v2000
    %2002 = vmatprep.mubr.f32.mxu0 0.0
    %2003 = vmatmul.mubr.f32.gmra.mrb[0].mxu0 %v1930
    %v2004 = vpop.f32.mrb[0].mxu0
    %v2005 = vadd.f32 0.0, %v2004
    %v2006 = vpop.f32.mrb[0].mxu0
    %v2007 = vadd.f32 0.0, %v2006
    %2008 = vdwg.mxu0
    %v2009 = vsel %vm1835, %v1699, 0
    %v2011 = vsel %vm1835, %v1704, 0
    %v2014 = vsel %vm965, %v1805, 0
    %v2017 = vsel %vm965, %v1806, 0
    %2019 = vmatprep.subr.mxu0 %v1786
    %2020 = vmatpush1.msra.mxu0 %v1785
    %2021 = vmatprep.subr.mxu0 %v1788
    %2022 = vmatpush1.msra.mxu0 %v1787
    %2023 = vmatprep.subr.mxu0 %v1790
    %2024 = vmatpush1.msra.mxu0 %v1789
    %2025 = vmatprep.subr.mxu0 %v1792
    %2026 = vmatpush1.msra.mxu0 %v1791
    %2027 = vmatprep.subr.mxu0 %v1794
    %2028 = vmatpush1.msra.mxu0 %v1793
    %2029 = vmatprep.subr.mxu0 %v1796
    %2030 = vmatpush1.msra.mxu0 %v1795
    %2031 = vmatprep.subr.mxu0 %v1798
    %2032 = vmatpush1.msra.mxu0 %v1797
    %2033 = vmatprep.subr.mxu0 %v1800
    %2034 = vmatpush1.msra.mxu0 %v1799
    %2035 = vmatprep.subr.mxu0 %v1802
    %2036 = vmatpush1.msra.mxu0 %v1801
    %2037 = vmatprep.subr.mxu0 %v1804
    %2038 = vmatpush1.msra.mxu0 %v1803
    %2039 = vmatprep.subr.mxu0 %v2017
    %2040 = vmatpush1.msra.mxu0 %v2014
    %2041 = vmatprep.subr.mxu0 0.0
    %2042 = vmatpush1.msra.mxu0 0.0
    %2043 = vmatprep.subr.mxu0 0.0
    %2044 = vmatpush1.msra.mxu0 0.0
    %2045 = vmatprep.subr.mxu0 0.0
    %2046 = vmatpush1.msra.mxu0 0.0
    %2047 = vmatprep.subr.mxu0 0.0
    %2048 = vmatpush1.msra.mxu0 0.0
    %2049 = vmatprep.subr.mxu0 0.0
    %2050 = vmatpush1.msra.mxu0 0.0
    %2051 = vmatprep.subr.mxu0 0.0
    %2052 = vmatpush1.msra.mxu0 0.0
    %2053 = vmatprep.subr.mxu0 0.0
    %2054 = vmatpush1.msra.mxu0 0.0
    %2055 = vmatprep.subr.mxu0 0.0
    %2056 = vmatpush1.msra.mxu0 0.0
    %2057 = vmatprep.subr.mxu0 0.0
    %2058 = vmatpush1.msra.mxu0 0.0
    %2059 = vmatprep.subr.mxu0 0.0
    %2060 = vmatpush1.msra.mxu0 0.0
    %2061 = vmatprep.subr.mxu0 0.0
    %2062 = vmatpush1.msra.mxu0 0.0
    %2063 = vmatprep.subr.mxu0 0.0
    %2064 = vmatpush1.msra.mxu0 0.0
    %2065 = vmatprep.subr.mxu0 0.0
    %2066 = vmatpush1.msra.mxu0 0.0
    %2067 = vmatprep.subr.mxu0 0.0
    %2068 = vmatpush1.msra.mxu0 0.0
    %2069 = vmatprep.subr.mxu0 0.0
    %2070 = vmatpush1.msra.mxu0 0.0
    %2071 = vmatprep.subr.mxu0 0.0
    %2072 = vmatpush1.msra.mxu0 0.0
    %2073 = vmatprep.subr.mxu0 0.0
    %2074 = vmatpush1.msra.mxu0 0.0
    %2075 = vmatprep.subr.mxu0 0.0
    %2076 = vmatpush1.msra.mxu0 0.0
    %2077 = vmatprep.subr.mxu0 0.0
    %2078 = vmatpush1.msra.mxu0 0.0
    %2079 = vmatprep.subr.mxu0 0.0
    %2080 = vmatpush1.msra.mxu0 0.0
    %2081 = vmatprep.subr.mxu0 0.0
    %2082 = vmatpush1.msra.mxu0 0.0
    %2083 = vmatprep.mubr.f32.mxu0 0.0
    %2084 = vmatmul.mubr.f32.gmra.mrb[0].mxu0 %v2009
    %v2085 = vpop.f32.mrb[0].mxu0
    %v2086 = vadd.f32 %v1913, %v2085
    %v2087 = vpop.f32.mrb[0].mxu0
    %v2088 = vadd.f32 %v1915, %v2087
    %2089 = vmatprep.mubr.f32.mxu0 0.0
    %2090 = vmatmul.mubr.f32.gmra.mrb[0].mxu0 %v2011
    %v2091 = vpop.f32.mrb[0].mxu0
    %v2092 = vadd.f32 %v1919, %v2091
    %v2093 = vpop.f32.mrb[0].mxu0
    %v2094 = vadd.f32 %v1921, %v2093
    %2095 = vdwg.mxu0
    %v2096 = vsel %vm1835, %v1777, 0
    %v2098 = vsel %vm1835, %v1782, 0
    %2100 = vmatprep.subr.mxu0 %v1786
    %2101 = vmatpush1.msra.mxu0 %v1785
    %2102 = vmatprep.subr.mxu0 %v1788
    %2103 = vmatpush1.msra.mxu0 %v1787
    %2104 = vmatprep.subr.mxu0 %v1790
    %2105 = vmatpush1.msra.mxu0 %v1789
    %2106 = vmatprep.subr.mxu0 %v1792
    %2107 = vmatpush1.msra.mxu0 %v1791
    %2108 = vmatprep.subr.mxu0 %v1794
    %2109 = vmatpush1.msra.mxu0 %v1793
    %2110 = vmatprep.subr.mxu0 %v1796
    %2111 = vmatpush1.msra.mxu0 %v1795
    %2112 = vmatprep.subr.mxu0 %v1798
    %2113 = vmatpush1.msra.mxu0 %v1797
    %2114 = vmatprep.subr.mxu0 %v1800
    %2115 = vmatpush1.msra.mxu0 %v1799
    %2116 = vmatprep.subr.mxu0 %v1802
    %2117 = vmatpush1.msra.mxu0 %v1801
    %2118 = vmatprep.subr.mxu0 %v1804
    %2119 = vmatpush1.msra.mxu0 %v1803
    %2120 = vmatprep.subr.mxu0 %v2017
    %2121 = vmatpush1.msra.mxu0 %v2014
    %2122 = vmatprep.subr.mxu0 0.0
    %2123 = vmatpush1.msra.mxu0 0.0
    %2124 = vmatprep.subr.mxu0 0.0
    %2125 = vmatpush1.msra.mxu0 0.0
    %2126 = vmatprep.subr.mxu0 0.0
    %2127 = vmatpush1.msra.mxu0 0.0
    %2128 = vmatprep.subr.mxu0 0.0
    %2129 = vmatpush1.msra.mxu0 0.0
    %2130 = vmatprep.subr.mxu0 0.0
    %2131 = vmatpush1.msra.mxu0 0.0
    %2132 = vmatprep.subr.mxu0 0.0
    %2133 = vmatpush1.msra.mxu0 0.0
    %2134 = vmatprep.subr.mxu0 0.0
    %2135 = vmatpush1.msra.mxu0 0.0
    %2136 = vmatprep.subr.mxu0 0.0
    %2137 = vmatpush1.msra.mxu0 0.0
    %2138 = vmatprep.subr.mxu0 0.0
    %2139 = vmatpush1.msra.mxu0 0.0
    %2140 = vmatprep.subr.mxu0 0.0
    %2141 = vmatpush1.msra.mxu0 0.0
    %2142 = vmatprep.subr.mxu0 0.0
    %2143 = vmatpush1.msra.mxu0 0.0
    %2144 = vmatprep.subr.mxu0 0.0
    %2145 = vmatpush1.msra.mxu0 0.0
    %2146 = vmatprep.subr.mxu0 0.0
    %2147 = vmatpush1.msra.mxu0 0.0
    %2148 = vmatprep.subr.mxu0 0.0
    %2149 = vmatpush1.msra.mxu0 0.0
    %2150 = vmatprep.subr.mxu0 0.0
    %2151 = vmatpush1.msra.mxu0 0.0
    %2152 = vmatprep.subr.mxu0 0.0
    %2153 = vmatpush1.msra.mxu0 0.0
    %2154 = vmatprep.subr.mxu0 0.0
    %2155 = vmatpush1.msra.mxu0 0.0
    %2156 = vmatprep.subr.mxu0 0.0
    %2157 = vmatpush1.msra.mxu0 0.0
    %2158 = vmatprep.subr.mxu0 0.0
    %2159 = vmatpush1.msra.mxu0 0.0
    %2160 = vmatprep.subr.mxu0 0.0
    %2161 = vmatpush1.msra.mxu0 0.0
    %2162 = vmatprep.subr.mxu0 0.0
    %2163 = vmatpush1.msra.mxu0 0.0
    %2164 = vmatprep.mubr.f32.mxu0 0.0
    %2165 = vmatmul.mubr.f32.gmra.mrb[0].mxu0 %v2096
    %v2166 = vpop.f32.mrb[0].mxu0
    %v2167 = vadd.f32 %v1999, %v2166
    %v2168 = vpop.f32.mrb[0].mxu0
    %v2169 = vadd.f32 %v2001, %v2168
    %2170 = vmatprep.mubr.f32.mxu0 0.0
    %2171 = vmatmul.mubr.f32.gmra.mrb[0].mxu0 %v2098
    %v2172 = vpop.f32.mrb[0].mxu0
    %v2173 = vadd.f32 %v2005, %v2172
    %v2174 = vpop.f32.mrb[0].mxu0
    %v2175 = vadd.f32 %v2007, %v2174
    %2176 = vdwg.mxu0
    %s2177 = scalar_lea.vmem %s5, 352
    %v2178 = vld [vmem:[%s2177] sm:$0xff]
    %v2179 = vld [vmem:[%s2177 + $0x8] sm:$0xff]
    %v2180 = vld [vmem:[%s2177 + $0x10] sm:$0xff]
    %v2181 = vld [vmem:[%s2177 + $0x18] sm:$0xff]
    %v2182 = vld [vmem:[%s2177 + $0x20] sm:$0xff]
    %v2183 = vld [vmem:[%s2177 + $0x28] sm:$0xff]
    %v2184 = vld [vmem:[%s2177 + $0x30] sm:$0xff]
    %v2185 = vld [vmem:[%s2177 + $0x38] sm:$0xff]
    %v2186 = vld [vmem:[%s2177 + $0x40] sm:$0xff]
    %v2187 = vld [vmem:[%s2177 + $0x48] sm:$0xff]
    %v2188 = vld [vmem:[%s2177 + $0x50] sm:$0xff]
    %v2189 = vld [vmem:[%s2177 + $0x58] sm:$0xff]
    %v2190 = vld [vmem:[%s2177 + $0x60] sm:$0xff]
    %v2191 = vld [vmem:[%s2177 + $0x68] sm:$0xff]
    %v2192 = vld [vmem:[%s2177 + $0x70] sm:$0xff]
    %v2193 = vld [vmem:[%s2177 + $0x78] sm:$0xff]
    %v2194 = vld [vmem:[%s2177 + $0x80] sm:$0xff]
    %v2195 = vld [vmem:[%s2177 + $0x88] sm:$0xff]
    %v2196 = vld [vmem:[%s2177 + $0x90] sm:$0xff]
    %v2197 = vld [vmem:[%s2177 + $0x98] sm:$0xff]
    %v2198 = vld [vmem:[%s2177 + $0xa0] sm:$0xf]
    %v2199 = vld [vmem:[%s2177 + $0xa8] sm:$0xf]
    %v2200 = vrot.slane %v1699, 2
    %v2201 = vrot.slane %v1704, 2
    %v2202 = vsel %vm497, %v2200, %v2201
    %v2203 = vsel %vm1835, %v2202, 0
    %v2205 = vsel %vm1835, %v2201, 0
    %v2208 = vsel %vm965, %v2198, 0
    %v2211 = vsel %vm965, %v2199, 0
    %2213 = vmatprep.subr.mxu0 %v2179
    %2214 = vmatpush1.msra.mxu0 %v2178
    %2215 = vmatprep.subr.mxu0 %v2181
    %2216 = vmatpush1.msra.mxu0 %v2180
    %2217 = vmatprep.subr.mxu0 %v2183
    %2218 = vmatpush1.msra.mxu0 %v2182
    %2219 = vmatprep.subr.mxu0 %v2185
    %2220 = vmatpush1.msra.mxu0 %v2184
    %2221 = vmatprep.subr.mxu0 %v2187
    %2222 = vmatpush1.msra.mxu0 %v2186
    %2223 = vmatprep.subr.mxu0 %v2189
    %2224 = vmatpush1.msra.mxu0 %v2188
    %2225 = vmatprep.subr.mxu0 %v2191
    %2226 = vmatpush1.msra.mxu0 %v2190
    %2227 = vmatprep.subr.mxu0 %v2193
    %2228 = vmatpush1.msra.mxu0 %v2192
    %2229 = vmatprep.subr.mxu0 %v2195
    %2230 = vmatpush1.msra.mxu0 %v2194
    %2231 = vmatprep.subr.mxu0 %v2197
    %2232 = vmatpush1.msra.mxu0 %v2196
    %2233 = vmatprep.subr.mxu0 %v2211
    %2234 = vmatpush1.msra.mxu0 %v2208
    %2235 = vmatprep.subr.mxu0 0.0
    %2236 = vmatpush1.msra.mxu0 0.0
    %2237 = vmatprep.subr.mxu0 0.0
    %2238 = vmatpush1.msra.mxu0 0.0
    %2239 = vmatprep.subr.mxu0 0.0
    %2240 = vmatpush1.msra.mxu0 0.0
    %2241 = vmatprep.subr.mxu0 0.0
    %2242 = vmatpush1.msra.mxu0 0.0
    %2243 = vmatprep.subr.mxu0 0.0
    %2244 = vmatpush1.msra.mxu0 0.0
    %2245 = vmatprep.subr.mxu0 0.0
    %2246 = vmatpush1.msra.mxu0 0.0
    %2247 = vmatprep.subr.mxu0 0.0
    %2248 = vmatpush1.msra.mxu0 0.0
    %2249 = vmatprep.subr.mxu0 0.0
    %2250 = vmatpush1.msra.mxu0 0.0
    %2251 = vmatprep.subr.mxu0 0.0
    %2252 = vmatpush1.msra.mxu0 0.0
    %2253 = vmatprep.subr.mxu0 0.0
    %2254 = vmatpush1.msra.mxu0 0.0
    %2255 = vmatprep.subr.mxu0 0.0
    %2256 = vmatpush1.msra.mxu0 0.0
    %2257 = vmatprep.subr.mxu0 0.0
    %2258 = vmatpush1.msra.mxu0 0.0
    %2259 = vmatprep.subr.mxu0 0.0
    %2260 = vmatpush1.msra.mxu0 0.0
    %2261 = vmatprep.subr.mxu0 0.0
    %2262 = vmatpush1.msra.mxu0 0.0
    %2263 = vmatprep.subr.mxu0 0.0
    %2264 = vmatpush1.msra.mxu0 0.0
    %2265 = vmatprep.subr.mxu0 0.0
    %2266 = vmatpush1.msra.mxu0 0.0
    %2267 = vmatprep.subr.mxu0 0.0
    %2268 = vmatpush1.msra.mxu0 0.0
    %2269 = vmatprep.subr.mxu0 0.0
    %2270 = vmatpush1.msra.mxu0 0.0
    %2271 = vmatprep.subr.mxu0 0.0
    %2272 = vmatpush1.msra.mxu0 0.0
    %2273 = vmatprep.subr.mxu0 0.0
    %2274 = vmatpush1.msra.mxu0 0.0
    %2275 = vmatprep.subr.mxu0 0.0
    %2276 = vmatpush1.msra.mxu0 0.0
    %2277 = vmatprep.mubr.f32.mxu0 0.0
    %2278 = vmatmul.mubr.f32.gmra.mrb[0].mxu0 %v2203
    %v2279 = vpop.f32.mrb[0].mxu0
    %v2280 = vadd.f32 0.0, %v2279
    %v2281 = vpop.f32.mrb[0].mxu0
    %v2282 = vadd.f32 0.0, %v2281
    %2283 = vmatprep.mubr.f32.mxu0 0.0
    %2284 = vmatmul.mubr.f32.gmra.mrb[0].mxu0 %v2205
    %v2285 = vpop.f32.mrb[0].mxu0
    %v2286 = vadd.f32 0.0, %v2285
    %v2287 = vpop.f32.mrb[0].mxu0
    %v2288 = vadd.f32 0.0, %v2287
    %2289 = vdwg.mxu0
    %v2290 = vrot.slane %v1777, 2
    %v2291 = vrot.slane %v1782, 2
    %v2292 = vsel %vm497, %v2290, %v2291
    %v2293 = vsel %vm1835, %v2292, 0
    %v2295 = vsel %vm1835, %v2291, 0
    %2297 = vmatprep.subr.mxu0 %v2179
    %2298 = vmatpush1.msra.mxu0 %v2178
    %2299 = vmatprep.subr.mxu0 %v2181
    %2300 = vmatpush1.msra.mxu0 %v2180
    %2301 = vmatprep.subr.mxu0 %v2183
    %2302 = vmatpush1.msra.mxu0 %v2182
    %2303 = vmatprep.subr.mxu0 %v2185
    %2304 = vmatpush1.msra.mxu0 %v2184
    %2305 = vmatprep.subr.mxu0 %v2187
    %2306 = vmatpush1.msra.mxu0 %v2186
    %2307 = vmatprep.subr.mxu0 %v2189
    %2308 = vmatpush1.msra.mxu0 %v2188
    %2309 = vmatprep.subr.mxu0 %v2191
    %2310 = vmatpush1.msra.mxu0 %v2190
    %2311 = vmatprep.subr.mxu0 %v2193
    %2312 = vmatpush1.msra.mxu0 %v2192
    %2313 = vmatprep.subr.mxu0 %v2195
    %2314 = vmatpush1.msra.mxu0 %v2194
    %2315 = vmatprep.subr.mxu0 %v2197
    %2316 = vmatpush1.msra.mxu0 %v2196
    %2317 = vmatprep.subr.mxu0 %v2211
    %2318 = vmatpush1.msra.mxu0 %v2208
    %2319 = vmatprep.subr.mxu0 0.0
    %2320 = vmatpush1.msra.mxu0 0.0
    %2321 = vmatprep.subr.mxu0 0.0
    %2322 = vmatpush1.msra.mxu0 0.0
    %2323 = vmatprep.subr.mxu0 0.0
    %2324 = vmatpush1.msra.mxu0 0.0
    %2325 = vmatprep.subr.mxu0 0.0
    %2326 = vmatpush1.msra.mxu0 0.0
    %2327 = vmatprep.subr.mxu0 0.0
    %2328 = vmatpush1.msra.mxu0 0.0
    %2329 = vmatprep.subr.mxu0 0.0
    %2330 = vmatpush1.msra.mxu0 0.0
    %2331 = vmatprep.subr.mxu0 0.0
    %2332 = vmatpush1.msra.mxu0 0.0
    %2333 = vmatprep.subr.mxu0 0.0
    %2334 = vmatpush1.msra.mxu0 0.0
    %2335 = vmatprep.subr.mxu0 0.0
    %2336 = vmatpush1.msra.mxu0 0.0
    %2337 = vmatprep.subr.mxu0 0.0
    %2338 = vmatpush1.msra.mxu0 0.0
    %2339 = vmatprep.subr.mxu0 0.0
    %2340 = vmatpush1.msra.mxu0 0.0
    %2341 = vmatprep.subr.mxu0 0.0
    %2342 = vmatpush1.msra.mxu0 0.0
    %2343 = vmatprep.subr.mxu0 0.0
    %2344 = vmatpush1.msra.mxu0 0.0
    %2345 = vmatprep.subr.mxu0 0.0
    %2346 = vmatpush1.msra.mxu0 0.0
    %2347 = vmatprep.subr.mxu0 0.0
    %2348 = vmatpush1.msra.mxu0 0.0
    %2349 = vmatprep.subr.mxu0 0.0
    %2350 = vmatpush1.msra.mxu0 0.0
    %2351 = vmatprep.subr.mxu0 0.0
    %2352 = vmatpush1.msra.mxu0 0.0
    %2353 = vmatprep.subr.mxu0 0.0
    %2354 = vmatpush1.msra.mxu0 0.0
    %2355 = vmatprep.subr.mxu0 0.0
    %2356 = vmatpush1.msra.mxu0 0.0
    %2357 = vmatprep.subr.mxu0 0.0
    %2358 = vmatpush1.msra.mxu0 0.0
    %2359 = vmatprep.subr.mxu0 0.0
    %2360 = vmatpush1.msra.mxu0 0.0
    %2361 = vmatprep.mubr.f32.mxu0 0.0
    %2362 = vmatmul.mubr.f32.gmra.mrb[0].mxu0 %v2293
    %v2363 = vpop.f32.mrb[0].mxu0
    %v2364 = vadd.f32 0.0, %v2363
    %v2365 = vpop.f32.mrb[0].mxu0
    %v2366 = vadd.f32 0.0, %v2365
    %2367 = vmatprep.mubr.f32.mxu0 0.0
    %2368 = vmatmul.mubr.f32.gmra.mrb[0].mxu0 %v2295
    %v2369 = vpop.f32.mrb[0].mxu0
    %v2370 = vadd.f32 0.0, %v2369
    %v2371 = vpop.f32.mrb[0].mxu0
    %v2372 = vadd.f32 0.0, %v2371
    %2373 = vdwg.mxu0
    %v2374 = vadd.f32 %v2086, %v2280
    %v2375 = vadd.f32 %v2088, %v2282
    %v2376 = vadd.f32 %v2092, %v2286
    %v2377 = vadd.f32 %v2094, %v2288
    %v2378 = vadd.f32 %v2167, %v2364
    %v2379 = vadd.f32 %v2169, %v2366
    %v2380 = vadd.f32 %v2173, %v2370
    %v2381 = vadd.f32 %v2175, %v2372
    %s2382 = scalar_lea.vmem %s5, 528
    %v2383 = vld [vmem:[%s2382] sm:$0xff]
    %v2384 = vld [vmem:[%s2382 + $0x8] sm:$0xff]
    %v2385 = vld [vmem:[%s2382 + $0x10] sm:$0xff]
    %v2386 = vld [vmem:[%s2382 + $0x18] sm:$0xff]
    %v2387 = vld [vmem:[%s2382 + $0x20] sm:$0xff]
    %v2388 = vld [vmem:[%s2382 + $0x28] sm:$0xff]
    %v2389 = vld [vmem:[%s2382 + $0x30] sm:$0xff]
    %v2390 = vld [vmem:[%s2382 + $0x38] sm:$0xff]
    %v2391 = vld [vmem:[%s2382 + $0x40] sm:$0xff]
    %v2392 = vld [vmem:[%s2382 + $0x48] sm:$0xff]
    %v2393 = vld [vmem:[%s2382 + $0x50] sm:$0xff]
    %v2394 = vld [vmem:[%s2382 + $0x58] sm:$0xff]
    %v2395 = vld [vmem:[%s2382 + $0x60] sm:$0xff]
    %v2396 = vld [vmem:[%s2382 + $0x68] sm:$0xff]
    %v2397 = vld [vmem:[%s2382 + $0x70] sm:$0xff]
    %v2398 = vld [vmem:[%s2382 + $0x78] sm:$0xff]
    %v2399 = vld [vmem:[%s2382 + $0x80] sm:$0xff]
    %v2400 = vld [vmem:[%s2382 + $0x88] sm:$0xff]
    %v2401 = vld [vmem:[%s2382 + $0x90] sm:$0xff]
    %v2402 = vld [vmem:[%s2382 + $0x98] sm:$0xff]
    %v2403 = vld [vmem:[%s2382 + $0xa0] sm:$0xf]
    %v2404 = vld [vmem:[%s2382 + $0xa8] sm:$0xf]
    %v2405 = vrot.slane %v1699, 3
    %v2406 = vrot.slane %v1704, 3
    %v2407 = vsel %vm731, %v2405, %v2406
    %v2408 = vsel %vm1835, %v2407, 0
    %v2410 = vsel %vm1835, %v2406, 0
    %v2413 = vsel %vm965, %v2403, 0
    %v2416 = vsel %vm965, %v2404, 0
    %2418 = vmatprep.subr.mxu0 %v2384
    %2419 = vmatpush1.msra.mxu0 %v2383
    %2420 = vmatprep.subr.mxu0 %v2386
    %2421 = vmatpush1.msra.mxu0 %v2385
    %2422 = vmatprep.subr.mxu0 %v2388
    %2423 = vmatpush1.msra.mxu0 %v2387
    %2424 = vmatprep.subr.mxu0 %v2390
    %2425 = vmatpush1.msra.mxu0 %v2389
    %2426 = vmatprep.subr.mxu0 %v2392
    %2427 = vmatpush1.msra.mxu0 %v2391
    %2428 = vmatprep.subr.mxu0 %v2394
    %2429 = vmatpush1.msra.mxu0 %v2393
    %2430 = vmatprep.subr.mxu0 %v2396
    %2431 = vmatpush1.msra.mxu0 %v2395
    %2432 = vmatprep.subr.mxu0 %v2398
    %2433 = vmatpush1.msra.mxu0 %v2397
    %2434 = vmatprep.subr.mxu0 %v2400
    %2435 = vmatpush1.msra.mxu0 %v2399
    %2436 = vmatprep.subr.mxu0 %v2402
    %2437 = vmatpush1.msra.mxu0 %v2401
    %2438 = vmatprep.subr.mxu0 %v2416
    %2439 = vmatpush1.msra.mxu0 %v2413
    %2440 = vmatprep.subr.mxu0 0.0
    %2441 = vmatpush1.msra.mxu0 0.0
    %2442 = vmatprep.subr.mxu0 0.0
    %2443 = vmatpush1.msra.mxu0 0.0
    %2444 = vmatprep.subr.mxu0 0.0
    %2445 = vmatpush1.msra.mxu0 0.0
    %2446 = vmatprep.subr.mxu0 0.0
    %2447 = vmatpush1.msra.mxu0 0.0
    %2448 = vmatprep.subr.mxu0 0.0
    %2449 = vmatpush1.msra.mxu0 0.0
    %2450 = vmatprep.subr.mxu0 0.0
    %2451 = vmatpush1.msra.mxu0 0.0
    %2452 = vmatprep.subr.mxu0 0.0
    %2453 = vmatpush1.msra.mxu0 0.0
    %2454 = vmatprep.subr.mxu0 0.0
    %2455 = vmatpush1.msra.mxu0 0.0
    %2456 = vmatprep.subr.mxu0 0.0
    %2457 = vmatpush1.msra.mxu0 0.0
    %2458 = vmatprep.subr.mxu0 0.0
    %2459 = vmatpush1.msra.mxu0 0.0
    %2460 = vmatprep.subr.mxu0 0.0
    %2461 = vmatpush1.msra.mxu0 0.0
    %2462 = vmatprep.subr.mxu0 0.0
    %2463 = vmatpush1.msra.mxu0 0.0
    %2464 = vmatprep.subr.mxu0 0.0
    %2465 = vmatpush1.msra.mxu0 0.0
    %2466 = vmatprep.subr.mxu0 0.0
    %2467 = vmatpush1.msra.mxu0 0.0
    %2468 = vmatprep.subr.mxu0 0.0
    %2469 = vmatpush1.msra.mxu0 0.0
    %2470 = vmatprep.subr.mxu0 0.0
    %2471 = vmatpush1.msra.mxu0 0.0
    %2472 = vmatprep.subr.mxu0 0.0
    %2473 = vmatpush1.msra.mxu0 0.0
    %2474 = vmatprep.subr.mxu0 0.0
    %2475 = vmatpush1.msra.mxu0 0.0
    %2476 = vmatprep.subr.mxu0 0.0
    %2477 = vmatpush1.msra.mxu0 0.0
    %2478 = vmatprep.subr.mxu0 0.0
    %2479 = vmatpush1.msra.mxu0 0.0
    %2480 = vmatprep.subr.mxu0 0.0
    %2481 = vmatpush1.msra.mxu0 0.0
    %2482 = vmatprep.mubr.f32.mxu0 0.0
    %2483 = vmatmul.mubr.f32.gmra.mrb[0].mxu0 %v2408
    %v2484 = vpop.f32.mrb[0].mxu0
    %v2485 = vadd.f32 0.0, %v2484
    %v2486 = vpop.f32.mrb[0].mxu0
    %v2487 = vadd.f32 0.0, %v2486
    %2488 = vmatprep.mubr.f32.mxu0 0.0
    %2489 = vmatmul.mubr.f32.gmra.mrb[0].mxu0 %v2410
    %v2490 = vpop.f32.mrb[0].mxu0
    %v2491 = vadd.f32 0.0, %v2490
    %v2492 = vpop.f32.mrb[0].mxu0
    %v2493 = vadd.f32 0.0, %v2492
    %2494 = vdwg.mxu0
    %v2495 = vrot.slane %v1777, 3
    %v2496 = vrot.slane %v1782, 3
    %v2497 = vsel %vm731, %v2495, %v2496
    %v2498 = vsel %vm1835, %v2497, 0
    %v2500 = vsel %vm1835, %v2496, 0
    %2502 = vmatprep.subr.mxu0 %v2384
    %2503 = vmatpush1.msra.mxu0 %v2383
    %2504 = vmatprep.subr.mxu0 %v2386
    %2505 = vmatpush1.msra.mxu0 %v2385
    %2506 = vmatprep.subr.mxu0 %v2388
    %2507 = vmatpush1.msra.mxu0 %v2387
    %2508 = vmatprep.subr.mxu0 %v2390
    %2509 = vmatpush1.msra.mxu0 %v2389
    %2510 = vmatprep.subr.mxu0 %v2392
    %2511 = vmatpush1.msra.mxu0 %v2391
    %2512 = vmatprep.subr.mxu0 %v2394
    %2513 = vmatpush1.msra.mxu0 %v2393
    %2514 = vmatprep.subr.mxu0 %v2396
    %2515 = vmatpush1.msra.mxu0 %v2395
    %2516 = vmatprep.subr.mxu0 %v2398
    %2517 = vmatpush1.msra.mxu0 %v2397
    %2518 = vmatprep.subr.mxu0 %v2400
    %2519 = vmatpush1.msra.mxu0 %v2399
    %2520 = vmatprep.subr.mxu0 %v2402
    %2521 = vmatpush1.msra.mxu0 %v2401
    %2522 = vmatprep.subr.mxu0 %v2416
    %2523 = vmatpush1.msra.mxu0 %v2413
    %2524 = vmatprep.subr.mxu0 0.0
    %2525 = vmatpush1.msra.mxu0 0.0
    %2526 = vmatprep.subr.mxu0 0.0
    %2527 = vmatpush1.msra.mxu0 0.0
    %2528 = vmatprep.subr.mxu0 0.0
    %2529 = vmatpush1.msra.mxu0 0.0
    %2530 = vmatprep.subr.mxu0 0.0
    %2531 = vmatpush1.msra.mxu0 0.0
    %2532 = vmatprep.subr.mxu0 0.0
    %2533 = vmatpush1.msra.mxu0 0.0
    %2534 = vmatprep.subr.mxu0 0.0
    %2535 = vmatpush1.msra.mxu0 0.0
    %2536 = vmatprep.subr.mxu0 0.0
    %2537 = vmatpush1.msra.mxu0 0.0
    %2538 = vmatprep.subr.mxu0 0.0
    %2539 = vmatpush1.msra.mxu0 0.0
    %2540 = vmatprep.subr.mxu0 0.0
    %2541 = vmatpush1.msra.mxu0 0.0
    %2542 = vmatprep.subr.mxu0 0.0
    %2543 = vmatpush1.msra.mxu0 0.0
    %2544 = vmatprep.subr.mxu0 0.0
    %2545 = vmatpush1.msra.mxu0 0.0
    %2546 = vmatprep.subr.mxu0 0.0
    %2547 = vmatpush1.msra.mxu0 0.0
    %2548 = vmatprep.subr.mxu0 0.0
    %2549 = vmatpush1.msra.mxu0 0.0
    %2550 = vmatprep.subr.mxu0 0.0
    %2551 = vmatpush1.msra.mxu0 0.0
    %2552 = vmatprep.subr.mxu0 0.0
    %2553 = vmatpush1.msra.mxu0 0.0
    %2554 = vmatprep.subr.mxu0 0.0
    %2555 = vmatpush1.msra.mxu0 0.0
    %2556 = vmatprep.subr.mxu0 0.0
    %2557 = vmatpush1.msra.mxu0 0.0
    %2558 = vmatprep.subr.mxu0 0.0
    %2559 = vmatpush1.msra.mxu0 0.0
    %2560 = vmatprep.subr.mxu0 0.0
    %2561 = vmatpush1.msra.mxu0 0.0
    %2562 = vmatprep.subr.mxu0 0.0
    %2563 = vmatpush1.msra.mxu0 0.0
    %2564 = vmatprep.subr.mxu0 0.0
    %2565 = vmatpush1.msra.mxu0 0.0
    %2566 = vmatprep.mubr.f32.mxu0 0.0
    %2567 = vmatmul.mubr.f32.gmra.mrb[0].mxu0 %v2498
    %v2568 = vpop.f32.mrb[0].mxu0
    %v2569 = vadd.f32 0.0, %v2568
    %v2570 = vpop.f32.mrb[0].mxu0
    %v2571 = vadd.f32 0.0, %v2570
    %2572 = vmatprep.mubr.f32.mxu0 0.0
    %2573 = vmatmul.mubr.f32.gmra.mrb[0].mxu0 %v2500
    %v2574 = vpop.f32.mrb[0].mxu0
    %v2575 = vadd.f32 0.0, %v2574
    %v2576 = vpop.f32.mrb[0].mxu0
    %v2577 = vadd.f32 0.0, %v2576
    %2578 = vdwg.mxu0
    %v2579 = vadd.f32 %v2374, %v2485
    %v2580 = vadd.f32 %v2375, %v2487
    %v2581 = vadd.f32 %v2376, %v2491
    %v2582 = vadd.f32 %v2377, %v2493
    %v2583 = vadd.f32 %v2378, %v2569
    %v2584 = vadd.f32 %v2379, %v2571
    %v2585 = vadd.f32 %v2380, %v2575
    %v2586 = vadd.f32 %v2381, %v2577
    %s2587 = scalar_lea.vmem %s5, 704
    %v2588 = vld [vmem:[%s2587] sm:$0xff]
    %v2589 = vld [vmem:[%s2587 + $0x8] sm:$0xff]
    %v2590 = vld [vmem:[%s2587 + $0x10] sm:$0xff]
    %v2591 = vld [vmem:[%s2587 + $0x18] sm:$0xff]
    %v2592 = vld [vmem:[%s2587 + $0x20] sm:$0xff]
    %v2593 = vld [vmem:[%s2587 + $0x28] sm:$0xff]
    %v2594 = vld [vmem:[%s2587 + $0x30] sm:$0xff]
    %v2595 = vld [vmem:[%s2587 + $0x38] sm:$0xff]
    %v2596 = vld [vmem:[%s2587 + $0x40] sm:$0xff]
    %v2597 = vld [vmem:[%s2587 + $0x48] sm:$0xff]
    %v2598 = vld [vmem:[%s2587 + $0x50] sm:$0xff]
    %v2599 = vld [vmem:[%s2587 + $0x58] sm:$0xff]
    %v2600 = vld [vmem:[%s2587 + $0x60] sm:$0xff]
    %v2601 = vld [vmem:[%s2587 + $0x68] sm:$0xff]
    %v2602 = vld [vmem:[%s2587 + $0x70] sm:$0xff]
    %v2603 = vld [vmem:[%s2587 + $0x78] sm:$0xff]
    %v2604 = vld [vmem:[%s2587 + $0x80] sm:$0xff]
    %v2605 = vld [vmem:[%s2587 + $0x88] sm:$0xff]
    %v2606 = vld [vmem:[%s2587 + $0x90] sm:$0xff]
    %v2607 = vld [vmem:[%s2587 + $0x98] sm:$0xff]
    %v2608 = vld [vmem:[%s2587 + $0xa0] sm:$0xf]
    %v2609 = vld [vmem:[%s2587 + $0xa8] sm:$0xf]
    %v2610 = vrot.slane %v1699, 4
    %v2611 = vrot.slane %v1704, 4
    %v2612 = vsel %vm965, %v2610, %v2611
    %v2613 = vsel %vm1835, %v2612, 0
    %v2615 = vsel %vm1835, %v2611, 0
    %v2618 = vsel %vm965, %v2608, 0
    %v2621 = vsel %vm965, %v2609, 0
    %2623 = vmatprep.subr.mxu0 %v2589
    %2624 = vmatpush1.msra.mxu0 %v2588
    %2625 = vmatprep.subr.mxu0 %v2591
    %2626 = vmatpush1.msra.mxu0 %v2590
    %2627 = vmatprep.subr.mxu0 %v2593
    %2628 = vmatpush1.msra.mxu0 %v2592
    %2629 = vmatprep.subr.mxu0 %v2595
    %2630 = vmatpush1.msra.mxu0 %v2594
    %2631 = vmatprep.subr.mxu0 %v2597
    %2632 = vmatpush1.msra.mxu0 %v2596
    %2633 = vmatprep.subr.mxu0 %v2599
    %2634 = vmatpush1.msra.mxu0 %v2598
    %2635 = vmatprep.subr.mxu0 %v2601
    %2636 = vmatpush1.msra.mxu0 %v2600
    %2637 = vmatprep.subr.mxu0 %v2603
    %2638 = vmatpush1.msra.mxu0 %v2602
    %2639 = vmatprep.subr.mxu0 %v2605
    %2640 = vmatpush1.msra.mxu0 %v2604
    %2641 = vmatprep.subr.mxu0 %v2607
    %2642 = vmatpush1.msra.mxu0 %v2606
    %2643 = vmatprep.subr.mxu0 %v2621
    %2644 = vmatpush1.msra.mxu0 %v2618
    %2645 = vmatprep.subr.mxu0 0.0
    %2646 = vmatpush1.msra.mxu0 0.0
    %2647 = vmatprep.subr.mxu0 0.0
    %2648 = vmatpush1.msra.mxu0 0.0
    %2649 = vmatprep.subr.mxu0 0.0
    %2650 = vmatpush1.msra.mxu0 0.0
    %2651 = vmatprep.subr.mxu0 0.0
    %2652 = vmatpush1.msra.mxu0 0.0
    %2653 = vmatprep.subr.mxu0 0.0
    %2654 = vmatpush1.msra.mxu0 0.0
    %2655 = vmatprep.subr.mxu0 0.0
    %2656 = vmatpush1.msra.mxu0 0.0
    %2657 = vmatprep.subr.mxu0 0.0
    %2658 = vmatpush1.msra.mxu0 0.0
    %2659 = vmatprep.subr.mxu0 0.0
    %2660 = vmatpush1.msra.mxu0 0.0
    %2661 = vmatprep.subr.mxu0 0.0
    %2662 = vmatpush1.msra.mxu0 0.0
    %2663 = vmatprep.subr.mxu0 0.0
    %2664 = vmatpush1.msra.mxu0 0.0
    %2665 = vmatprep.subr.mxu0 0.0
    %2666 = vmatpush1.msra.mxu0 0.0
    %2667 = vmatprep.subr.mxu0 0.0
    %2668 = vmatpush1.msra.mxu0 0.0
    %2669 = vmatprep.subr.mxu0 0.0
    %2670 = vmatpush1.msra.mxu0 0.0
    %2671 = vmatprep.subr.mxu0 0.0
    %2672 = vmatpush1.msra.mxu0 0.0
    %2673 = vmatprep.subr.mxu0 0.0
    %2674 = vmatpush1.msra.mxu0 0.0
    %2675 = vmatprep.subr.mxu0 0.0
    %2676 = vmatpush1.msra.mxu0 0.0
    %2677 = vmatprep.subr.mxu0 0.0
    %2678 = vmatpush1.msra.mxu0 0.0
    %2679 = vmatprep.subr.mxu0 0.0
    %2680 = vmatpush1.msra.mxu0 0.0
    %2681 = vmatprep.subr.mxu0 0.0
    %2682 = vmatpush1.msra.mxu0 0.0
    %2683 = vmatprep.subr.mxu0 0.0
    %2684 = vmatpush1.msra.mxu0 0.0
    %2685 = vmatprep.subr.mxu0 0.0
    %2686 = vmatpush1.msra.mxu0 0.0
    %2687 = vmatprep.mubr.f32.mxu0 0.0
    %2688 = vmatmul.mubr.f32.gmra.mrb[0].mxu0 %v2613
    %v2689 = vpop.f32.mrb[0].mxu0
    %v2690 = vadd.f32 0.0, %v2689
    %v2691 = vpop.f32.mrb[0].mxu0
    %v2692 = vadd.f32 0.0, %v2691
    %2693 = vmatprep.mubr.f32.mxu0 0.0
    %2694 = vmatmul.mubr.f32.gmra.mrb[0].mxu0 %v2615
    %v2695 = vpop.f32.mrb[0].mxu0
    %v2696 = vadd.f32 0.0, %v2695
    %v2697 = vpop.f32.mrb[0].mxu0
    %v2698 = vadd.f32 0.0, %v2697
    %2699 = vdwg.mxu0
    %v2700 = vrot.slane %v1777, 4
    %v2701 = vrot.slane %v1782, 4
    %v2702 = vsel %vm965, %v2700, %v2701
    %v2703 = vsel %vm1835, %v2702, 0
    %v2705 = vsel %vm1835, %v2701, 0
    %2707 = vmatprep.subr.mxu0 %v2589
    %2708 = vmatpush1.msra.mxu0 %v2588
    %2709 = vmatprep.subr.mxu0 %v2591
    %2710 = vmatpush1.msra.mxu0 %v2590
    %2711 = vmatprep.subr.mxu0 %v2593
    %2712 = vmatpush1.msra.mxu0 %v2592
    %2713 = vmatprep.subr.mxu0 %v2595
    %2714 = vmatpush1.msra.mxu0 %v2594
    %2715 = vmatprep.subr.mxu0 %v2597
    %2716 = vmatpush1.msra.mxu0 %v2596
    %2717 = vmatprep.subr.mxu0 %v2599
    %2718 = vmatpush1.msra.mxu0 %v2598
    %2719 = vmatprep.subr.mxu0 %v2601
    %2720 = vmatpush1.msra.mxu0 %v2600
    %2721 = vmatprep.subr.mxu0 %v2603
    %2722 = vmatpush1.msra.mxu0 %v2602
    %2723 = vmatprep.subr.mxu0 %v2605
    %2724 = vmatpush1.msra.mxu0 %v2604
    %2725 = vmatprep.subr.mxu0 %v2607
    %2726 = vmatpush1.msra.mxu0 %v2606
    %2727 = vmatprep.subr.mxu0 %v2621
    %2728 = vmatpush1.msra.mxu0 %v2618
    %2729 = vmatprep.subr.mxu0 0.0
    %2730 = vmatpush1.msra.mxu0 0.0
    %2731 = vmatprep.subr.mxu0 0.0
    %2732 = vmatpush1.msra.mxu0 0.0
    %2733 = vmatprep.subr.mxu0 0.0
    %2734 = vmatpush1.msra.mxu0 0.0
    %2735 = vmatprep.subr.mxu0 0.0
    %2736 = vmatpush1.msra.mxu0 0.0
    %2737 = vmatprep.subr.mxu0 0.0
    %2738 = vmatpush1.msra.mxu0 0.0
    %2739 = vmatprep.subr.mxu0 0.0
    %2740 = vmatpush1.msra.mxu0 0.0
    %2741 = vmatprep.subr.mxu0 0.0
    %2742 = vmatpush1.msra.mxu0 0.0
    %2743 = vmatprep.subr.mxu0 0.0
    %2744 = vmatpush1.msra.mxu0 0.0
    %2745 = vmatprep.subr.mxu0 0.0
    %2746 = vmatpush1.msra.mxu0 0.0
    %2747 = vmatprep.subr.mxu0 0.0
    %2748 = vmatpush1.msra.mxu0 0.0
    %2749 = vmatprep.subr.mxu0 0.0
    %2750 = vmatpush1.msra.mxu0 0.0
    %2751 = vmatprep.subr.mxu0 0.0
    %2752 = vmatpush1.msra.mxu0 0.0
    %2753 = vmatprep.subr.mxu0 0.0
    %2754 = vmatpush1.msra.mxu0 0.0
    %2755 = vmatprep.subr.mxu0 0.0
    %2756 = vmatpush1.msra.mxu0 0.0
    %2757 = vmatprep.subr.mxu0 0.0
    %2758 = vmatpush1.msra.mxu0 0.0
    %2759 = vmatprep.subr.mxu0 0.0
    %2760 = vmatpush1.msra.mxu0 0.0
    %2761 = vmatprep.subr.mxu0 0.0
    %2762 = vmatpush1.msra.mxu0 0.0
    %2763 = vmatprep.subr.mxu0 0.0
    %2764 = vmatpush1.msra.mxu0 0.0
    %2765 = vmatprep.subr.mxu0 0.0
    %2766 = vmatpush1.msra.mxu0 0.0
    %2767 = vmatprep.subr.mxu0 0.0
    %2768 = vmatpush1.msra.mxu0 0.0
    %2769 = vmatprep.subr.mxu0 0.0
    %2770 = vmatpush1.msra.mxu0 0.0
    %2771 = vmatprep.mubr.f32.mxu0 0.0
    %2772 = vmatmul.mubr.f32.gmra.mrb[0].mxu0 %v2703
    %v2773 = vpop.f32.mrb[0].mxu0
    %v2774 = vadd.f32 0.0, %v2773
    %v2775 = vpop.f32.mrb[0].mxu0
    %v2776 = vadd.f32 0.0, %v2775
    %2777 = vmatprep.mubr.f32.mxu0 0.0
    %2778 = vmatmul.mubr.f32.gmra.mrb[0].mxu0 %v2705
    %v2779 = vpop.f32.mrb[0].mxu0
    %v2780 = vadd.f32 0.0, %v2779
    %v2781 = vpop.f32.mrb[0].mxu0
    %v2782 = vadd.f32 0.0, %v2781
    %2783 = vdwg.mxu0
    %v2784 = vadd.f32 %v2579, %v2690
    %v2785 = vadd.f32 %v2580, %v2692
    %v2786 = vadd.f32 %v2581, %v2696
    %v2787 = vadd.f32 %v2582, %v2698
    %v2788 = vadd.f32 %v2583, %v2774
    %v2789 = vadd.f32 %v2584, %v2776
    %v2790 = vadd.f32 %v2585, %v2780
    %v2791 = vadd.f32 %v2586, %v2782
    %v2792 = vld [vmem:[%s6] sm:$0x3]
    %v2794 = vlaneseq
    %v2795 = vshrl.u32 %v2794, 7
    %v2796 = vsub.s32 0, %v2795
    %v2797 = vrot.slane %v2792, %v2796
    %v2798 = vlaneseq
    %v2799 = vshrl.u32 %v2798, 7
    %v2800 = vsub.s32 1, %v2799
    %v2801 = vrot.slane %v2792, %v2800
    %v2804 = vadd.f32 %v2784, %v2797
    %v2805 = vadd.f32 %v2785, %v2801
    %v2806 = vadd.f32 %v2786, %v2797
    %v2807 = vadd.f32 %v2787, %v2801
    %v2808 = vadd.f32 %v2788, %v2797
    %v2809 = vadd.f32 %v2789, %v2801
    %v2810 = vadd.f32 %v2790, %v2797
    %v2811 = vadd.f32 %v2791, %v2801
    %v2812 = vmax.f32 %v2804, 0.0
    %v2813 = vmax.f32 %v2805, 0.0
    %v2814 = vmax.f32 %v2806, 0.0
    %v2815 = vmax.f32 %v2807, 0.0
    %v2816 = vmax.f32 %v2808, 0.0
    %v2817 = vmax.f32 %v2809, 0.0
    %v2818 = vmax.f32 %v2810, 0.0
    %v2819 = vmax.f32 %v2811, 0.0
    %v2828 = vrot.slane %v2812, 1
    %v2829 = vrot.slane %v2814, 1
    %v2830 = vsel %vm80, %v2828, %v2829
    %v2831 = vrot.slane %v2813, 1
    %v2832 = vrot.slane %v2815, 1
    %v2833 = vsel %vm80, %v2831, %v2832
    %v2834 = vrot.slane %v2816, 1
    %v2835 = vrot.slane %v2818, 1
    %v2836 = vsel %vm80, %v2834, %v2835
    %v2837 = vrot.slane %v2817, 1
    %v2838 = vrot.slane %v2819, 1
    %v2839 = vsel %vm80, %v2837, %v2838
    %v2848 = vmax.f32 %v2812, %v2830
    %v2849 = vmax.f32 %v2813, %v2833
    %v2850 = vmax.f32 %v2814, %v2829
    %v2851 = vmax.f32 %v2815, %v2832
    %v2852 = vmax.f32 %v2816, %v2836
    %v2853 = vmax.f32 %v2817, %v2839
    %v2854 = vmax.f32 %v2818, %v2835
    %v2855 = vmax.f32 %v2819, %v2838
    %2864 = vrot.lane.b32.xlu0 %v2848, 112
    %v2865 = vpop.permute.xlu0 %2864
    %2866 = vrot.lane.b32.xlu0 %v2849, 112
    %v2867 = vpop.permute.xlu0 %2866
    %2868 = vrot.lane.b32.xlu0 %v2850, 112
    %v2869 = vpop.permute.xlu0 %2868
    %2870 = vrot.lane.b32.xlu0 %v2851, 112
    %v2871 = vpop.permute.xlu0 %2870
    %2872 = vrot.lane.b32.xlu0 %v2852, 112
    %v2873 = vpop.permute.xlu0 %2872
    %2874 = vrot.lane.b32.xlu0 %v2853, 112
    %v2875 = vpop.permute.xlu0 %2874
    %2876 = vrot.lane.b32.xlu0 %v2854, 112
    %v2877 = vpop.permute.xlu0 %2876
    %2878 = vrot.lane.b32.xlu0 %v2855, 112
    %v2879 = vpop.permute.xlu0 %2878
    %vm2880 = vcmask 916480
    %v2881 = vsel %vm2880, %v2865, %v2867
    %v2882 = vsel %vm2880, %v2869, %v2871
    %v2883 = vsel %vm2880, %v2873, %v2875
    %v2884 = vsel %vm2880, %v2877, %v2879
    %v2893 = vmax.f32 %v2848, %v2881
    %v2894 = vmax.f32 %v2849, %v2867
    %v2895 = vmax.f32 %v2850, %v2882
    %v2896 = vmax.f32 %v2851, %v2871
    %v2897 = vmax.f32 %v2852, %v2883
    %v2898 = vmax.f32 %v2853, %v2875
    %v2899 = vmax.f32 %v2854, %v2884
    %v2900 = vmax.f32 %v2855, %v2879
    %v2901 = vld [vmem:[%s8] sm:$0x1f]
    %v2902 = vld [vmem:[%s7] sm:$0xff]
    %v2903 = vld [vmem:[%s7 + $0x8] sm:$0xff]
    %v2904 = vld [vmem:[%s7 + $0x10] sm:$0xff]
    %v2905 = vld [vmem:[%s7 + $0x18] sm:$0xff]
    %v2906 = vld [vmem:[%s7 + $0x20] sm:$0xff]
    %v2907 = vld [vmem:[%s7 + $0x28] sm:$0xff]
    %v2908 = vld [vmem:[%s7 + $0x30] sm:$0xff]
    %v2909 = vld [vmem:[%s7 + $0x38] sm:$0xff]
    %v2910 = vld [vmem:[%s7 + $0x40] sm:$0xff]
    %v2911 = vld [vmem:[%s7 + $0x48] sm:$0xff]
    %v2912 = vld [vmem:[%s7 + $0x50] sm:$0xff]
    %v2913 = vld [vmem:[%s7 + $0x58] sm:$0xff]
    %v2914 = vld [vmem:[%s7 + $0x60] sm:$0xff]
    %v2915 = vld [vmem:[%s7 + $0x68] sm:$0xff]
    %v2916 = vld [vmem:[%s7 + $0x70] sm:$0xff]
    %v2917 = vld [vmem:[%s7 + $0x78] sm:$0xff]
    %v2918 = vld [vmem:[%s7 + $0x80] sm:$0xff]
    %v2919 = vld [vmem:[%s7 + $0x88] sm:$0xff]
    %vm2920 = vcmask 130048
    %v2922 = vsel %vm2920, %v2894, 0
    %v2925 = vsel %vm2920, %v2896, 0
    %2927 = vmatprep.subr.mxu0 0.0
    %2928 = vmatpush1.msra.mxu0 %v2902
    %2929 = vmatprep.subr.mxu0 0.0
    %2930 = vmatpush1.msra.mxu0 %v2903
    %2931 = vmatprep.subr.mxu0 0.0
    %2932 = vmatpush1.msra.mxu0 %v2904
    %2933 = vmatprep.subr.mxu0 0.0
    %2934 = vmatpush1.msra.mxu0 %v2905
    %2935 = vmatprep.subr.mxu0 0.0
    %2936 = vmatpush1.msra.mxu0 %v2906
    %2937 = vmatprep.subr.mxu0 0.0
    %2938 = vmatpush1.msra.mxu0 %v2907
    %2939 = vmatprep.subr.mxu0 0.0
    %2940 = vmatpush1.msra.mxu0 %v2908
    %2941 = vmatprep.subr.mxu0 0.0
    %2942 = vmatpush1.msra.mxu0 %v2909
    %2943 = vmatprep.subr.mxu0 0.0
    %2944 = vmatpush1.msra.mxu0 %v2910
    %2945 = vmatprep.subr.mxu0 0.0
    %2946 = vmatpush1.msra.mxu0 %v2911
    %2947 = vmatprep.subr.mxu0 0.0
    %2948 = vmatpush1.msra.mxu0 %v2912
    %2949 = vmatprep.subr.mxu0 0.0
    %2950 = vmatpush1.msra.mxu0 %v2913
    %2951 = vmatprep.subr.mxu0 0.0
    %2952 = vmatpush1.msra.mxu0 %v2914
    %2953 = vmatprep.subr.mxu0 0.0
    %2954 = vmatpush1.msra.mxu0 %v2915
    %2955 = vmatprep.subr.mxu0 0.0
    %2956 = vmatpush1.msra.mxu0 %v2916
    %2957 = vmatprep.subr.mxu0 0.0
    %2958 = vmatpush1.msra.mxu0 %v2917
    %2959 = vmatprep.subr.mxu0 0.0
    %2960 = vmatpush1.msra.mxu0 %v2918
    %2961 = vmatprep.subr.mxu0 0.0
    %2962 = vmatpush1.msra.mxu0 %v2919
    %2963 = vmatprep.subr.mxu0 0.0
    %2964 = vmatpush1.msra.mxu0 0.0
    %2965 = vmatprep.subr.mxu0 0.0
    %2966 = vmatpush1.msra.mxu0 0.0
    %2967 = vmatprep.subr.mxu0 0.0
    %2968 = vmatpush1.msra.mxu0 0.0
    %2969 = vmatprep.subr.mxu0 0.0
    %2970 = vmatpush1.msra.mxu0 0.0
    %2971 = vmatprep.subr.mxu0 0.0
    %2972 = vmatpush1.msra.mxu0 0.0
    %2973 = vmatprep.subr.mxu0 0.0
    %2974 = vmatpush1.msra.mxu0 0.0
    %2975 = vmatprep.subr.mxu0 0.0
    %2976 = vmatpush1.msra.mxu0 0.0
    %2977 = vmatprep.subr.mxu0 0.0
    %2978 = vmatpush1.msra.mxu0 0.0
    %2979 = vmatprep.subr.mxu0 0.0
    %2980 = vmatpush1.msra.mxu0 0.0
    %2981 = vmatprep.subr.mxu0 0.0
    %2982 = vmatpush1.msra.mxu0 0.0
    %2983 = vmatprep.subr.mxu0 0.0
    %2984 = vmatpush1.msra.mxu0 0.0
    %2985 = vmatprep.subr.mxu0 0.0
    %2986 = vmatpush1.msra.mxu0 0.0
    %2987 = vmatprep.subr.mxu0 0.0
    %2988 = vmatpush1.msra.mxu0 0.0
    %2989 = vmatprep.subr.mxu0 0.0
    %2990 = vmatpush1.msra.mxu0 0.0
    %2991 = vmatprep.mubr.f32.mxu0 %v2922
    %2992 = vmatmul.mubr.f32.gmra.mrb[0].mxu0 %v2893
    %v2993 = vpop.f32.mrb[0].mxu0
    %v2994 = vadd.f32 0.0, %v2993
    %v2995 = vpop.f32.mrb[0].mxu0
    %2996 = vmatprep.mubr.f32.mxu0 %v2925
    %2997 = vmatmul.mubr.f32.gmra.mrb[0].mxu0 %v2895
    %v2998 = vpop.f32.mrb[0].mxu0
    %v2999 = vadd.f32 0.0, %v2998
    %v3000 = vpop.f32.mrb[0].mxu0
    %3001 = vdwg.mxu0
    %v3003 = vsel %vm2920, %v2898, 0
    %v3006 = vsel %vm2920, %v2900, 0
    %3008 = vmatprep.subr.mxu0 0.0
    %3009 = vmatpush1.msra.mxu0 %v2902
    %3010 = vmatprep.subr.mxu0 0.0
    %3011 = vmatpush1.msra.mxu0 %v2903
    %3012 = vmatprep.subr.mxu0 0.0
    %3013 = vmatpush1.msra.mxu0 %v2904
    %3014 = vmatprep.subr.mxu0 0.0
    %3015 = vmatpush1.msra.mxu0 %v2905
    %3016 = vmatprep.subr.mxu0 0.0
    %3017 = vmatpush1.msra.mxu0 %v2906
    %3018 = vmatprep.subr.mxu0 0.0
    %3019 = vmatpush1.msra.mxu0 %v2907
    %3020 = vmatprep.subr.mxu0 0.0
    %3021 = vmatpush1.msra.mxu0 %v2908
    %3022 = vmatprep.subr.mxu0 0.0
    %3023 = vmatpush1.msra.mxu0 %v2909
    %3024 = vmatprep.subr.mxu0 0.0
    %3025 = vmatpush1.msra.mxu0 %v2910
    %3026 = vmatprep.subr.mxu0 0.0
    %3027 = vmatpush1.msra.mxu0 %v2911
    %3028 = vmatprep.subr.mxu0 0.0
    %3029 = vmatpush1.msra.mxu0 %v2912
    %3030 = vmatprep.subr.mxu0 0.0
    %3031 = vmatpush1.msra.mxu0 %v2913
    %3032 = vmatprep.subr.mxu0 0.0
    %3033 = vmatpush1.msra.mxu0 %v2914
    %3034 = vmatprep.subr.mxu0 0.0
    %3035 = vmatpush1.msra.mxu0 %v2915
    %3036 = vmatprep.subr.mxu0 0.0
    %3037 = vmatpush1.msra.mxu0 %v2916
    %3038 = vmatprep.subr.mxu0 0.0
    %3039 = vmatpush1.msra.mxu0 %v2917
    %3040 = vmatprep.subr.mxu0 0.0
    %3041 = vmatpush1.msra.mxu0 %v2918
    %3042 = vmatprep.subr.mxu0 0.0
    %3043 = vmatpush1.msra.mxu0 %v2919
    %3044 = vmatprep.subr.mxu0 0.0
    %3045 = vmatpush1.msra.mxu0 0.0
    %3046 = vmatprep.subr.mxu0 0.0
    %3047 = vmatpush1.msra.mxu0 0.0
    %3048 = vmatprep.subr.mxu0 0.0
    %3049 = vmatpush1.msra.mxu0 0.0
    %3050 = vmatprep.subr.mxu0 0.0
    %3051 = vmatpush1.msra.mxu0 0.0
    %3052 = vmatprep.subr.mxu0 0.0
    %3053 = vmatpush1.msra.mxu0 0.0
    %3054 = vmatprep.subr.mxu0 0.0
    %3055 = vmatpush1.msra.mxu0 0.0
    %3056 = vmatprep.subr.mxu0 0.0
    %3057 = vmatpush1.msra.mxu0 0.0
    %3058 = vmatprep.subr.mxu0 0.0
    %3059 = vmatpush1.msra.mxu0 0.0
    %3060 = vmatprep.subr.mxu0 0.0
    %3061 = vmatpush1.msra.mxu0 0.0
    %3062 = vmatprep.subr.mxu0 0.0
    %3063 = vmatpush1.msra.mxu0 0.0
    %3064 = vmatprep.subr.mxu0 0.0
    %3065 = vmatpush1.msra.mxu0 0.0
    %3066 = vmatprep.subr.mxu0 0.0
    %3067 = vmatpush1.msra.mxu0 0.0
    %3068 = vmatprep.subr.mxu0 0.0
    %3069 = vmatpush1.msra.mxu0 0.0
    %3070 = vmatprep.subr.mxu0 0.0
    %3071 = vmatpush1.msra.mxu0 0.0
    %3072 = vmatprep.mubr.f32.mxu0 %v3003
    %3073 = vmatmul.mubr.f32.gmra.mrb[0].mxu0 %v2897
    %v3074 = vpop.f32.mrb[0].mxu0
    %v3075 = vadd.f32 0.0, %v3074
    %v3076 = vpop.f32.mrb[0].mxu0
    %3077 = vmatprep.mubr.f32.mxu0 %v3006
    %3078 = vmatmul.mubr.f32.gmra.mrb[0].mxu0 %v2899
    %v3079 = vpop.f32.mrb[0].mxu0
    %v3080 = vadd.f32 0.0, %v3079
    %v3081 = vpop.f32.mrb[0].mxu0
    %3082 = vdwg.mxu0
    %vm3083 = vcmask 72704
    %v3085 = vsel %vm3083, %v2901, 0
    %vm3087 = vcmask 1040384
    %v3089 = vsel %vm3087, %v2999, 0
    %3091 = vmatprep.subr.mxu0 0.0
    %3092 = vmatpush1.msra.mxu0 %v2994
    %3093 = vmatprep.subr.mxu0 0.0
    %3094 = vmatpush1.msra.mxu0 %v3089
    %3095 = vmatprep.subr.mxu0 0.0
    %3096 = vmatpush1.msra.mxu0 0.0
    %3097 = vmatprep.subr.mxu0 0.0
    %3098 = vmatpush1.msra.mxu0 0.0
    %3099 = vmatprep.subr.mxu0 0.0
    %3100 = vmatpush1.msra.mxu0 0.0
    %3101 = vmatprep.subr.mxu0 0.0
    %3102 = vmatpush1.msra.mxu0 0.0
    %3103 = vmatprep.subr.mxu0 0.0
    %3104 = vmatpush1.msra.mxu0 0.0
    %3105 = vmatprep.subr.mxu0 0.0
    %3106 = vmatpush1.msra.mxu0 0.0
    %3107 = vmatprep.subr.mxu0 0.0
    %3108 = vmatpush1.msra.mxu0 0.0
    %3109 = vmatprep.subr.mxu0 0.0
    %3110 = vmatpush1.msra.mxu0 0.0
    %3111 = vmatprep.subr.mxu0 0.0
    %3112 = vmatpush1.msra.mxu0 0.0
    %3113 = vmatprep.subr.mxu0 0.0
    %3114 = vmatpush1.msra.mxu0 0.0
    %3115 = vmatprep.subr.mxu0 0.0
    %3116 = vmatpush1.msra.mxu0 0.0
    %3117 = vmatprep.subr.mxu0 0.0
    %3118 = vmatpush1.msra.mxu0 0.0
    %3119 = vmatprep.subr.mxu0 0.0
    %3120 = vmatpush1.msra.mxu0 0.0
    %3121 = vmatprep.subr.mxu0 0.0
    %3122 = vmatpush1.msra.mxu0 0.0
    %3123 = vmatprep.subr.mxu0 0.0
    %3124 = vmatpush1.msra.mxu0 0.0
    %3125 = vmatprep.subr.mxu0 0.0
    %3126 = vmatpush1.msra.mxu0 0.0
    %3127 = vmatprep.subr.mxu0 0.0
    %3128 = vmatpush1.msra.mxu0 0.0
    %3129 = vmatprep.subr.mxu0 0.0
    %3130 = vmatpush1.msra.mxu0 0.0
    %3131 = vmatprep.subr.mxu0 0.0
    %3132 = vmatpush1.msra.mxu0 0.0
    %3133 = vmatprep.subr.mxu0 0.0
    %3134 = vmatpush1.msra.mxu0 0.0
    %3135 = vmatprep.subr.mxu0 0.0
    %3136 = vmatpush1.msra.mxu0 0.0
    %3137 = vmatprep.subr.mxu0 0.0
    %3138 = vmatpush1.msra.mxu0 0.0
    %3139 = vmatprep.subr.mxu0 0.0
    %3140 = vmatpush1.msra.mxu0 0.0
    %3141 = vmatprep.subr.mxu0 0.0
    %3142 = vmatpush1.msra.mxu0 0.0
    %3143 = vmatprep.subr.mxu0 0.0
    %3144 = vmatpush1.msra.mxu0 0.0
    %3145 = vmatprep.subr.mxu0 0.0
    %3146 = vmatpush1.msra.mxu0 0.0
    %3147 = vmatprep.subr.mxu0 0.0
    %3148 = vmatpush1.msra.mxu0 0.0
    %3149 = vmatprep.subr.mxu0 0.0
    %3150 = vmatpush1.msra.mxu0 0.0
    %3151 = vmatprep.subr.mxu0 0.0
    %3152 = vmatpush1.msra.mxu0 0.0
    %3153 = vmatprep.subr.mxu0 0.0
    %3154 = vmatpush1.msra.mxu0 0.0
    %3155 = vmatprep.mubr.f32.mxu0 0.0
    %3156 = vmatmul.mubr.f32.gmra.mrb[0].mxu0 %v3085
    %v3157 = vpop.f32.mrb[0].mxu0
    %v3158 = vadd.f32 0.0, %v3157
    %v3159 = vpop.f32.mrb[0].mxu0
    %3160 = vdwg.mxu0
    %v3162 = vsel %vm3087, %v3080, 0
    %3164 = vmatprep.subr.mxu0 0.0
    %3165 = vmatpush1.msra.mxu0 %v3075
    %3166 = vmatprep.subr.mxu0 0.0
    %3167 = vmatpush1.msra.mxu0 %v3162
    %3168 = vmatprep.subr.mxu0 0.0
    %3169 = vmatpush1.msra.mxu0 0.0
    %3170 = vmatprep.subr.mxu0 0.0
    %3171 = vmatpush1.msra.mxu0 0.0
    %3172 = vmatprep.subr.mxu0 0.0
    %3173 = vmatpush1.msra.mxu0 0.0
    %3174 = vmatprep.subr.mxu0 0.0
    %3175 = vmatpush1.msra.mxu0 0.0
    %3176 = vmatprep.subr.mxu0 0.0
    %3177 = vmatpush1.msra.mxu0 0.0
    %3178 = vmatprep.subr.mxu0 0.0
    %3179 = vmatpush1.msra.mxu0 0.0
    %3180 = vmatprep.subr.mxu0 0.0
    %3181 = vmatpush1.msra.mxu0 0.0
    %3182 = vmatprep.subr.mxu0 0.0
    %3183 = vmatpush1.msra.mxu0 0.0
    %3184 = vmatprep.subr.mxu0 0.0
    %3185 = vmatpush1.msra.mxu0 0.0
    %3186 = vmatprep.subr.mxu0 0.0
    %3187 = vmatpush1.msra.mxu0 0.0
    %3188 = vmatprep.subr.mxu0 0.0
    %3189 = vmatpush1.msra.mxu0 0.0
    %3190 = vmatprep.subr.mxu0 0.0
    %3191 = vmatpush1.msra.mxu0 0.0
    %3192 = vmatprep.subr.mxu0 0.0
    %3193 = vmatpush1.msra.mxu0 0.0
    %3194 = vmatprep.subr.mxu0 0.0
    %3195 = vmatpush1.msra.mxu0 0.0
    %3196 = vmatprep.subr.mxu0 0.0
    %3197 = vmatpush1.msra.mxu0 0.0
    %3198 = vmatprep.subr.mxu0 0.0
    %3199 = vmatpush1.msra.mxu0 0.0
    %3200 = vmatprep.subr.mxu0 0.0
    %3201 = vmatpush1.msra.mxu0 0.0
    %3202 = vmatprep.subr.mxu0 0.0
    %3203 = vmatpush1.msra.mxu0 0.0
    %3204 = vmatprep.subr.mxu0 0.0
    %3205 = vmatpush1.msra.mxu0 0.0
    %3206 = vmatprep.subr.mxu0 0.0
    %3207 = vmatpush1.msra.mxu0 0.0
    %3208 = vmatprep.subr.mxu0 0.0
    %3209 = vmatpush1.msra.mxu0 0.0
    %3210 = vmatprep.subr.mxu0 0.0
    %3211 = vmatpush1.msra.mxu0 0.0
    %3212 = vmatprep.subr.mxu0 0.0
    %3213 = vmatpush1.msra.mxu0 0.0
    %3214 = vmatprep.subr.mxu0 0.0
    %3215 = vmatpush1.msra.mxu0 0.0
    %3216 = vmatprep.subr.mxu0 0.0
    %3217 = vmatpush1.msra.mxu0 0.0
    %3218 = vmatprep.subr.mxu0 0.0
    %3219 = vmatpush1.msra.mxu0 0.0
    %3220 = vmatprep.subr.mxu0 0.0
    %3221 = vmatpush1.msra.mxu0 0.0
    %3222 = vmatprep.subr.mxu0 0.0
    %3223 = vmatpush1.msra.mxu0 0.0
    %3224 = vmatprep.subr.mxu0 0.0
    %3225 = vmatpush1.msra.mxu0 0.0
    %3226 = vmatprep.subr.mxu0 0.0
    %3227 = vmatpush1.msra.mxu0 0.0
    %3228 = vmatprep.mubr.f32.mxu0 0.0
    %3229 = vmatmul.mubr.f32.gmra.mrb[0].mxu0 %v3085
    %v3230 = vpop.f32.mrb[0].mxu0
    %v3231 = vadd.f32 0.0, %v3230
    %v3232 = vpop.f32.mrb[0].mxu0
    %3233 = vdwg.mxu0
    %v3234 = vld [vmem:[%s9] sm:$0xff]
    %v3235 = vld [vmem:[%s9 + $0x8] sm:$0xff]
    %v3236 = vld [vmem:[%s9 + $0x10] sm:$0xff]
    %v3237 = vld [vmem:[%s9 + $0x18] sm:$0xff]
    %v3238 = vld [vmem:[%s9 + $0x20] sm:$0xff]
    %v3239 = vld [vmem:[%s9 + $0x28] sm:$0xff]
    %v3240 = vld [vmem:[%s9 + $0x30] sm:$0xff]
    %v3241 = vld [vmem:[%s9 + $0x38] sm:$0xff]
    %v3242 = vld [vmem:[%s9 + $0x40] sm:$0xff]
    %v3243 = vld [vmem:[%s9 + $0x48] sm:$0xff]
    %s3244 = scalar_lea.vmem %s9, 80
    %v3245 = vld [vmem:[%s3244] sm:$0xff]
    %v3246 = vld [vmem:[%s3244 + $0x8] sm:$0xff]
    %v3247 = vld [vmem:[%s3244 + $0x10] sm:$0xff]
    %v3248 = vld [vmem:[%s3244 + $0x18] sm:$0xff]
    %v3249 = vld [vmem:[%s3244 + $0x20] sm:$0xff]
    %v3250 = vld [vmem:[%s3244 + $0x28] sm:$0xff]
    %v3251 = vld [vmem:[%s3244 + $0x30] sm:$0xff]
    %v3252 = vld [vmem:[%s3244 + $0x38] sm:$0xff]
    %v3253 = vld [vmem:[%s3244 + $0x40] sm:$0xff]
    %v3254 = vld [vmem:[%s3244 + $0x48] sm:$0xff]
    %v3256 = vrot.slane %v3158, 1
    %vm3257 = vcmask 654336
    %v3258 = vsel %vm3257, %v3256, 0
    %3260 = vmatprep.subr.mxu0 0.0
    %3261 = vmatpush1.msra.mxu0 %v3245
    %3262 = vmatprep.subr.mxu0 0.0
    %3263 = vmatpush1.msra.mxu0 %v3246
    %3264 = vmatprep.subr.mxu0 0.0
    %3265 = vmatpush1.msra.mxu0 %v3247
    %3266 = vmatprep.subr.mxu0 0.0
    %3267 = vmatpush1.msra.mxu0 %v3248
    %3268 = vmatprep.subr.mxu0 0.0
    %3269 = vmatpush1.msra.mxu0 %v3249
    %3270 = vmatprep.subr.mxu0 0.0
    %3271 = vmatpush1.msra.mxu0 %v3250
    %3272 = vmatprep.subr.mxu0 0.0
    %3273 = vmatpush1.msra.mxu0 %v3251
    %3274 = vmatprep.subr.mxu0 0.0
    %3275 = vmatpush1.msra.mxu0 %v3252
    %3276 = vmatprep.subr.mxu0 0.0
    %3277 = vmatpush1.msra.mxu0 %v3253
    %3278 = vmatprep.subr.mxu0 0.0
    %3279 = vmatpush1.msra.mxu0 %v3254
    %3280 = vmatprep.subr.mxu0 0.0
    %3281 = vmatpush1.msra.mxu0 0.0
    %3282 = vmatprep.subr.mxu0 0.0
    %3283 = vmatpush1.msra.mxu0 0.0
    %3284 = vmatprep.subr.mxu0 0.0
    %3285 = vmatpush1.msra.mxu0 0.0
    %3286 = vmatprep.subr.mxu0 0.0
    %3287 = vmatpush1.msra.mxu0 0.0
    %3288 = vmatprep.subr.mxu0 0.0
    %3289 = vmatpush1.msra.mxu0 0.0
    %3290 = vmatprep.subr.mxu0 0.0
    %3291 = vmatpush1.msra.mxu0 0.0
    %3292 = vmatprep.subr.mxu0 0.0
    %3293 = vmatpush1.msra.mxu0 0.0
    %3294 = vmatprep.subr.mxu0 0.0
    %3295 = vmatpush1.msra.mxu0 0.0
    %3296 = vmatprep.subr.mxu0 0.0
    %3297 = vmatpush1.msra.mxu0 0.0
    %3298 = vmatprep.subr.mxu0 0.0
    %3299 = vmatpush1.msra.mxu0 0.0
    %3300 = vmatprep.subr.mxu0 0.0
    %3301 = vmatpush1.msra.mxu0 0.0
    %3302 = vmatprep.subr.mxu0 0.0
    %3303 = vmatpush1.msra.mxu0 0.0
    %3304 = vmatprep.subr.mxu0 0.0
    %3305 = vmatpush1.msra.mxu0 0.0
    %3306 = vmatprep.subr.mxu0 0.0
    %3307 = vmatpush1.msra.mxu0 0.0
    %3308 = vmatprep.subr.mxu0 0.0
    %3309 = vmatpush1.msra.mxu0 0.0
    %3310 = vmatprep.subr.mxu0 0.0
    %3311 = vmatpush1.msra.mxu0 0.0
    %3312 = vmatprep.subr.mxu0 0.0
    %3313 = vmatpush1.msra.mxu0 0.0
    %3314 = vmatprep.subr.mxu0 0.0
    %3315 = vmatpush1.msra.mxu0 0.0
    %3316 = vmatprep.subr.mxu0 0.0
    %3317 = vmatpush1.msra.mxu0 0.0
    %3318 = vmatprep.subr.mxu0 0.0
    %3319 = vmatpush1.msra.mxu0 0.0
    %3320 = vmatprep.subr.mxu0 0.0
    %3321 = vmatpush1.msra.mxu0 0.0
    %3322 = vmatprep.subr.mxu0 0.0
    %3323 = vmatpush1.msra.mxu0 0.0
    %3324 = vmatprep.mubr.f32.mxu0 0.0
    %3325 = vmatmul.mubr.f32.gmra.mrb[0].mxu0 %v3258
    %v3326 = vpop.f32.mrb[0].mxu0
    %v3327 = vadd.f32 0.0, %v3326
    %v3328 = vpop.f32.mrb[0].mxu0
    %3329 = vdwg.mxu0
    %v3331 = vrot.slane %v3231, 1
    %v3332 = vsel %vm3257, %v3331, 0
    %3334 = vmatprep.subr.mxu0 0.0
    %3335 = vmatpush1.msra.mxu0 %v3245
    %3336 = vmatprep.subr.mxu0 0.0
    %3337 = vmatpush1.msra.mxu0 %v3246
    %3338 = vmatprep.subr.mxu0 0.0
    %3339 = vmatpush1.msra.mxu0 %v3247
    %3340 = vmatprep.subr.mxu0 0.0
    %3341 = vmatpush1.msra.mxu0 %v3248
    %3342 = vmatprep.subr.mxu0 0.0
    %3343 = vmatpush1.msra.mxu0 %v3249
    %3344 = vmatprep.subr.mxu0 0.0
    %3345 = vmatpush1.msra.mxu0 %v3250
    %3346 = vmatprep.subr.mxu0 0.0
    %3347 = vmatpush1.msra.mxu0 %v3251
    %3348 = vmatprep.subr.mxu0 0.0
    %3349 = vmatpush1.msra.mxu0 %v3252
    %3350 = vmatprep.subr.mxu0 0.0
    %3351 = vmatpush1.msra.mxu0 %v3253
    %3352 = vmatprep.subr.mxu0 0.0
    %3353 = vmatpush1.msra.mxu0 %v3254
    %3354 = vmatprep.subr.mxu0 0.0
    %3355 = vmatpush1.msra.mxu0 0.0
    %3356 = vmatprep.subr.mxu0 0.0
    %3357 = vmatpush1.msra.mxu0 0.0
    %3358 = vmatprep.subr.mxu0 0.0
    %3359 = vmatpush1.msra.mxu0 0.0
    %3360 = vmatprep.subr.mxu0 0.0
    %3361 = vmatpush1.msra.mxu0 0.0
    %3362 = vmatprep.subr.mxu0 0.0
    %3363 = vmatpush1.msra.mxu0 0.0
    %3364 = vmatprep.subr.mxu0 0.0
    %3365 = vmatpush1.msra.mxu0 0.0
    %3366 = vmatprep.subr.mxu0 0.0
    %3367 = vmatpush1.msra.mxu0 0.0
    %3368 = vmatprep.subr.mxu0 0.0
    %3369 = vmatpush1.msra.mxu0 0.0
    %3370 = vmatprep.subr.mxu0 0.0
    %3371 = vmatpush1.msra.mxu0 0.0
    %3372 = vmatprep.subr.mxu0 0.0
    %3373 = vmatpush1.msra.mxu0 0.0
    %3374 = vmatprep.subr.mxu0 0.0
    %3375 = vmatpush1.msra.mxu0 0.0
    %3376 = vmatprep.subr.mxu0 0.0
    %3377 = vmatpush1.msra.mxu0 0.0
    %3378 = vmatprep.subr.mxu0 0.0
    %3379 = vmatpush1.msra.mxu0 0.0
    %3380 = vmatprep.subr.mxu0 0.0
    %3381 = vmatpush1.msra.mxu0 0.0
    %3382 = vmatprep.subr.mxu0 0.0
    %3383 = vmatpush1.msra.mxu0 0.0
    %3384 = vmatprep.subr.mxu0 0.0
    %3385 = vmatpush1.msra.mxu0 0.0
    %3386 = vmatprep.subr.mxu0 0.0
    %3387 = vmatpush1.msra.mxu0 0.0
    %3388 = vmatprep.subr.mxu0 0.0
    %3389 = vmatpush1.msra.mxu0 0.0
    %3390 = vmatprep.subr.mxu0 0.0
    %3391 = vmatpush1.msra.mxu0 0.0
    %3392 = vmatprep.subr.mxu0 0.0
    %3393 = vmatpush1.msra.mxu0 0.0
    %3394 = vmatprep.subr.mxu0 0.0
    %3395 = vmatpush1.msra.mxu0 0.0
    %3396 = vmatprep.subr.mxu0 0.0
    %3397 = vmatpush1.msra.mxu0 0.0
    %3398 = vmatprep.mubr.f32.mxu0 0.0
    %3399 = vmatmul.mubr.f32.gmra.mrb[0].mxu0 %v3332
    %v3400 = vpop.f32.mrb[0].mxu0
    %v3401 = vadd.f32 0.0, %v3400
    %v3402 = vpop.f32.mrb[0].mxu0
    %3403 = vdwg.mxu0
    %v3404 = vsel %vm3257, %v3158, 0
    %3406 = vmatprep.subr.mxu0 0.0
    %3407 = vmatpush1.msra.mxu0 %v3234
    %3408 = vmatprep.subr.mxu0 0.0
    %3409 = vmatpush1.msra.mxu0 %v3235
    %3410 = vmatprep.subr.mxu0 0.0
    %3411 = vmatpush1.msra.mxu0 %v3236
    %3412 = vmatprep.subr.mxu0 0.0
    %3413 = vmatpush1.msra.mxu0 %v3237
    %3414 = vmatprep.subr.mxu0 0.0
    %3415 = vmatpush1.msra.mxu0 %v3238
    %3416 = vmatprep.subr.mxu0 0.0
    %3417 = vmatpush1.msra.mxu0 %v3239
    %3418 = vmatprep.subr.mxu0 0.0
    %3419 = vmatpush1.msra.mxu0 %v3240
    %3420 = vmatprep.subr.mxu0 0.0
    %3421 = vmatpush1.msra.mxu0 %v3241
    %3422 = vmatprep.subr.mxu0 0.0
    %3423 = vmatpush1.msra.mxu0 %v3242
    %3424 = vmatprep.subr.mxu0 0.0
    %3425 = vmatpush1.msra.mxu0 %v3243
    %3426 = vmatprep.subr.mxu0 0.0
    %3427 = vmatpush1.msra.mxu0 0.0
    %3428 = vmatprep.subr.mxu0 0.0
    %3429 = vmatpush1.msra.mxu0 0.0
    %3430 = vmatprep.subr.mxu0 0.0
    %3431 = vmatpush1.msra.mxu0 0.0
    %3432 = vmatprep.subr.mxu0 0.0
    %3433 = vmatpush1.msra.mxu0 0.0
    %3434 = vmatprep.subr.mxu0 0.0
    %3435 = vmatpush1.msra.mxu0 0.0
    %3436 = vmatprep.subr.mxu0 0.0
    %3437 = vmatpush1.msra.mxu0 0.0
    %3438 = vmatprep.subr.mxu0 0.0
    %3439 = vmatpush1.msra.mxu0 0.0
    %3440 = vmatprep.subr.mxu0 0.0
    %3441 = vmatpush1.msra.mxu0 0.0
    %3442 = vmatprep.subr.mxu0 0.0
    %3443 = vmatpush1.msra.mxu0 0.0
    %3444 = vmatprep.subr.mxu0 0.0
    %3445 = vmatpush1.msra.mxu0 0.0
    %3446 = vmatprep.subr.mxu0 0.0
    %3447 = vmatpush1.msra.mxu0 0.0
    %3448 = vmatprep.subr.mxu0 0.0
    %3449 = vmatpush1.msra.mxu0 0.0
    %3450 = vmatprep.subr.mxu0 0.0
    %3451 = vmatpush1.msra.mxu0 0.0
    %3452 = vmatprep.subr.mxu0 0.0
    %3453 = vmatpush1.msra.mxu0 0.0
    %3454 = vmatprep.subr.mxu0 0.0
    %3455 = vmatpush1.msra.mxu0 0.0
    %3456 = vmatprep.subr.mxu0 0.0
    %3457 = vmatpush1.msra.mxu0 0.0
    %3458 = vmatprep.subr.mxu0 0.0
    %3459 = vmatpush1.msra.mxu0 0.0
    %3460 = vmatprep.subr.mxu0 0.0
    %3461 = vmatpush1.msra.mxu0 0.0
    %3462 = vmatprep.subr.mxu0 0.0
    %3463 = vmatpush1.msra.mxu0 0.0
    %3464 = vmatprep.subr.mxu0 0.0
    %3465 = vmatpush1.msra.mxu0 0.0
    %3466 = vmatprep.subr.mxu0 0.0
    %3467 = vmatpush1.msra.mxu0 0.0
    %3468 = vmatprep.subr.mxu0 0.0
    %3469 = vmatpush1.msra.mxu0 0.0
    %3470 = vmatprep.mubr.f32.mxu0 0.0
    %3471 = vmatmul.mubr.f32.gmra.mrb[0].mxu0 %v3404
    %v3472 = vpop.f32.mrb[0].mxu0
    %v3473 = vadd.f32 %v3327, %v3472
    %v3474 = vpop.f32.mrb[0].mxu0
    %3475 = vdwg.mxu0
    %v3476 = vsel %vm3257, %v3231, 0
    %3478 = vmatprep.subr.mxu0 0.0
    %3479 = vmatpush1.msra.mxu0 %v3234
    %3480 = vmatprep.subr.mxu0 0.0
    %3481 = vmatpush1.msra.mxu0 %v3235
    %3482 = vmatprep.subr.mxu0 0.0
    %3483 = vmatpush1.msra.mxu0 %v3236
    %3484 = vmatprep.subr.mxu0 0.0
    %3485 = vmatpush1.msra.mxu0 %v3237
    %3486 = vmatprep.subr.mxu0 0.0
    %3487 = vmatpush1.msra.mxu0 %v3238
    %3488 = vmatprep.subr.mxu0 0.0
    %3489 = vmatpush1.msra.mxu0 %v3239
    %3490 = vmatprep.subr.mxu0 0.0
    %3491 = vmatpush1.msra.mxu0 %v3240
    %3492 = vmatprep.subr.mxu0 0.0
    %3493 = vmatpush1.msra.mxu0 %v3241
    %3494 = vmatprep.subr.mxu0 0.0
    %3495 = vmatpush1.msra.mxu0 %v3242
    %3496 = vmatprep.subr.mxu0 0.0
    %3497 = vmatpush1.msra.mxu0 %v3243
    %3498 = vmatprep.subr.mxu0 0.0
    %3499 = vmatpush1.msra.mxu0 0.0
    %3500 = vmatprep.subr.mxu0 0.0
    %3501 = vmatpush1.msra.mxu0 0.0
    %3502 = vmatprep.subr.mxu0 0.0
    %3503 = vmatpush1.msra.mxu0 0.0
    %3504 = vmatprep.subr.mxu0 0.0
    %3505 = vmatpush1.msra.mxu0 0.0
    %3506 = vmatprep.subr.mxu0 0.0
    %3507 = vmatpush1.msra.mxu0 0.0
    %3508 = vmatprep.subr.mxu0 0.0
    %3509 = vmatpush1.msra.mxu0 0.0
    %3510 = vmatprep.subr.mxu0 0.0
    %3511 = vmatpush1.msra.mxu0 0.0
    %3512 = vmatprep.subr.mxu0 0.0
    %3513 = vmatpush1.msra.mxu0 0.0
    %3514 = vmatprep.subr.mxu0 0.0
    %3515 = vmatpush1.msra.mxu0 0.0
    %3516 = vmatprep.subr.mxu0 0.0
    %3517 = vmatpush1.msra.mxu0 0.0
    %3518 = vmatprep.subr.mxu0 0.0
    %3519 = vmatpush1.msra.mxu0 0.0
    %3520 = vmatprep.subr.mxu0 0.0
    %3521 = vmatpush1.msra.mxu0 0.0
    %3522 = vmatprep.subr.mxu0 0.0
    %3523 = vmatpush1.msra.mxu0 0.0
    %3524 = vmatprep.subr.mxu0 0.0
    %3525 = vmatpush1.msra.mxu0 0.0
    %3526 = vmatprep.subr.mxu0 0.0
    %3527 = vmatpush1.msra.mxu0 0.0
    %3528 = vmatprep.subr.mxu0 0.0
    %3529 = vmatpush1.msra.mxu0 0.0
    %3530 = vmatprep.subr.mxu0 0.0
    %3531 = vmatpush1.msra.mxu0 0.0
    %3532 = vmatprep.subr.mxu0 0.0
    %3533 = vmatpush1.msra.mxu0 0.0
    %3534 = vmatprep.subr.mxu0 0.0
    %3535 = vmatpush1.msra.mxu0 0.0
    %3536 = vmatprep.subr.mxu0 0.0
    %3537 = vmatpush1.msra.mxu0 0.0
    %3538 = vmatprep.subr.mxu0 0.0
    %3539 = vmatpush1.msra.mxu0 0.0
    %3540 = vmatprep.subr.mxu0 0.0
    %3541 = vmatpush1.msra.mxu0 0.0
    %3542 = vmatprep.mubr.f32.mxu0 0.0
    %3543 = vmatmul.mubr.f32.gmra.mrb[0].mxu0 %v3476
    %v3544 = vpop.f32.mrb[0].mxu0
    %v3545 = vadd.f32 %v3401, %v3544
    %v3546 = vpop.f32.mrb[0].mxu0
    %3547 = vdwg.mxu0
    %s3548 = scalar_lea.vmem %s9, 160
    %v3549 = vld [vmem:[%s3548] sm:$0xff]
    %v3550 = vld [vmem:[%s3548 + $0x8] sm:$0xff]
    %v3551 = vld [vmem:[%s3548 + $0x10] sm:$0xff]
    %v3552 = vld [vmem:[%s3548 + $0x18] sm:$0xff]
    %v3553 = vld [vmem:[%s3548 + $0x20] sm:$0xff]
    %v3554 = vld [vmem:[%s3548 + $0x28] sm:$0xff]
    %v3555 = vld [vmem:[%s3548 + $0x30] sm:$0xff]
    %v3556 = vld [vmem:[%s3548 + $0x38] sm:$0xff]
    %v3557 = vld [vmem:[%s3548 + $0x40] sm:$0xff]
    %v3558 = vld [vmem:[%s3548 + $0x48] sm:$0xff]
    %v3559 = vrot.slane %v3158, 2
    %v3560 = vsel %vm3257, %v3559, 0
    %3562 = vmatprep.subr.mxu0 0.0
    %3563 = vmatpush1.msra.mxu0 %v3549
    %3564 = vmatprep.subr.mxu0 0.0
    %3565 = vmatpush1.msra.mxu0 %v3550
    %3566 = vmatprep.subr.mxu0 0.0
    %3567 = vmatpush1.msra.mxu0 %v3551
    %3568 = vmatprep.subr.mxu0 0.0
    %3569 = vmatpush1.msra.mxu0 %v3552
    %3570 = vmatprep.subr.mxu0 0.0
    %3571 = vmatpush1.msra.mxu0 %v3553
    %3572 = vmatprep.subr.mxu0 0.0
    %3573 = vmatpush1.msra.mxu0 %v3554
    %3574 = vmatprep.subr.mxu0 0.0
    %3575 = vmatpush1.msra.mxu0 %v3555
    %3576 = vmatprep.subr.mxu0 0.0
    %3577 = vmatpush1.msra.mxu0 %v3556
    %3578 = vmatprep.subr.mxu0 0.0
    %3579 = vmatpush1.msra.mxu0 %v3557
    %3580 = vmatprep.subr.mxu0 0.0
    %3581 = vmatpush1.msra.mxu0 %v3558
    %3582 = vmatprep.subr.mxu0 0.0
    %3583 = vmatpush1.msra.mxu0 0.0
    %3584 = vmatprep.subr.mxu0 0.0
    %3585 = vmatpush1.msra.mxu0 0.0
    %3586 = vmatprep.subr.mxu0 0.0
    %3587 = vmatpush1.msra.mxu0 0.0
    %3588 = vmatprep.subr.mxu0 0.0
    %3589 = vmatpush1.msra.mxu0 0.0
    %3590 = vmatprep.subr.mxu0 0.0
    %3591 = vmatpush1.msra.mxu0 0.0
    %3592 = vmatprep.subr.mxu0 0.0
    %3593 = vmatpush1.msra.mxu0 0.0
    %3594 = vmatprep.subr.mxu0 0.0
    %3595 = vmatpush1.msra.mxu0 0.0
    %3596 = vmatprep.subr.mxu0 0.0
    %3597 = vmatpush1.msra.mxu0 0.0
    %3598 = vmatprep.subr.mxu0 0.0
    %3599 = vmatpush1.msra.mxu0 0.0
    %3600 = vmatprep.subr.mxu0 0.0
    %3601 = vmatpush1.msra.mxu0 0.0
    %3602 = vmatprep.subr.mxu0 0.0
    %3603 = vmatpush1.msra.mxu0 0.0
    %3604 = vmatprep.subr.mxu0 0.0
    %3605 = vmatpush1.msra.mxu0 0.0
    %3606 = vmatprep.subr.mxu0 0.0
    %3607 = vmatpush1.msra.mxu0 0.0
    %3608 = vmatprep.subr.mxu0 0.0
    %3609 = vmatpush1.msra.mxu0 0.0
    %3610 = vmatprep.subr.mxu0 0.0
    %3611 = vmatpush1.msra.mxu0 0.0
    %3612 = vmatprep.subr.mxu0 0.0
    %3613 = vmatpush1.msra.mxu0 0.0
    %3614 = vmatprep.subr.mxu0 0.0
    %3615 = vmatpush1.msra.mxu0 0.0
    %3616 = vmatprep.subr.mxu0 0.0
    %3617 = vmatpush1.msra.mxu0 0.0
    %3618 = vmatprep.subr.mxu0 0.0
    %3619 = vmatpush1.msra.mxu0 0.0
    %3620 = vmatprep.subr.mxu0 0.0
    %3621 = vmatpush1.msra.mxu0 0.0
    %3622 = vmatprep.subr.mxu0 0.0
    %3623 = vmatpush1.msra.mxu0 0.0
    %3624 = vmatprep.subr.mxu0 0.0
    %3625 = vmatpush1.msra.mxu0 0.0
    %3626 = vmatprep.mubr.f32.mxu0 0.0
    %3627 = vmatmul.mubr.f32.gmra.mrb[0].mxu0 %v3560
    %v3628 = vpop.f32.mrb[0].mxu0
    %v3629 = vadd.f32 0.0, %v3628
    %v3630 = vpop.f32.mrb[0].mxu0
    %3631 = vdwg.mxu0
    %v3632 = vrot.slane %v3231, 2
    %v3633 = vsel %vm3257, %v3632, 0
    %3635 = vmatprep.subr.mxu0 0.0
    %3636 = vmatpush1.msra.mxu0 %v3549
    %3637 = vmatprep.subr.mxu0 0.0
    %3638 = vmatpush1.msra.mxu0 %v3550
    %3639 = vmatprep.subr.mxu0 0.0
    %3640 = vmatpush1.msra.mxu0 %v3551
    %3641 = vmatprep.subr.mxu0 0.0
    %3642 = vmatpush1.msra.mxu0 %v3552
    %3643 = vmatprep.subr.mxu0 0.0
    %3644 = vmatpush1.msra.mxu0 %v3553
    %3645 = vmatprep.subr.mxu0 0.0
    %3646 = vmatpush1.msra.mxu0 %v3554
    %3647 = vmatprep.subr.mxu0 0.0
    %3648 = vmatpush1.msra.mxu0 %v3555
    %3649 = vmatprep.subr.mxu0 0.0
    %3650 = vmatpush1.msra.mxu0 %v3556
    %3651 = vmatprep.subr.mxu0 0.0
    %3652 = vmatpush1.msra.mxu0 %v3557
    %3653 = vmatprep.subr.mxu0 0.0
    %3654 = vmatpush1.msra.mxu0 %v3558
    %3655 = vmatprep.subr.mxu0 0.0
    %3656 = vmatpush1.msra.mxu0 0.0
    %3657 = vmatprep.subr.mxu0 0.0
    %3658 = vmatpush1.msra.mxu0 0.0
    %3659 = vmatprep.subr.mxu0 0.0
    %3660 = vmatpush1.msra.mxu0 0.0
    %3661 = vmatprep.subr.mxu0 0.0
    %3662 = vmatpush1.msra.mxu0 0.0
    %3663 = vmatprep.subr.mxu0 0.0
    %3664 = vmatpush1.msra.mxu0 0.0
    %3665 = vmatprep.subr.mxu0 0.0
    %3666 = vmatpush1.msra.mxu0 0.0
    %3667 = vmatprep.subr.mxu0 0.0
    %3668 = vmatpush1.msra.mxu0 0.0
    %3669 = vmatprep.subr.mxu0 0.0
    %3670 = vmatpush1.msra.mxu0 0.0
    %3671 = vmatprep.subr.mxu0 0.0
    %3672 = vmatpush1.msra.mxu0 0.0
    %3673 = vmatprep.subr.mxu0 0.0
    %3674 = vmatpush1.msra.mxu0 0.0
    %3675 = vmatprep.subr.mxu0 0.0
    %3676 = vmatpush1.msra.mxu0 0.0
    %3677 = vmatprep.subr.mxu0 0.0
    %3678 = vmatpush1.msra.mxu0 0.0
    %3679 = vmatprep.subr.mxu0 0.0
    %3680 = vmatpush1.msra.mxu0 0.0
    %3681 = vmatprep.subr.mxu0 0.0
    %3682 = vmatpush1.msra.mxu0 0.0
    %3683 = vmatprep.subr.mxu0 0.0
    %3684 = vmatpush1.msra.mxu0 0.0
    %3685 = vmatprep.subr.mxu0 0.0
    %3686 = vmatpush1.msra.mxu0 0.0
    %3687 = vmatprep.subr.mxu0 0.0
    %3688 = vmatpush1.msra.mxu0 0.0
    %3689 = vmatprep.subr.mxu0 0.0
    %3690 = vmatpush1.msra.mxu0 0.0
    %3691 = vmatprep.subr.mxu0 0.0
    %3692 = vmatpush1.msra.mxu0 0.0
    %3693 = vmatprep.subr.mxu0 0.0
    %3694 = vmatpush1.msra.mxu0 0.0
    %3695 = vmatprep.subr.mxu0 0.0
    %3696 = vmatpush1.msra.mxu0 0.0
    %3697 = vmatprep.subr.mxu0 0.0
    %3698 = vmatpush1.msra.mxu0 0.0
    %3699 = vmatprep.mubr.f32.mxu0 0.0
    %3700 = vmatmul.mubr.f32.gmra.mrb[0].mxu0 %v3633
    %v3701 = vpop.f32.mrb[0].mxu0
    %v3702 = vadd.f32 0.0, %v3701
    %v3703 = vpop.f32.mrb[0].mxu0
    %3704 = vdwg.mxu0
    %v3705 = vadd.f32 %v3473, %v3629
    %v3706 = vadd.f32 %v3545, %v3702
    %s3707 = scalar_lea.vmem %s9, 240
    %v3708 = vld [vmem:[%s3707] sm:$0xff]
    %v3709 = vld [vmem:[%s3707 + $0x8] sm:$0xff]
    %v3710 = vld [vmem:[%s3707 + $0x10] sm:$0xff]
    %v3711 = vld [vmem:[%s3707 + $0x18] sm:$0xff]
    %v3712 = vld [vmem:[%s3707 + $0x20] sm:$0xff]
    %v3713 = vld [vmem:[%s3707 + $0x28] sm:$0xff]
    %v3714 = vld [vmem:[%s3707 + $0x30] sm:$0xff]
    %v3715 = vld [vmem:[%s3707 + $0x38] sm:$0xff]
    %v3716 = vld [vmem:[%s3707 + $0x40] sm:$0xff]
    %v3717 = vld [vmem:[%s3707 + $0x48] sm:$0xff]
    %v3718 = vrot.slane %v3158, 3
    %v3719 = vsel %vm3257, %v3718, 0
    %3721 = vmatprep.subr.mxu0 0.0
    %3722 = vmatpush1.msra.mxu0 %v3708
    %3723 = vmatprep.subr.mxu0 0.0
    %3724 = vmatpush1.msra.mxu0 %v3709
    %3725 = vmatprep.subr.mxu0 0.0
    %3726 = vmatpush1.msra.mxu0 %v3710
    %3727 = vmatprep.subr.mxu0 0.0
    %3728 = vmatpush1.msra.mxu0 %v3711
    %3729 = vmatprep.subr.mxu0 0.0
    %3730 = vmatpush1.msra.mxu0 %v3712
    %3731 = vmatprep.subr.mxu0 0.0
    %3732 = vmatpush1.msra.mxu0 %v3713
    %3733 = vmatprep.subr.mxu0 0.0
    %3734 = vmatpush1.msra.mxu0 %v3714
    %3735 = vmatprep.subr.mxu0 0.0
    %3736 = vmatpush1.msra.mxu0 %v3715
    %3737 = vmatprep.subr.mxu0 0.0
    %3738 = vmatpush1.msra.mxu0 %v3716
    %3739 = vmatprep.subr.mxu0 0.0
    %3740 = vmatpush1.msra.mxu0 %v3717
    %3741 = vmatprep.subr.mxu0 0.0
    %3742 = vmatpush1.msra.mxu0 0.0
    %3743 = vmatprep.subr.mxu0 0.0
    %3744 = vmatpush1.msra.mxu0 0.0
    %3745 = vmatprep.subr.mxu0 0.0
    %3746 = vmatpush1.msra.mxu0 0.0
    %3747 = vmatprep.subr.mxu0 0.0
    %3748 = vmatpush1.msra.mxu0 0.0
    %3749 = vmatprep.subr.mxu0 0.0
    %3750 = vmatpush1.msra.mxu0 0.0
    %3751 = vmatprep.subr.mxu0 0.0
    %3752 = vmatpush1.msra.mxu0 0.0
    %3753 = vmatprep.subr.mxu0 0.0
    %3754 = vmatpush1.msra.mxu0 0.0
    %3755 = vmatprep.subr.mxu0 0.0
    %3756 = vmatpush1.msra.mxu0 0.0
    %3757 = vmatprep.subr.mxu0 0.0
    %3758 = vmatpush1.msra.mxu0 0.0
    %3759 = vmatprep.subr.mxu0 0.0
    %3760 = vmatpush1.msra.mxu0 0.0
    %3761 = vmatprep.subr.mxu0 0.0
    %3762 = vmatpush1.msra.mxu0 0.0
    %3763 = vmatprep.subr.mxu0 0.0
    %3764 = vmatpush1.msra.mxu0 0.0
    %3765 = vmatprep.subr.mxu0 0.0
    %3766 = vmatpush1.msra.mxu0 0.0
    %3767 = vmatprep.subr.mxu0 0.0
    %3768 = vmatpush1.msra.mxu0 0.0
    %3769 = vmatprep.subr.mxu0 0.0
    %3770 = vmatpush1.msra.mxu0 0.0
    %3771 = vmatprep.subr.mxu0 0.0
    %3772 = vmatpush1.msra.mxu0 0.0
    %3773 = vmatprep.subr.mxu0 0.0
    %3774 = vmatpush1.msra.mxu0 0.0
    %3775 = vmatprep.subr.mxu0 0.0
    %3776 = vmatpush1.msra.mxu0 0.0
    %3777 = vmatprep.subr.mxu0 0.0
    %3778 = vmatpush1.msra.mxu0 0.0
    %3779 = vmatprep.subr.mxu0 0.0
    %3780 = vmatpush1.msra.mxu0 0.0
    %3781 = vmatprep.subr.mxu0 0.0
    %3782 = vmatpush1.msra.mxu0 0.0
    %3783 = vmatprep.subr.mxu0 0.0
    %3784 = vmatpush1.msra.mxu0 0.0
    %3785 = vmatprep.mubr.f32.mxu0 0.0
    %3786 = vmatmul.mubr.f32.gmra.mrb[0].mxu0 %v3719
    %v3787 = vpop.f32.mrb[0].mxu0
    %v3788 = vadd.f32 0.0, %v3787
    %v3789 = vpop.f32.mrb[0].mxu0
    %3790 = vdwg.mxu0
    %v3791 = vrot.slane %v3231, 3
    %v3792 = vsel %vm3257, %v3791, 0
    %3794 = vmatprep.subr.mxu0 0.0
    %3795 = vmatpush1.msra.mxu0 %v3708
    %3796 = vmatprep.subr.mxu0 0.0
    %3797 = vmatpush1.msra.mxu0 %v3709
    %3798 = vmatprep.subr.mxu0 0.0
    %3799 = vmatpush1.msra.mxu0 %v3710
    %3800 = vmatprep.subr.mxu0 0.0
    %3801 = vmatpush1.msra.mxu0 %v3711
    %3802 = vmatprep.subr.mxu0 0.0
    %3803 = vmatpush1.msra.mxu0 %v3712
    %3804 = vmatprep.subr.mxu0 0.0
    %3805 = vmatpush1.msra.mxu0 %v3713
    %3806 = vmatprep.subr.mxu0 0.0
    %3807 = vmatpush1.msra.mxu0 %v3714
    %3808 = vmatprep.subr.mxu0 0.0
    %3809 = vmatpush1.msra.mxu0 %v3715
    %3810 = vmatprep.subr.mxu0 0.0
    %3811 = vmatpush1.msra.mxu0 %v3716
    %3812 = vmatprep.subr.mxu0 0.0
    %3813 = vmatpush1.msra.mxu0 %v3717
    %3814 = vmatprep.subr.mxu0 0.0
    %3815 = vmatpush1.msra.mxu0 0.0
    %3816 = vmatprep.subr.mxu0 0.0
    %3817 = vmatpush1.msra.mxu0 0.0
    %3818 = vmatprep.subr.mxu0 0.0
    %3819 = vmatpush1.msra.mxu0 0.0
    %3820 = vmatprep.subr.mxu0 0.0
    %3821 = vmatpush1.msra.mxu0 0.0
    %3822 = vmatprep.subr.mxu0 0.0
    %3823 = vmatpush1.msra.mxu0 0.0
    %3824 = vmatprep.subr.mxu0 0.0
    %3825 = vmatpush1.msra.mxu0 0.0
    %3826 = vmatprep.subr.mxu0 0.0
    %3827 = vmatpush1.msra.mxu0 0.0
    %3828 = vmatprep.subr.mxu0 0.0
    %3829 = vmatpush1.msra.mxu0 0.0
    %3830 = vmatprep.subr.mxu0 0.0
    %3831 = vmatpush1.msra.mxu0 0.0
    %3832 = vmatprep.subr.mxu0 0.0
    %3833 = vmatpush1.msra.mxu0 0.0
    %3834 = vmatprep.subr.mxu0 0.0
    %3835 = vmatpush1.msra.mxu0 0.0
    %3836 = vmatprep.subr.mxu0 0.0
    %3837 = vmatpush1.msra.mxu0 0.0
    %3838 = vmatprep.subr.mxu0 0.0
    %3839 = vmatpush1.msra.mxu0 0.0
    %3840 = vmatprep.subr.mxu0 0.0
    %3841 = vmatpush1.msra.mxu0 0.0
    %3842 = vmatprep.subr.mxu0 0.0
    %3843 = vmatpush1.msra.mxu0 0.0
    %3844 = vmatprep.subr.mxu0 0.0
    %3845 = vmatpush1.msra.mxu0 0.0
    %3846 = vmatprep.subr.mxu0 0.0
    %3847 = vmatpush1.msra.mxu0 0.0
    %3848 = vmatprep.subr.mxu0 0.0
    %3849 = vmatpush1.msra.mxu0 0.0
    %3850 = vmatprep.subr.mxu0 0.0
    %3851 = vmatpush1.msra.mxu0 0.0
    %3852 = vmatprep.subr.mxu0 0.0
    %3853 = vmatpush1.msra.mxu0 0.0
    %3854 = vmatprep.subr.mxu0 0.0
    %3855 = vmatpush1.msra.mxu0 0.0
    %3856 = vmatprep.subr.mxu0 0.0
    %3857 = vmatpush1.msra.mxu0 0.0
    %3858 = vmatprep.mubr.f32.mxu0 0.0
    %3859 = vmatmul.mubr.f32.gmra.mrb[0].mxu0 %v3792
    %v3860 = vpop.f32.mrb[0].mxu0
    %v3861 = vadd.f32 0.0, %v3860
    %v3862 = vpop.f32.mrb[0].mxu0
    %3863 = vdwg.mxu0
    %v3864 = vadd.f32 %v3705, %v3788
    %v3865 = vadd.f32 %v3706, %v3861
    %s3866 = scalar_lea.vmem %s9, 320
    %v3867 = vld [vmem:[%s3866] sm:$0xff]
    %v3868 = vld [vmem:[%s3866 + $0x8] sm:$0xff]
    %v3869 = vld [vmem:[%s3866 + $0x10] sm:$0xff]
    %v3870 = vld [vmem:[%s3866 + $0x18] sm:$0xff]
    %v3871 = vld [vmem:[%s3866 + $0x20] sm:$0xff]
    %v3872 = vld [vmem:[%s3866 + $0x28] sm:$0xff]
    %v3873 = vld [vmem:[%s3866 + $0x30] sm:$0xff]
    %v3874 = vld [vmem:[%s3866 + $0x38] sm:$0xff]
    %v3875 = vld [vmem:[%s3866 + $0x40] sm:$0xff]
    %v3876 = vld [vmem:[%s3866 + $0x48] sm:$0xff]
    %v3877 = vrot.slane %v3158, 4
    %v3878 = vsel %vm3257, %v3877, 0
    %3880 = vmatprep.subr.mxu0 0.0
    %3881 = vmatpush1.msra.mxu0 %v3867
    %3882 = vmatprep.subr.mxu0 0.0
    %3883 = vmatpush1.msra.mxu0 %v3868
    %3884 = vmatprep.subr.mxu0 0.0
    %3885 = vmatpush1.msra.mxu0 %v3869
    %3886 = vmatprep.subr.mxu0 0.0
    %3887 = vmatpush1.msra.mxu0 %v3870
    %3888 = vmatprep.subr.mxu0 0.0
    %3889 = vmatpush1.msra.mxu0 %v3871
    %3890 = vmatprep.subr.mxu0 0.0
    %3891 = vmatpush1.msra.mxu0 %v3872
    %3892 = vmatprep.subr.mxu0 0.0
    %3893 = vmatpush1.msra.mxu0 %v3873
    %3894 = vmatprep.subr.mxu0 0.0
    %3895 = vmatpush1.msra.mxu0 %v3874
    %3896 = vmatprep.subr.mxu0 0.0
    %3897 = vmatpush1.msra.mxu0 %v3875
    %3898 = vmatprep.subr.mxu0 0.0
    %3899 = vmatpush1.msra.mxu0 %v3876
    %3900 = vmatprep.subr.mxu0 0.0
    %3901 = vmatpush1.msra.mxu0 0.0
    %3902 = vmatprep.subr.mxu0 0.0
    %3903 = vmatpush1.msra.mxu0 0.0
    %3904 = vmatprep.subr.mxu0 0.0
    %3905 = vmatpush1.msra.mxu0 0.0
    %3906 = vmatprep.subr.mxu0 0.0
    %3907 = vmatpush1.msra.mxu0 0.0
    %3908 = vmatprep.subr.mxu0 0.0
    %3909 = vmatpush1.msra.mxu0 0.0
    %3910 = vmatprep.subr.mxu0 0.0
    %3911 = vmatpush1.msra.mxu0 0.0
    %3912 = vmatprep.subr.mxu0 0.0
    %3913 = vmatpush1.msra.mxu0 0.0
    %3914 = vmatprep.subr.mxu0 0.0
    %3915 = vmatpush1.msra.mxu0 0.0
    %3916 = vmatprep.subr.mxu0 0.0
    %3917 = vmatpush1.msra.mxu0 0.0
    %3918 = vmatprep.subr.mxu0 0.0
    %3919 = vmatpush1.msra.mxu0 0.0
    %3920 = vmatprep.subr.mxu0 0.0
    %3921 = vmatpush1.msra.mxu0 0.0
    %3922 = vmatprep.subr.mxu0 0.0
    %3923 = vmatpush1.msra.mxu0 0.0
    %3924 = vmatprep.subr.mxu0 0.0
    %3925 = vmatpush1.msra.mxu0 0.0
    %3926 = vmatprep.subr.mxu0 0.0
    %3927 = vmatpush1.msra.mxu0 0.0
    %3928 = vmatprep.subr.mxu0 0.0
    %3929 = vmatpush1.msra.mxu0 0.0
    %3930 = vmatprep.subr.mxu0 0.0
    %3931 = vmatpush1.msra.mxu0 0.0
    %3932 = vmatprep.subr.mxu0 0.0
    %3933 = vmatpush1.msra.mxu0 0.0
    %3934 = vmatprep.subr.mxu0 0.0
    %3935 = vmatpush1.msra.mxu0 0.0
    %3936 = vmatprep.subr.mxu0 0.0
    %3937 = vmatpush1.msra.mxu0 0.0
    %3938 = vmatprep.subr.mxu0 0.0
    %3939 = vmatpush1.msra.mxu0 0.0
    %3940 = vmatprep.subr.mxu0 0.0
    %3941 = vmatpush1.msra.mxu0 0.0
    %3942 = vmatprep.subr.mxu0 0.0
    %3943 = vmatpush1.msra.mxu0 0.0
    %3944 = vmatprep.mubr.f32.mxu0 0.0
    %3945 = vmatmul.mubr.f32.gmra.mrb[0].mxu0 %v3878
    %v3946 = vpop.f32.mrb[0].mxu0
    %v3947 = vadd.f32 0.0, %v3946
    %v3948 = vpop.f32.mrb[0].mxu0
    %3949 = vdwg.mxu0
    %v3950 = vrot.slane %v3231, 4
    %v3951 = vsel %vm3257, %v3950, 0
    %3953 = vmatprep.subr.mxu0 0.0
    %3954 = vmatpush1.msra.mxu0 %v3867
    %3955 = vmatprep.subr.mxu0 0.0
    %3956 = vmatpush1.msra.mxu0 %v3868
    %3957 = vmatprep.subr.mxu0 0.0
    %3958 = vmatpush1.msra.mxu0 %v3869
    %3959 = vmatprep.subr.mxu0 0.0
    %3960 = vmatpush1.msra.mxu0 %v3870
    %3961 = vmatprep.subr.mxu0 0.0
    %3962 = vmatpush1.msra.mxu0 %v3871
    %3963 = vmatprep.subr.mxu0 0.0
    %3964 = vmatpush1.msra.mxu0 %v3872
    %3965 = vmatprep.subr.mxu0 0.0
    %3966 = vmatpush1.msra.mxu0 %v3873
    %3967 = vmatprep.subr.mxu0 0.0
    %3968 = vmatpush1.msra.mxu0 %v3874
    %3969 = vmatprep.subr.mxu0 0.0
    %3970 = vmatpush1.msra.mxu0 %v3875
    %3971 = vmatprep.subr.mxu0 0.0
    %3972 = vmatpush1.msra.mxu0 %v3876
    %3973 = vmatprep.subr.mxu0 0.0
    %3974 = vmatpush1.msra.mxu0 0.0
    %3975 = vmatprep.subr.mxu0 0.0
    %3976 = vmatpush1.msra.mxu0 0.0
    %3977 = vmatprep.subr.mxu0 0.0
    %3978 = vmatpush1.msra.mxu0 0.0
    %3979 = vmatprep.subr.mxu0 0.0
    %3980 = vmatpush1.msra.mxu0 0.0
    %3981 = vmatprep.subr.mxu0 0.0
    %3982 = vmatpush1.msra.mxu0 0.0
    %3983 = vmatprep.subr.mxu0 0.0
    %3984 = vmatpush1.msra.mxu0 0.0
    %3985 = vmatprep.subr.mxu0 0.0
    %3986 = vmatpush1.msra.mxu0 0.0
    %3987 = vmatprep.subr.mxu0 0.0
    %3988 = vmatpush1.msra.mxu0 0.0
    %3989 = vmatprep.subr.mxu0 0.0
    %3990 = vmatpush1.msra.mxu0 0.0
    %3991 = vmatprep.subr.mxu0 0.0
    %3992 = vmatpush1.msra.mxu0 0.0
    %3993 = vmatprep.subr.mxu0 0.0
    %3994 = vmatpush1.msra.mxu0 0.0
    %3995 = vmatprep.subr.mxu0 0.0
    %3996 = vmatpush1.msra.mxu0 0.0
    %3997 = vmatprep.subr.mxu0 0.0
    %3998 = vmatpush1.msra.mxu0 0.0
    %3999 = vmatprep.subr.mxu0 0.0
    %4000 = vmatpush1.msra.mxu0 0.0
    %4001 = vmatprep.subr.mxu0 0.0
    %4002 = vmatpush1.msra.mxu0 0.0
    %4003 = vmatprep.subr.mxu0 0.0
    %4004 = vmatpush1.msra.mxu0 0.0
    %4005 = vmatprep.subr.mxu0 0.0
    %4006 = vmatpush1.msra.mxu0 0.0
    %4007 = vmatprep.subr.mxu0 0.0
    %4008 = vmatpush1.msra.mxu0 0.0
    %4009 = vmatprep.subr.mxu0 0.0
    %4010 = vmatpush1.msra.mxu0 0.0
    %4011 = vmatprep.subr.mxu0 0.0
    %4012 = vmatpush1.msra.mxu0 0.0
    %4013 = vmatprep.subr.mxu0 0.0
    %4014 = vmatpush1.msra.mxu0 0.0
    %4015 = vmatprep.subr.mxu0 0.0
    %4016 = vmatpush1.msra.mxu0 0.0
    %4017 = vmatprep.mubr.f32.mxu0 0.0
    %4018 = vmatmul.mubr.f32.gmra.mrb[0].mxu0 %v3951
    %v4019 = vpop.f32.mrb[0].mxu0
    %v4020 = vadd.f32 0.0, %v4019
    %v4021 = vpop.f32.mrb[0].mxu0
    %4022 = vdwg.mxu0
    %v4023 = vadd.f32 %v3864, %v3947
    %v4024 = vadd.f32 %v3865, %v4020
    %v4025 = vld [vmem:[%s10] sm:$0x1]
    %v4026 = vadd.f32 %v4023, %v4025
    %v4027 = vadd.f32 %v4024, %v4025
    %v4028 = vmax.f32 %v4026, 0.0
    %v4029 = vmax.f32 %v4027, 0.0
    %v4030 = vld [vmem:[%s11] sm:$0xff]
    %v4031 = vld [vmem:[%s11 + $0x8] sm:$0xff]
    %v4032 = vld [vmem:[%s11 + $0x10] sm:$0xff]
    %v4033 = vld [vmem:[%s11 + $0x18] sm:$0xff]
    %v4034 = vld [vmem:[%s11 + $0x20] sm:$0xff]
    %v4035 = vld [vmem:[%s11 + $0x28] sm:$0xff]
    %v4036 = vld [vmem:[%s11 + $0x30] sm:$0xff]
    %v4037 = vld [vmem:[%s11 + $0x38] sm:$0xff]
    %v4038 = vld [vmem:[%s11 + $0x40] sm:$0xff]
    %v4039 = vld [vmem:[%s11 + $0x48] sm:$0xff]
    %v4040 = vld [vmem:[%s11 + $0x50] sm:$0xff]
    %v4041 = vld [vmem:[%s11 + $0x58] sm:$0xff]
    %v4042 = vld [vmem:[%s11 + $0x60] sm:$0xff]
    %v4043 = vld [vmem:[%s11 + $0x68] sm:$0xff]
    %v4044 = vld [vmem:[%s11 + $0x70] sm:$0xff]
    %v4045 = vld [vmem:[%s12] sm:$0x1]
    %vm4046 = vcmask 982016
    %v4048 = vsel %vm4046, %v4028, 0
    %4050 = vmatprep.subr.mxu0 0.0
    %4051 = vmatpush1.msra.mxu0 %v4030
    %4052 = vmatprep.subr.mxu0 0.0
    %4053 = vmatpush1.msra.mxu0 %v4031
    %4054 = vmatprep.subr.mxu0 0.0
    %4055 = vmatpush1.msra.mxu0 %v4032
    %4056 = vmatprep.subr.mxu0 0.0
    %4057 = vmatpush1.msra.mxu0 %v4033
    %4058 = vmatprep.subr.mxu0 0.0
    %4059 = vmatpush1.msra.mxu0 %v4034
    %4060 = vmatprep.subr.mxu0 0.0
    %4061 = vmatpush1.msra.mxu0 %v4035
    %4062 = vmatprep.subr.mxu0 0.0
    %4063 = vmatpush1.msra.mxu0 %v4036
    %4064 = vmatprep.subr.mxu0 0.0
    %4065 = vmatpush1.msra.mxu0 %v4037
    %4066 = vmatprep.subr.mxu0 0.0
    %4067 = vmatpush1.msra.mxu0 %v4038
    %4068 = vmatprep.subr.mxu0 0.0
    %4069 = vmatpush1.msra.mxu0 %v4039
    %4070 = vmatprep.subr.mxu0 0.0
    %4071 = vmatpush1.msra.mxu0 %v4040
    %4072 = vmatprep.subr.mxu0 0.0
    %4073 = vmatpush1.msra.mxu0 %v4041
    %4074 = vmatprep.subr.mxu0 0.0
    %4075 = vmatpush1.msra.mxu0 %v4042
    %4076 = vmatprep.subr.mxu0 0.0
    %4077 = vmatpush1.msra.mxu0 %v4043
    %4078 = vmatprep.subr.mxu0 0.0
    %4079 = vmatpush1.msra.mxu0 %v4044
    %4080 = vmatprep.subr.mxu0 0.0
    %4081 = vmatpush1.msra.mxu0 0.0
    %4082 = vmatprep.subr.mxu0 0.0
    %4083 = vmatpush1.msra.mxu0 0.0
    %4084 = vmatprep.subr.mxu0 0.0
    %4085 = vmatpush1.msra.mxu0 0.0
    %4086 = vmatprep.subr.mxu0 0.0
    %4087 = vmatpush1.msra.mxu0 0.0
    %4088 = vmatprep.subr.mxu0 0.0
    %4089 = vmatpush1.msra.mxu0 0.0
    %4090 = vmatprep.subr.mxu0 0.0
    %4091 = vmatpush1.msra.mxu0 0.0
    %4092 = vmatprep.subr.mxu0 0.0
    %4093 = vmatpush1.msra.mxu0 0.0
    %4094 = vmatprep.subr.mxu0 0.0
    %4095 = vmatpush1.msra.mxu0 0.0
    %4096 = vmatprep.subr.mxu0 0.0
    %4097 = vmatpush1.msra.mxu0 0.0
    %4098 = vmatprep.subr.mxu0 0.0
    %4099 = vmatpush1.msra.mxu0 0.0
    %4100 = vmatprep.subr.mxu0 0.0
    %4101 = vmatpush1.msra.mxu0 0.0
    %4102 = vmatprep.subr.mxu0 0.0
    %4103 = vmatpush1.msra.mxu0 0.0
    %4104 = vmatprep.subr.mxu0 0.0
    %4105 = vmatpush1.msra.mxu0 0.0
    %4106 = vmatprep.subr.mxu0 0.0
    %4107 = vmatpush1.msra.mxu0 0.0
    %4108 = vmatprep.subr.mxu0 0.0
    %4109 = vmatpush1.msra.mxu0 0.0
    %4110 = vmatprep.subr.mxu0 0.0
    %4111 = vmatpush1.msra.mxu0 0.0
    %4112 = vmatprep.subr.mxu0 0.0
    %4113 = vmatpush1.msra.mxu0 0.0
    %4114 = vmatprep.mubr.f32.mxu0 0.0
    %4115 = vmatmul.mubr.f32.gmra.mrb[0].mxu0 %v4048
    %v4116 = vpop.f32.mrb[0].mxu0
    %v4117 = vadd.f32 %v4045, %v4116
    %v4118 = vpop.f32.mrb[0].mxu0
    %4119 = vdwg.mxu0
    %v4121 = vsel %vm4046, %v4029, 0
    %4123 = vmatprep.subr.mxu0 0.0
    %4124 = vmatpush1.msra.mxu0 %v4030
    %4125 = vmatprep.subr.mxu0 0.0
    %4126 = vmatpush1.msra.mxu0 %v4031
    %4127 = vmatprep.subr.mxu0 0.0
    %4128 = vmatpush1.msra.mxu0 %v4032
    %4129 = vmatprep.subr.mxu0 0.0
    %4130 = vmatpush1.msra.mxu0 %v4033
    %4131 = vmatprep.subr.mxu0 0.0
    %4132 = vmatpush1.msra.mxu0 %v4034
    %4133 = vmatprep.subr.mxu0 0.0
    %4134 = vmatpush1.msra.mxu0 %v4035
    %4135 = vmatprep.subr.mxu0 0.0
    %4136 = vmatpush1.msra.mxu0 %v4036
    %4137 = vmatprep.subr.mxu0 0.0
    %4138 = vmatpush1.msra.mxu0 %v4037
    %4139 = vmatprep.subr.mxu0 0.0
    %4140 = vmatpush1.msra.mxu0 %v4038
    %4141 = vmatprep.subr.mxu0 0.0
    %4142 = vmatpush1.msra.mxu0 %v4039
    %4143 = vmatprep.subr.mxu0 0.0
    %4144 = vmatpush1.msra.mxu0 %v4040
    %4145 = vmatprep.subr.mxu0 0.0
    %4146 = vmatpush1.msra.mxu0 %v4041
    %4147 = vmatprep.subr.mxu0 0.0
    %4148 = vmatpush1.msra.mxu0 %v4042
    %4149 = vmatprep.subr.mxu0 0.0
    %4150 = vmatpush1.msra.mxu0 %v4043
    %4151 = vmatprep.subr.mxu0 0.0
    %4152 = vmatpush1.msra.mxu0 %v4044
    %4153 = vmatprep.subr.mxu0 0.0
    %4154 = vmatpush1.msra.mxu0 0.0
    %4155 = vmatprep.subr.mxu0 0.0
    %4156 = vmatpush1.msra.mxu0 0.0
    %4157 = vmatprep.subr.mxu0 0.0
    %4158 = vmatpush1.msra.mxu0 0.0
    %4159 = vmatprep.subr.mxu0 0.0
    %4160 = vmatpush1.msra.mxu0 0.0
    %4161 = vmatprep.subr.mxu0 0.0
    %4162 = vmatpush1.msra.mxu0 0.0
    %4163 = vmatprep.subr.mxu0 0.0
    %4164 = vmatpush1.msra.mxu0 0.0
    %4165 = vmatprep.subr.mxu0 0.0
    %4166 = vmatpush1.msra.mxu0 0.0
    %4167 = vmatprep.subr.mxu0 0.0
    %4168 = vmatpush1.msra.mxu0 0.0
    %4169 = vmatprep.subr.mxu0 0.0
    %4170 = vmatpush1.msra.mxu0 0.0
    %4171 = vmatprep.subr.mxu0 0.0
    %4172 = vmatpush1.msra.mxu0 0.0
    %4173 = vmatprep.subr.mxu0 0.0
    %4174 = vmatpush1.msra.mxu0 0.0
    %4175 = vmatprep.subr.mxu0 0.0
    %4176 = vmatpush1.msra.mxu0 0.0
    %4177 = vmatprep.subr.mxu0 0.0
    %4178 = vmatpush1.msra.mxu0 0.0
    %4179 = vmatprep.subr.mxu0 0.0
    %4180 = vmatpush1.msra.mxu0 0.0
    %4181 = vmatprep.subr.mxu0 0.0
    %4182 = vmatpush1.msra.mxu0 0.0
    %4183 = vmatprep.subr.mxu0 0.0
    %4184 = vmatpush1.msra.mxu0 0.0
    %4185 = vmatprep.subr.mxu0 0.0
    %4186 = vmatpush1.msra.mxu0 0.0
    %4187 = vmatprep.mubr.f32.mxu0 0.0
    %4188 = vmatmul.mubr.f32.gmra.mrb[0].mxu0 %v4121
    %v4189 = vpop.f32.mrb[0].mxu0
    %v4190 = vadd.f32 %v4045, %v4189
    %v4191 = vpop.f32.mrb[0].mxu0
    %4192 = vdwg.mxu0
    %v4193 = vmax.f32 %v4117, 0.0
    %v4194 = vmax.f32 %v4190, 0.0
    %v4195 = vld [vmem:[%s13] sm:$0xff]
    %v4196 = vld [vmem:[%s13 + $0x8] sm:$0xff]
    %v4197 = vld [vmem:[%s13 + $0x10] sm:$0xff]
    %v4198 = vld [vmem:[%s13 + $0x18] sm:$0xff]
    %v4199 = vld [vmem:[%s13 + $0x20] sm:$0xff]
    %v4200 = vld [vmem:[%s13 + $0x28] sm:$0xff]
    %v4201 = vld [vmem:[%s13 + $0x30] sm:$0xff]
    %v4202 = vld [vmem:[%s13 + $0x38] sm:$0xff]
    %v4203 = vld [vmem:[%s13 + $0x40] sm:$0xff]
    %v4204 = vld [vmem:[%s13 + $0x48] sm:$0xff]
    %v4205 = vld [vmem:[%s13 + $0x50] sm:$0xf]
    %v4206 = vld [vmem:[%s14] sm:$0x1]
    %v4208 = vsel %vm1835, %v4193, 0
    %v4211 = vsel %vm965, %v4205, 0
    %4213 = vmatprep.subr.mxu0 0.0
    %4214 = vmatpush1.msra.mxu0 %v4195
    %4215 = vmatprep.subr.mxu0 0.0
    %4216 = vmatpush1.msra.mxu0 %v4196
    %4217 = vmatprep.subr.mxu0 0.0
    %4218 = vmatpush1.msra.mxu0 %v4197
    %4219 = vmatprep.subr.mxu0 0.0
    %4220 = vmatpush1.msra.mxu0 %v4198
    %4221 = vmatprep.subr.mxu0 0.0
    %4222 = vmatpush1.msra.mxu0 %v4199
    %4223 = vmatprep.subr.mxu0 0.0
    %4224 = vmatpush1.msra.mxu0 %v4200
    %4225 = vmatprep.subr.mxu0 0.0
    %4226 = vmatpush1.msra.mxu0 %v4201
    %4227 = vmatprep.subr.mxu0 0.0
    %4228 = vmatpush1.msra.mxu0 %v4202
    %4229 = vmatprep.subr.mxu0 0.0
    %4230 = vmatpush1.msra.mxu0 %v4203
    %4231 = vmatprep.subr.mxu0 0.0
    %4232 = vmatpush1.msra.mxu0 %v4204
    %4233 = vmatprep.subr.mxu0 0.0
    %4234 = vmatpush1.msra.mxu0 %v4211
    %4235 = vmatprep.subr.mxu0 0.0
    %4236 = vmatpush1.msra.mxu0 0.0
    %4237 = vmatprep.subr.mxu0 0.0
    %4238 = vmatpush1.msra.mxu0 0.0
    %4239 = vmatprep.subr.mxu0 0.0
    %4240 = vmatpush1.msra.mxu0 0.0
    %4241 = vmatprep.subr.mxu0 0.0
    %4242 = vmatpush1.msra.mxu0 0.0
    %4243 = vmatprep.subr.mxu0 0.0
    %4244 = vmatpush1.msra.mxu0 0.0
    %4245 = vmatprep.subr.mxu0 0.0
    %4246 = vmatpush1.msra.mxu0 0.0
    %4247 = vmatprep.subr.mxu0 0.0
    %4248 = vmatpush1.msra.mxu0 0.0
    %4249 = vmatprep.subr.mxu0 0.0
    %4250 = vmatpush1.msra.mxu0 0.0
    %4251 = vmatprep.subr.mxu0 0.0
    %4252 = vmatpush1.msra.mxu0 0.0
    %4253 = vmatprep.subr.mxu0 0.0
    %4254 = vmatpush1.msra.mxu0 0.0
    %4255 = vmatprep.subr.mxu0 0.0
    %4256 = vmatpush1.msra.mxu0 0.0
    %4257 = vmatprep.subr.mxu0 0.0
    %4258 = vmatpush1.msra.mxu0 0.0
    %4259 = vmatprep.subr.mxu0 0.0
    %4260 = vmatpush1.msra.mxu0 0.0
    %4261 = vmatprep.subr.mxu0 0.0
    %4262 = vmatpush1.msra.mxu0 0.0
    %4263 = vmatprep.subr.mxu0 0.0
    %4264 = vmatpush1.msra.mxu0 0.0
    %4265 = vmatprep.subr.mxu0 0.0
    %4266 = vmatpush1.msra.mxu0 0.0
    %4267 = vmatprep.subr.mxu0 0.0
    %4268 = vmatpush1.msra.mxu0 0.0
    %4269 = vmatprep.subr.mxu0 0.0
    %4270 = vmatpush1.msra.mxu0 0.0
    %4271 = vmatprep.subr.mxu0 0.0
    %4272 = vmatpush1.msra.mxu0 0.0
    %4273 = vmatprep.subr.mxu0 0.0
    %4274 = vmatpush1.msra.mxu0 0.0
    %4275 = vmatprep.subr.mxu0 0.0
    %4276 = vmatpush1.msra.mxu0 0.0
    %4277 = vmatprep.mubr.f32.mxu0 0.0
    %4278 = vmatmul.mubr.f32.gmra.mrb[0].mxu0 %v4208
    %v4279 = vpop.f32.mrb[0].mxu0
    %v4280 = vadd.f32 %v4206, %v4279
    %v4281 = vpop.f32.mrb[0].mxu0
    %4282 = vdwg.mxu0
    %v4284 = vsel %vm1835, %v4194, 0
    %4286 = vmatprep.subr.mxu0 0.0
    %4287 = vmatpush1.msra.mxu0 %v4195
    %4288 = vmatprep.subr.mxu0 0.0
    %4289 = vmatpush1.msra.mxu0 %v4196
    %4290 = vmatprep.subr.mxu0 0.0
    %4291 = vmatpush1.msra.mxu0 %v4197
    %4292 = vmatprep.subr.mxu0 0.0
    %4293 = vmatpush1.msra.mxu0 %v4198
    %4294 = vmatprep.subr.mxu0 0.0
    %4295 = vmatpush1.msra.mxu0 %v4199
    %4296 = vmatprep.subr.mxu0 0.0
    %4297 = vmatpush1.msra.mxu0 %v4200
    %4298 = vmatprep.subr.mxu0 0.0
    %4299 = vmatpush1.msra.mxu0 %v4201
    %4300 = vmatprep.subr.mxu0 0.0
    %4301 = vmatpush1.msra.mxu0 %v4202
    %4302 = vmatprep.subr.mxu0 0.0
    %4303 = vmatpush1.msra.mxu0 %v4203
    %4304 = vmatprep.subr.mxu0 0.0
    %4305 = vmatpush1.msra.mxu0 %v4204
    %4306 = vmatprep.subr.mxu0 0.0
    %4307 = vmatpush1.msra.mxu0 %v4211
    %4308 = vmatprep.subr.mxu0 0.0
    %4309 = vmatpush1.msra.mxu0 0.0
    %4310 = vmatprep.subr.mxu0 0.0
    %4311 = vmatpush1.msra.mxu0 0.0
    %4312 = vmatprep.subr.mxu0 0.0
    %4313 = vmatpush1.msra.mxu0 0.0
    %4314 = vmatprep.subr.mxu0 0.0
    %4315 = vmatpush1.msra.mxu0 0.0
    %4316 = vmatprep.subr.mxu0 0.0
    %4317 = vmatpush1.msra.mxu0 0.0
    %4318 = vmatprep.subr.mxu0 0.0
    %4319 = vmatpush1.msra.mxu0 0.0
    %4320 = vmatprep.subr.mxu0 0.0
    %4321 = vmatpush1.msra.mxu0 0.0
    %4322 = vmatprep.subr.mxu0 0.0
    %4323 = vmatpush1.msra.mxu0 0.0
    %4324 = vmatprep.subr.mxu0 0.0
    %4325 = vmatpush1.msra.mxu0 0.0
    %4326 = vmatprep.subr.mxu0 0.0
    %4327 = vmatpush1.msra.mxu0 0.0
    %4328 = vmatprep.subr.mxu0 0.0
    %4329 = vmatpush1.msra.mxu0 0.0
    %4330 = vmatprep.subr.mxu0 0.0
    %4331 = vmatpush1.msra.mxu0 0.0
    %4332 = vmatprep.subr.mxu0 0.0
    %4333 = vmatpush1.msra.mxu0 0.0
    %4334 = vmatprep.subr.mxu0 0.0
    %4335 = vmatpush1.msra.mxu0 0.0
    %4336 = vmatprep.subr.mxu0 0.0
    %4337 = vmatpush1.msra.mxu0 0.0
    %4338 = vmatprep.subr.mxu0 0.0
    %4339 = vmatpush1.msra.mxu0 0.0
    %4340 = vmatprep.subr.mxu0 0.0
    %4341 = vmatpush1.msra.mxu0 0.0
    %4342 = vmatprep.subr.mxu0 0.0
    %4343 = vmatpush1.msra.mxu0 0.0
    %4344 = vmatprep.subr.mxu0 0.0
    %4345 = vmatpush1.msra.mxu0 0.0
    %4346 = vmatprep.subr.mxu0 0.0
    %4347 = vmatpush1.msra.mxu0 0.0
    %4348 = vmatprep.subr.mxu0 0.0
    %4349 = vmatpush1.msra.mxu0 0.0
    %4350 = vmatprep.mubr.f32.mxu0 0.0
    %4351 = vmatmul.mubr.f32.gmra.mrb[0].mxu0 %v4284
    %v4352 = vpop.f32.mrb[0].mxu0
    %v4353 = vadd.f32 %v4206, %v4352
    %v4354 = vpop.f32.mrb[0].mxu0
    %4355 = vdwg.mxu0
    %vm4356 = vcmask 73728
    %4357 = vst.msk [vmem:[#allocation2] sm:$0x1] %vm4356, %v4280
    %4358 = vst.msk [vmem:[#allocation2 + $0x1] sm:$0x1] %vm4356, %v4353
    // Predicated region
    $region62: #{net_forward.1} parent=1 // pred_check
      _
    $region63: #{net_forward.1} parent=1 // pred_check_branch
      %4360 = sbr.rel (0) target = $region65
    $region64: #{net_forward.1} parent=1 // pred_region
      %s4362 = ssub.s32 32, 32
      %4363 = vsyncadd [#allocation3], %s4362
      %s4364 = sshll.u32 [#allocation2], 4
      %s4365 = int_to_ptr.vmem [resolvable:$true] %s4364
      %4370 = dma.vmem_to_hbm [thread:$0]  %s4365, 32, %s15, [#allocation3], 16, 16, 1
    $region65: #{net_forward.1} parent=1 // pred_fallthru
      _
    // Predicated region
    $region66: #{net_forward.1} parent=1 // pred_check
      _
    $region67: #{net_forward.1} parent=1 // pred_check_branch
      %4372 = sbr.rel (0) target = $region69
    $region68: #{net_forward.1} parent=1 // pred_region
      %4373 = dma.done [#allocation3], 32
    $region69: #{net_forward.1} parent=1 // pred_fallthru
      _
    %4374 = vsyncpa [#allocation3], 1

</llo_original>
